<compile_context>
chip_gen: v7x
topology: tpu7x:2x2x1
jax: 0.10.0
libtpu: 0.0.40
codegen_flags: <defaults>
</compile_context>

<pallas_src>
import functools

import numpy as np
import jax
import jax.numpy as jnp
from jax.experimental import pallas as pl
from jax.experimental.pallas import tpu as pltpu

KSIZE = 3      # Down_Conv_block kernel_size
STRIDE = 2     # downscale_factor
F32 = jnp.float32
TB = 8         # images per grid step (multiple of 8)


# ------------------- banded-weight assembly (init-time only) -----------------

def _banded_same_nopad(wc, W):
    """'same' conv (stride 1, pad 1): per kernel row kh a (W*Cin, W*Cin) matrix
    with the kw shift, channel contraction AND the column zero-padding folded
    in (out-of-range columns simply contribute nothing)."""
    K, _, Cin, Co = wc.shape
    out = np.zeros((K, W * Cin, W * Co), np.float32)
    for kh in range(K):
        for kw in range(K):
            for wo_ in range(W):
                wi = wo_ + kw - 1
                if 0 <= wi < W:
                    out[kh, wi * Cin:(wi + 1) * Cin,
                        wo_ * Co:(wo_ + 1) * Co] = wc[kh, kw]
    return out


def _banded_strided(w, W, stride):
    """'valid' conv with stride: per kernel row kh a (W*Cin, Wo*Co) matrix that
    folds the kw shift, the channel contraction and the stride-`stride` column
    subsampling."""
    K, _, Cin, Co = w.shape
    Wo = (W - K) // stride + 1
    out = np.zeros((K, W * Cin, Wo * Co), np.float32)
    for kh in range(K):
        for kw in range(K):
            for wo_ in range(Wo):
                wi = stride * wo_ + kw
                out[kh, wi * Cin:(wi + 1) * Cin,
                    wo_ * Co:(wo_ + 1) * Co] = w[kh, kw]
    return out


# --------------------------------- params ------------------------------------

def init_cnn_encoder_params(key, nb, nu, na, ny_hw, nx,
                            n_hidden_nodes=32, features_ups_factor=1.5):
    keys = iter(jax.random.split(key, 64))

    def rnd(shape, scale=0.1):
        return np.asarray(scale * jax.random.normal(next(keys), shape, F32))

    C0, (H0, W0) = na, ny_hw
    feat_base = float(C0)
    h, w, cin = H0, W0, C0
    raw_blocks, metas = [], []

    # replicate CNN_chained_downscales block-shape derivation
    while h >= 2 * STRIDE + 1 and w >= 2 * STRIDE + 1:
        feat_base *= features_ups_factor
        cout = int(feat_base)
        ho, wo = (h - KSIZE) // STRIDE + 1, (w - KSIZE) // STRIDE + 1
        raw_blocks.append(dict(
            wc=rnd((KSIZE, KSIZE, cin, cin)), bc=rnd((cin,)),
            ws=rnd((KSIZE, KSIZE, cin, cout)), bs=rnd((cout,)),
            wd=rnd((KSIZE, KSIZE, cin, cout)), bd=rnd((cout,))))
        metas.append((h, w, cin, cout, ho, wo))
        h, w, cin = ho, wo, cout
    assert metas, "input spatial size too small for any Down_Conv_block"

    cnn_nout = cin * h * w
    d_u = nb * nu
    d_in = d_u + cnn_nout
    nh = n_hidden_nodes

    raw_mlp = dict(
        w1=rnd((d_in, nh)), w2=rnd((nh, nh)), w3=rnd((nh, nx)), wr=rnd((d_in, nx)),
        b1=np.zeros((nh,), np.float32), b2=np.zeros((nh,), np.float32),
        b3=np.zeros((nx,), np.float32), br=np.zeros((nx,), np.float32))  # zero_bias

    meta = dict(C0=C0, H0=H0, W0=W0, blocks=tuple(metas),
                d_u=d_u, nh=nh, nx=nx)
    raw = dict(blocks=raw_blocks, mlp=raw_mlp)
    return raw, meta


# ------------------ pack all constants into ONE VMEM buffer ------------------

def build_packed_constants(raw, meta, tb):
    """Build banded weights, stride-2 selection matrices, spaced biases and the
    MLP slabs for batch-tile `tb`, packed into a single (R, Cmax) f32 buffer
    with static 8-aligned row offsets."""
    blocks = meta["blocks"]
    nblk = len(blocks)
    d_u, nh, nx = meta["d_u"], meta["nh"], meta["nx"]
    entries = []

    for k, (H, Wd, Cin, Cout, Ho, Wo) in enumerate(blocks):
        rb = raw["blocks"][k]
        S = H + 2
        M2 = tb * S - 4
        wc_b = _banded_same_nopad(rb["wc"], Wd)                      # (3, WC, WC)
        wsd_b = np.concatenate(                                      # (3, 2WC, Wo*Cout)
            [_banded_strided(rb["ws"], Wd, STRIDE),
             _banded_strided(rb["wd"], Wd, STRIDE)], axis=1)
        for kh in range(KSIZE):
            entries.append((f"wc{k}_{kh}", wc_b[kh]))
            entries.append((f"wsd{k}_{kh}", wsd_b[kh]))
        entries.append((f"bc{k}", np.tile(rb["bc"], Wd)[None, :]))
        bsd_row = np.tile(rb["bs"] + rb["bd"], Wo)[None, :]          # (1, Wo*Cout)

        if k < nblk - 1:
            # re-space into the next block's stacked layout, bias at data rows
            So = Ho + 2
            sel = np.zeros((tb * So, M2), np.float32)
            bias = np.zeros((tb * So, Wo * Cout), np.float32)
            for b in range(tb):
                for ho in range(Ho):
                    sel[b * So + ho, b * S + STRIDE * ho] = 1.0
                    bias[b * So + ho, :] = bsd_row[0]
        else:
            # group-by-CNN-row layout feeding the MLP head directly
            sel = np.zeros((Ho * tb, M2), np.float32)
            for b in range(tb):
                for ho in range(Ho):
                    sel[ho * tb + b, b * S + STRIDE * ho] = 1.0
            bias = bsd_row
        entries.append((f"sel{k}", sel))
        entries.append((f"bias{k}", bias))

    # MLP_res_net weights: split the CNN part of w1/wr per CNN row and permute
    # from torch's NCHW-flatten (c,h,w) row order to the kernel's (w*Cf + c).
    Hf, Wf, Cf = blocks[-1][4], blocks[-1][5], blocks[-1][3]
    Kf = Wf * Cf
    m = raw["mlp"]

    def cnn_rows(wm, nout):
        return (wm[d_u:].reshape(Cf, Hf, Wf, nout)
                .transpose(1, 2, 0, 3).reshape(Hf, Kf, nout))

    w1c, wrc = cnn_rows(m["w1"], nh), cnn_rows(m["wr"], nx)
    entries.append(("w1_u", m["w1"][:d_u]))
    entries.append(("wr_u", m["wr"][:d_u]))
    for ho in range(Hf):
        entries.append((f"w1_c{ho}", w1c[ho]))
        entries.append((f"wr_c{ho}", wrc[ho]))
    entries.append(("w2", m["w2"]))
    entries.append(("w3", m["w3"]))
    entries.append(("b1", m["b1"][None, :]))
    entries.append(("b2", m["b2"][None, :]))
    entries.append(("b3r", (m["b3"] + m["br"])[None, :]))

    cmax = max(a.shape[1] for _, a in entries)
    offsets, R = {}, 0
    for name, a in entries:
        offsets[name] = (R, a.shape[0], a.shape[1])
        R += ((a.shape[0] + 7) // 8) * 8                 # 8-aligned row offsets
    buf = np.zeros((R, cmax), np.float32)
    for name, a in entries:
        off, r, c = offsets[name]
        buf[off:off + r, :c] = a
    return jnp.asarray(buf), offsets


# --------------------------------- kernel ------------------------------------

def _make_kernel(meta, offsets, tb):
    blocks = meta["blocks"]
    d_u, nh, nx = meta["d_u"], meta["nh"], meta["nx"]
    Hf = blocks[-1][4]

    def kernel(y_ref, u_ref, w_ref, o_ref, *scratch):
        def cst(name):                                   # static packed-weight view
            off, r, c = offsets[name]
            return w_ref[off:off + r, 0:c]

        # x: TB images stacked on sublanes, image b rows [b*(H+2), b*(H+2)+H),
        # two exact-zero spacer rows per image.
        x = y_ref[...]                                   # (tb*(H0+2), W0*C0)

        for k, (H, Wd, Cin, Cout, Ho, Wo) in enumerate(blocks):
            S, WC = H + 2, Wd * Cin
            M, M2 = tb * S - 2, tb * S - 4
            pad_ref, xc_ref = scratch[2 * k], scratch[2 * k + 1]

            # shortcut-branch input (pre-ReLU) and the ReLU'd padded image;
            # both stores are lane-offset 0.
            xc_ref[:, 0:WC] = x
            pad_ref[0:8, :] = jnp.zeros((8, WC), F32)    # image-0 top border
            pad_ref[8:8 + tb * S, :] = jnp.maximum(x, 0.0)

            # conv(padding='same'): 3 banded matmuls, one per kernel row;
            # M = tb*(H+2)-2 fills the MXU M dimension across the batch tile.
            acc = jnp.dot(pad_ref[7:7 + M, :], cst(f"wc{k}_0"),
                          preferred_element_type=F32)
            for kh in range(1, KSIZE):
                acc = acc + jnp.dot(pad_ref[7 + kh:7 + kh + M, :],
                                    cst(f"wc{k}_{kh}"),
                                    preferred_element_type=F32)
            xc_ref[0:M, WC:2 * WC] = jnp.maximum(acc + cst(f"bc{k}"), 0.0)

            # shortcut(X) + downscale(c) fused: [X | c] @ [Ws ; Wd] per kh, then
            # one 0/1 matmul that does the stride-2 row selection, re-spacing
            # for the next block (or MLP grouping) and bias placement.
            full = jnp.dot(xc_ref[0:M2, :], cst(f"wsd{k}_0"),
                           preferred_element_type=F32)
            for kh in range(1, KSIZE):
                full = full + jnp.dot(xc_ref[kh:kh + M2, :],
                                      cst(f"wsd{k}_{kh}"),
                                      preferred_element_type=F32)
            x = jnp.dot(cst(f"sel{k}"), full,
                        preferred_element_type=F32) + cst(f"bias{k}")

        # MLP_res_net head.  x is (Hf*tb, Wo*Cout), grouped by CNN output row,
        # so the flatten+concat becomes a few small matmul accumulations.
        u = u_ref[...]                                   # (tb, d_u)
        pre = jnp.dot(u, cst("w1_u"), preferred_element_type=F32)
        res = jnp.dot(u, cst("wr_u"), preferred_element_type=F32)
        for ho in range(Hf):
            xs = x[ho * tb:(ho + 1) * tb, :]             # aligned vreg slice
            pre = pre + jnp.dot(xs, cst(f"w1_c{ho}"), preferred_element_type=F32)
            res = res + jnp.dot(xs, cst(f"wr_c{ho}"), preferred_element_type=F32)
        h1 = jnp.tanh(pre + cst("b1"))
        h2 = jnp.tanh(jnp.dot(h1, cst("w2"), preferred_element_type=F32)
                      + cst("b2"))
        o_ref[...] = (jnp.dot(h2, cst("w3"), preferred_element_type=F32)
                      + res + cst("b3r"))                # one (tb, nx) store

    return kernel


# --------------------------------- forward -----------------------------------

def cnn_encoder_forward(wpack, upast, ypast, *, meta, offsets, tb=TB):
    B = ypast.shape[0]
    C0, H0, W0 = meta["C0"], meta["H0"], meta["W0"]
    d_u, nx = meta["d_u"], meta["nx"]
    blocks = meta["blocks"]

    Bp = ((B + tb - 1) // tb) * tb                       # pad batch to tile

    # torch: ypast.view(B, -1, H, W); kernel layout: per-image (H, W*C) slabs
    # stacked on sublanes with two zero spacer rows per image.
    y = ypast.reshape(B, C0, H0, W0).astype(F32)
    y = jnp.transpose(y, (0, 2, 3, 1)).reshape(B, H0, W0 * C0)
    y = jnp.pad(y, ((0, Bp - B), (0, 2), (0, 0)))
    y2 = y.reshape(Bp * (H0 + 2), W0 * C0)
    u2 = jnp.pad(upast.reshape(B, d_u).astype(F32), ((0, Bp - B), (0, 0)))

    scratch_shapes = []
    for (H, Wd, Cin, Cout, Ho, Wo) in blocks:
        scratch_shapes.append(pltpu.VMEM((8 + tb * (H + 2), Wd * Cin), F32))
        scratch_shapes.append(pltpu.VMEM((tb * (H + 2), 2 * Wd * Cin), F32))

    out = pl.pallas_call(
        _make_kernel(meta, offsets, tb),
        grid=(Bp // tb,),
        in_specs=[
            pl.BlockSpec((tb * (H0 + 2), W0 * C0), lambda i: (i, 0)),
            pl.BlockSpec((tb, d_u), lambda i: (i, 0)),
            pl.BlockSpec(wpack.shape, lambda i: (0, 0)),   # packed consts, 1 DMA
        ],
        out_specs=pl.BlockSpec((tb, nx), lambda i: (i, 0)),
        out_shape=jax.ShapeDtypeStruct((Bp, nx), F32),
        scratch_shapes=scratch_shapes,
        compiler_params=pltpu.CompilerParams(
            dimension_semantics=("parallel",)),
    )(y2, u2, wpack)
    return out[:B]


# ------------------------ pure-JAX reference (checking) ----------------------

def _conv2d_nhwc(x, w, b, stride, pad):
    if pad:
        x = jnp.pad(x, ((0, 0), (pad, pad), (pad, pad), (0, 0)))
    B, H, W, Cin = x.shape
    K = w.shape[0]
    Ho = (H - K) // stride + 1
    Wo = (W - K) // stride + 1
    out = jnp.zeros((B, Ho, Wo, w.shape[3]), F32) + b
    for kh in range(K):
        for kw in range(K):
            patch = jax.lax.slice(
                x, (0, kh, kw, 0),
                (B, kh + (Ho - 1) * stride + 1, kw + (Wo - 1) * stride + 1, Cin),
                (1, stride, stride, 1))
            out = out + jnp.einsum("bhwc,cd->bhwd", patch, w[kh, kw],
                                   precision=jax.lax.Precision.HIGHEST)
    return out


def reference_forward(raw, upast, ypast, meta):
    B = ypast.shape[0]
    x = jnp.transpose(ypast.reshape(B, meta["C0"], meta["H0"], meta["W0"]),
                      (0, 2, 3, 1)).astype(F32)
    for blk in raw["blocks"]:
        shortcut = _conv2d_nhwc(x, blk["ws"], blk["bs"], STRIDE, 0)
        a = jnp.maximum(x, 0.0)
        c = jnp.maximum(_conv2d_nhwc(a, blk["wc"], blk["bc"], 1, 1), 0.0)
        x = _conv2d_nhwc(c, blk["wd"], blk["bd"], STRIDE, 0) + shortcut
    cnn_flat = jnp.transpose(x, (0, 3, 1, 2)).reshape(B, -1)      # NCHW flatten
    z = jnp.concatenate([upast.reshape(B, -1).astype(F32), cnn_flat], axis=1)
    m = raw["mlp"]
    hp = jax.lax.Precision.HIGHEST
    h1 = jnp.tanh(jnp.dot(z, m["w1"], precision=hp))
    h2 = jnp.tanh(jnp.dot(h1, m["w2"], precision=hp))
    return jnp.dot(h2, m["w3"], precision=hp) + jnp.dot(z, m["wr"], precision=hp)


# ----------------------------------- main -------------------------------------

if __name__ == "__main__":
    nb, nu, na = 3, 2, 2
    ny = (16, 16)            # (height, width)  ->  CNN input channels = na
    nx = 4
    batch = 16               # -> grid of 2 steps with TB=8 (keeps 2 TCs busy)

    root = jax.random.PRNGKey(0)
    kp, ku, ky = jax.random.split(root, 3)

    raw, meta = init_cnn_encoder_params(kp, nb, nu, na, ny, nx,
                                        n_hidden_nodes=32)
    wpack, offsets = build_packed_constants(raw, meta, TB)

    upast = jax.random.normal(ku, (batch, nb, nu), F32)
    ypast = jax.random.normal(ky, (batch, na, ny[0], ny[1]), F32)

    fwd = jax.jit(functools.partial(cnn_encoder_forward,
                                    meta=meta, offsets=offsets, tb=TB))
    out = fwd(wpack, upast, ypast)
    jax.block_until_ready(out)
    assert out.shape == (batch, nx), out.shape

    ref = reference_forward(raw, upast, ypast, meta)
    assert jnp.allclose(out, ref, atol=1e-2, rtol=1e-2), (
        float(jnp.max(jnp.abs(out - ref))))

    print("KERNEL_OK")
</pallas_src>

<mosaic_0001>
module attributes {stable_mosaic.version = 11 : i64} {
  func.func @kernel(%arg0: i32, %arg1: memref<144x32xf32, #tpu.memory_space<vmem>>, %arg2: memref<8x6xf32, #tpu.memory_space<vmem>>, %arg3: memref<896x140xf32, #tpu.memory_space<vmem>>, %arg4: memref<8x4xf32, #tpu.memory_space<vmem>>, %arg5: memref<152x32xf32, #tpu.memory_space<vmem>>, %arg6: memref<144x64xf32, #tpu.memory_space<vmem>>, %arg7: memref<80x21xf32, #tpu.memory_space<vmem>>, %arg8: memref<72x42xf32, #tpu.memory_space<vmem>>) attributes {dimension_semantics = [#tpu.dimension_semantics<parallel>], iteration_bounds = array<i64: 2>, scalar_prefetch = 0 : i64, scratch_operands = 4 : i64, tpu.core_type = #tpu.core_type<tc>, window_params = [{transform_indices = @transform_0, window_bounds = array<i64: 144, 32>}, {transform_indices = @transform_1, window_bounds = array<i64: 8, 6>}, {pipeline_mode = #tpu.pipeline_mode<synchronous>, transform_indices = @transform_2, window_bounds = array<i64: 896, 140>}, {transform_indices = @transform_3, window_bounds = array<i64: 8, 4>}]} {
    %c0 = arith.constant 0 : index
    %c0_0 = arith.constant 0 : index
    %0 = vector.load %arg1[%c0, %c0_0] : memref<144x32xf32, #tpu.memory_space<vmem>>, vector<144x32xf32>
    %c0_1 = arith.constant 0 : index
    %c0_2 = arith.constant 0 : index
    %1 = vector.load %arg6[%c0_1, %c0_2] : memref<144x64xf32, #tpu.memory_space<vmem>>, vector<144x32xf32>
    tpu.vector_store %arg6[%c0_1, %c0_2], %0 {strides = array<i32>} : memref<144x64xf32, #tpu.memory_space<vmem>>, vector<144x32xf32>,
    %cst = arith.constant 0.000000e+00 : f32
    %2 = vector.broadcast %cst : f32 to vector<8x32xf32>
    %c0_3 = arith.constant 0 : index
    %c0_4 = arith.constant 0 : index
    %3 = vector.load %arg5[%c0_3, %c0_4] : memref<152x32xf32, #tpu.memory_space<vmem>>, vector<8x32xf32>
    tpu.vector_store %arg5[%c0_3, %c0_4], %2 {strides = array<i32>} : memref<152x32xf32, #tpu.memory_space<vmem>>, vector<8x32xf32>,
    %cst_5 = arith.constant 0.000000e+00 : f32
    %4 = vector.broadcast %cst_5 : f32 to vector<144x32xf32>
    %5 = arith.maximumf %0, %4 : vector<144x32xf32>
    %c8 = arith.constant 8 : index
    %c0_6 = arith.constant 0 : index
    %6 = vector.load %arg5[%c8, %c0_6] : memref<152x32xf32, #tpu.memory_space<vmem>>, vector<144x32xf32>
    tpu.vector_store %arg5[%c8, %c0_6], %5 {strides = array<i32>} : memref<152x32xf32, #tpu.memory_space<vmem>>, vector<144x32xf32>,
    %c7 = arith.constant 7 : index
    %c0_7 = arith.constant 0 : index
    %7 = vector.load %arg5[%c7, %c0_7] : memref<152x32xf32, #tpu.memory_space<vmem>>, vector<142x32xf32>
    %c0_8 = arith.constant 0 : index
    %c0_9 = arith.constant 0 : index
    %8 = vector.load %arg3[%c0_8, %c0_9] : memref<896x140xf32, #tpu.memory_space<vmem>>, vector<32x32xf32>
    %cst_10 = arith.constant dense<0.000000e+00> : vector<142x32xf32>
    %9 = tpu.matmul %7, %8, %cst_10 {dimension_numbers = #tpu.dot_dimension_numbers<[1], [0], [0], [1], [0, 0, 1, 1], [], []>} : vector<142x32xf32>, vector<32x32xf32>, vector<142x32xf32> -> vector<142x32xf32>
    %c8_11 = arith.constant 8 : index
    %c0_12 = arith.constant 0 : index
    %10 = vector.load %arg5[%c8_11, %c0_12] : memref<152x32xf32, #tpu.memory_space<vmem>>, vector<142x32xf32>
    %c96 = arith.constant 96 : index
    %c0_13 = arith.constant 0 : index
    %11 = vector.load %arg3[%c96, %c0_13] : memref<896x140xf32, #tpu.memory_space<vmem>>, vector<32x32xf32>
    %cst_14 = arith.constant dense<0.000000e+00> : vector<142x32xf32>
    %12 = tpu.matmul %10, %11, %cst_14 {dimension_numbers = #tpu.dot_dimension_numbers<[1], [0], [0], [1], [0, 0, 1, 1], [], []>} : vector<142x32xf32>, vector<32x32xf32>, vector<142x32xf32> -> vector<142x32xf32>
    %13 = arith.addf %9, %12 : vector<142x32xf32>
    %c9 = arith.constant 9 : index
    %c0_15 = arith.constant 0 : index
    %14 = vector.load %arg5[%c9, %c0_15] : memref<152x32xf32, #tpu.memory_space<vmem>>, vector<142x32xf32>
    %c192 = arith.constant 192 : index
    %c0_16 = arith.constant 0 : index
    %15 = vector.load %arg3[%c192, %c0_16] : memref<896x140xf32, #tpu.memory_space<vmem>>, vector<32x32xf32>
    %cst_17 = arith.constant dense<0.000000e+00> : vector<142x32xf32>
    %16 = tpu.matmul %14, %15, %cst_17 {dimension_numbers = #tpu.dot_dimension_numbers<[1], [0], [0], [1], [0, 0, 1, 1], [], []>} : vector<142x32xf32>, vector<32x32xf32>, vector<142x32xf32> -> vector<142x32xf32>
    %17 = arith.addf %13, %16 : vector<142x32xf32>
    %c288 = arith.constant 288 : index
    %c0_18 = arith.constant 0 : index
    %18 = vector.load %arg3[%c288, %c0_18] : memref<896x140xf32, #tpu.memory_space<vmem>>, vector<1x32xf32>
    %19 = vector.broadcast %18 : vector<1x32xf32> to vector<142x32xf32>
    %20 = arith.addf %17, %19 : vector<142x32xf32>
    %cst_19 = arith.constant 0.000000e+00 : f32
    %21 = vector.broadcast %cst_19 : f32 to vector<142x32xf32>
    %22 = arith.maximumf %20, %21 : vector<142x32xf32>
    %c0_20 = arith.constant 0 : index
    %c32 = arith.constant 32 : index
    %23 = vector.load %arg6[%c0_20, %c32] : memref<144x64xf32, #tpu.memory_space<vmem>>, vector<142x32xf32>
    tpu.vector_store %arg6[%c0_20, %c32], %22 {strides = array<i32>} : memref<144x64xf32, #tpu.memory_space<vmem>>, vector<142x32xf32>,
    %c0_21 = arith.constant 0 : index
    %c0_22 = arith.constant 0 : index
    %24 = vector.load %arg6[%c0_21, %c0_22] : memref<144x64xf32, #tpu.memory_space<vmem>>, vector<140x64xf32>
    %c32_23 = arith.constant 32 : index
    %c0_24 = arith.constant 0 : index
    %25 = vector.load %arg3[%c32_23, %c0_24] : memref<896x140xf32, #tpu.memory_space<vmem>>, vector<64x21xf32>
    %cst_25 = arith.constant dense<0.000000e+00> : vector<140x21xf32>
    %26 = tpu.matmul %24, %25, %cst_25 {dimension_numbers = #tpu.dot_dimension_numbers<[1], [0], [0], [1], [0, 0, 1, 1], [], []>} : vector<140x64xf32>, vector<64x21xf32>, vector<140x21xf32> -> vector<140x21xf32>
    %c1 = arith.constant 1 : index
    %c0_26 = arith.constant 0 : index
    %27 = vector.load %arg6[%c1, %c0_26] : memref<144x64xf32, #tpu.memory_space<vmem>>, vector<140x64xf32>
    %c128 = arith.constant 128 : index
    %c0_27 = arith.constant 0 : index
    %28 = vector.load %arg3[%c128, %c0_27] : memref<896x140xf32, #tpu.memory_space<vmem>>, vector<64x21xf32>
    %cst_28 = arith.constant dense<0.000000e+00> : vector<140x21xf32>
    %29 = tpu.matmul %27, %28, %cst_28 {dimension_numbers = #tpu.dot_dimension_numbers<[1], [0], [0], [1], [0, 0, 1, 1], [], []>} : vector<140x64xf32>, vector<64x21xf32>, vector<140x21xf32> -> vector<140x21xf32>
    %30 = arith.addf %26, %29 : vector<140x21xf32>
    %c2 = arith.constant 2 : index
    %c0_29 = arith.constant 0 : index
    %31 = vector.load %arg6[%c2, %c0_29] : memref<144x64xf32, #tpu.memory_space<vmem>>, vector<140x64xf32>
    %c224 = arith.constant 224 : index
    %c0_30 = arith.constant 0 : index
    %32 = vector.load %arg3[%c224, %c0_30] : memref<896x140xf32, #tpu.memory_space<vmem>>, vector<64x21xf32>
    %cst_31 = arith.constant dense<0.000000e+00> : vector<140x21xf32>
    %33 = tpu.matmul %31, %32, %cst_31 {dimension_numbers = #tpu.dot_dimension_numbers<[1], [0], [0], [1], [0, 0, 1, 1], [], []>} : vector<140x64xf32>, vector<64x21xf32>, vector<140x21xf32> -> vector<140x21xf32>
    %34 = arith.addf %30, %33 : vector<140x21xf32>
    %c296 = arith.constant 296 : index
    %c0_32 = arith.constant 0 : index
    %35 = vector.load %arg3[%c296, %c0_32] : memref<896x140xf32, #tpu.memory_space<vmem>>, vector<72x140xf32>
    %cst_33 = arith.constant dense<0.000000e+00> : vector<72x21xf32>
    %36 = tpu.matmul %35, %34, %cst_33 {dimension_numbers = #tpu.dot_dimension_numbers<[1], [0], [0], [1], [0, 0, 1, 1], [], []>} : vector<72x140xf32>, vector<140x21xf32>, vector<72x21xf32> -> vector<72x21xf32>
    %c368 = arith.constant 368 : index
    %c0_34 = arith.constant 0 : index
    %37 = vector.load %arg3[%c368, %c0_34] : memref<896x140xf32, #tpu.memory_space<vmem>>, vector<72x21xf32>
    %38 = arith.addf %36, %37 : vector<72x21xf32>
    %c0_35 = arith.constant 0 : index
    %c0_36 = arith.constant 0 : index
    %39 = vector.load %arg8[%c0_35, %c0_36] : memref<72x42xf32, #tpu.memory_space<vmem>>, vector<72x21xf32>
    tpu.vector_store %arg8[%c0_35, %c0_36], %38 {strides = array<i32>} : memref<72x42xf32, #tpu.memory_space<vmem>>, vector<72x21xf32>,
    %cst_37 = arith.constant 0.000000e+00 : f32
    %40 = vector.broadcast %cst_37 : f32 to vector<8x21xf32>
    %c0_38 = arith.constant 0 : index
    %c0_39 = arith.constant 0 : index
    %41 = vector.load %arg7[%c0_38, %c0_39] : memref<80x21xf32, #tpu.memory_space<vmem>>, vector<8x21xf32>
    tpu.vector_store %arg7[%c0_38, %c0_39], %40 {strides = array<i32>} : memref<80x21xf32, #tpu.memory_space<vmem>>, vector<8x21xf32>,
    %cst_40 = arith.constant 0.000000e+00 : f32
    %42 = vector.broadcast %cst_40 : f32 to vector<72x21xf32>
    %43 = arith.maximumf %38, %42 : vector<72x21xf32>
    %c8_41 = arith.constant 8 : index
    %c0_42 = arith.constant 0 : index
    %44 = vector.load %arg7[%c8_41, %c0_42] : memref<80x21xf32, #tpu.memory_space<vmem>>, vector<72x21xf32>
    tpu.vector_store %arg7[%c8_41, %c0_42], %43 {strides = array<i32>} : memref<80x21xf32, #tpu.memory_space<vmem>>, vector<72x21xf32>,
    %c7_43 = arith.constant 7 : index
    %c0_44 = arith.constant 0 : index
    %45 = vector.load %arg7[%c7_43, %c0_44] : memref<80x21xf32, #tpu.memory_space<vmem>>, vector<70x21xf32>
    %c440 = arith.constant 440 : index
    %c0_45 = arith.constant 0 : index
    %46 = vector.load %arg3[%c440, %c0_45] : memref<896x140xf32, #tpu.memory_space<vmem>>, vector<21x21xf32>
    %cst_46 = arith.constant dense<0.000000e+00> : vector<70x21xf32>
    %47 = tpu.matmul %45, %46, %cst_46 {dimension_numbers = #tpu.dot_dimension_numbers<[1], [0], [0], [1], [0, 0, 1, 1], [], []>} : vector<70x21xf32>, vector<21x21xf32>, vector<70x21xf32> -> vector<70x21xf32>
    %c8_47 = arith.constant 8 : index
    %c0_48 = arith.constant 0 : index
    %48 = vector.load %arg7[%c8_47, %c0_48] : memref<80x21xf32, #tpu.memory_space<vmem>>, vector<70x21xf32>
    %c512 = arith.constant 512 : index
    %c0_49 = arith.constant 0 : index
    %49 = vector.load %arg3[%c512, %c0_49] : memref<896x140xf32, #tpu.memory_space<vmem>>, vector<21x21xf32>
    %cst_50 = arith.constant dense<0.000000e+00> : vector<70x21xf32>
    %50 = tpu.matmul %48, %49, %cst_50 {dimension_numbers = #tpu.dot_dimension_numbers<[1], [0], [0], [1], [0, 0, 1, 1], [], []>} : vector<70x21xf32>, vector<21x21xf32>, vector<70x21xf32> -> vector<70x21xf32>
    %51 = arith.addf %47, %50 : vector<70x21xf32>
    %c9_51 = arith.constant 9 : index
    %c0_52 = arith.constant 0 : index
    %52 = vector.load %arg7[%c9_51, %c0_52] : memref<80x21xf32, #tpu.memory_space<vmem>>, vector<70x21xf32>
    %c584 = arith.constant 584 : index
    %c0_53 = arith.constant 0 : index
    %53 = vector.load %arg3[%c584, %c0_53] : memref<896x140xf32, #tpu.memory_space<vmem>>, vector<21x21xf32>
    %cst_54 = arith.constant dense<0.000000e+00> : vector<70x21xf32>
    %54 = tpu.matmul %52, %53, %cst_54 {dimension_numbers = #tpu.dot_dimension_numbers<[1], [0], [0], [1], [0, 0, 1, 1], [], []>} : vector<70x21xf32>, vector<21x21xf32>, vector<70x21xf32> -> vector<70x21xf32>
    %55 = arith.addf %51, %54 : vector<70x21xf32>
    %c656 = arith.constant 656 : index
    %c0_55 = arith.constant 0 : index
    %56 = vector.load %arg3[%c656, %c0_55] : memref<896x140xf32, #tpu.memory_space<vmem>>, vector<1x21xf32>
    %57 = vector.broadcast %56 : vector<1x21xf32> to vector<70x21xf32>
    %58 = arith.addf %55, %57 : vector<70x21xf32>
    %cst_56 = arith.constant 0.000000e+00 : f32
    %59 = vector.broadcast %cst_56 : f32 to vector<70x21xf32>
    %60 = arith.maximumf %58, %59 : vector<70x21xf32>
    %c0_57 = arith.constant 0 : index
    %c21 = arith.constant 21 : index
    %61 = vector.load %arg8[%c0_57, %c21] : memref<72x42xf32, #tpu.memory_space<vmem>>, vector<70x21xf32>
    tpu.vector_store %arg8[%c0_57, %c21], %60 {strides = array<i32>} : memref<72x42xf32, #tpu.memory_space<vmem>>, vector<70x21xf32>,
    %c0_58 = arith.constant 0 : index
    %c0_59 = arith.constant 0 : index
    %62 = vector.load %arg8[%c0_58, %c0_59] : memref<72x42xf32, #tpu.memory_space<vmem>>, vector<68x42xf32>
    %c464 = arith.constant 464 : index
    %c0_60 = arith.constant 0 : index
    %63 = vector.load %arg3[%c464, %c0_60] : memref<896x140xf32, #tpu.memory_space<vmem>>, vector<42x12xf32>
    %cst_61 = arith.constant dense<0.000000e+00> : vector<68x12xf32>
    %64 = tpu.matmul %62, %63, %cst_61 {dimension_numbers = #tpu.dot_dimension_numbers<[1], [0], [0], [1], [0, 0, 1, 1], [], []>} : vector<68x42xf32>, vector<42x12xf32>, vector<68x12xf32> -> vector<68x12xf32>
    %c1_62 = arith.constant 1 : index
    %c0_63 = arith.constant 0 : index
    %65 = vector.load %arg8[%c1_62, %c0_63] : memref<72x42xf32, #tpu.memory_space<vmem>>, vector<68x42xf32>
    %c536 = arith.constant 536 : index
    %c0_64 = arith.constant 0 : index
    %66 = vector.load %arg3[%c536, %c0_64] : memref<896x140xf32, #tpu.memory_space<vmem>>, vector<42x12xf32>
    %cst_65 = arith.constant dense<0.000000e+00> : vector<68x12xf32>
    %67 = tpu.matmul %65, %66, %cst_65 {dimension_numbers = #tpu.dot_dimension_numbers<[1], [0], [0], [1], [0, 0, 1, 1], [], []>} : vector<68x42xf32>, vector<42x12xf32>, vector<68x12xf32> -> vector<68x12xf32>
    %68 = arith.addf %64, %67 : vector<68x12xf32>
    %c2_66 = arith.constant 2 : index
    %c0_67 = arith.constant 0 : index
    %69 = vector.load %arg8[%c2_66, %c0_67] : memref<72x42xf32, #tpu.memory_space<vmem>>, vector<68x42xf32>
    %c608 = arith.constant 608 : index
    %c0_68 = arith.constant 0 : index
    %70 = vector.load %arg3[%c608, %c0_68] : memref<896x140xf32, #tpu.memory_space<vmem>>, vector<42x12xf32>
    %cst_69 = arith.constant dense<0.000000e+00> : vector<68x12xf32>
    %71 = tpu.matmul %69, %70, %cst_69 {dimension_numbers = #tpu.dot_dimension_numbers<[1], [0], [0], [1], [0, 0, 1, 1], [], []>} : vector<68x42xf32>, vector<42x12xf32>, vector<68x12xf32> -> vector<68x12xf32>
    %72 = arith.addf %68, %71 : vector<68x12xf32>
    %c664 = arith.constant 664 : index
    %c0_70 = arith.constant 0 : index
    %73 = vector.load %arg3[%c664, %c0_70] : memref<896x140xf32, #tpu.memory_space<vmem>>, vector<24x68xf32>
    %cst_71 = arith.constant dense<0.000000e+00> : vector<24x12xf32>
    %74 = tpu.matmul %73, %72, %cst_71 {dimension_numbers = #tpu.dot_dimension_numbers<[1], [0], [0], [1], [0, 0, 1, 1], [], []>} : vector<24x68xf32>, vector<68x12xf32>, vector<24x12xf32> -> vector<24x12xf32>
    %c688 = arith.constant 688 : index
    %c0_72 = arith.constant 0 : index
    %75 = vector.load %arg3[%c688, %c0_72] : memref<896x140xf32, #tpu.memory_space<vmem>>, vector<1x12xf32>
    %76 = vector.broadcast %75 : vector<1x12xf32> to vector<24x12xf32>
    %77 = arith.addf %74, %76 : vector<24x12xf32>
    %c0_73 = arith.constant 0 : index
    %c0_74 = arith.constant 0 : index
    %78 = vector.load %arg2[%c0_73, %c0_74] : memref<8x6xf32, #tpu.memory_space<vmem>>, vector<8x6xf32>
    %c696 = arith.constant 696 : index
    %c0_75 = arith.constant 0 : index
    %79 = vector.load %arg3[%c696, %c0_75] : memref<896x140xf32, #tpu.memory_space<vmem>>, vector<6x32xf32>
    %cst_76 = arith.constant dense<0.000000e+00> : vector<8x32xf32>
    %80 = tpu.matmul %78, %79, %cst_76 {dimension_numbers = #tpu.dot_dimension_numbers<[1], [0], [0], [1], [0, 0, 1, 1], [], []>} : vector<8x6xf32>, vector<6x32xf32>, vector<8x32xf32> -> vector<8x32xf32>
    %c704 = arith.constant 704 : index
    %c0_77 = arith.constant 0 : index
    %81 = vector.load %arg3[%c704, %c0_77] : memref<896x140xf32, #tpu.memory_space<vmem>>, vector<6x4xf32>
    %cst_78 = arith.constant dense<0.000000e+00> : vector<8x4xf32>
    %82 = tpu.matmul %78, %81, %cst_78 {dimension_numbers = #tpu.dot_dimension_numbers<[1], [0], [0], [1], [0, 0, 1, 1], [], []>} : vector<8x6xf32>, vector<6x4xf32>, vector<8x4xf32> -> vector<8x4xf32>
    %83 = vector.extract_strided_slice %77 {offsets = [0, 0], sizes = [8, 12], strides = [1, 1]} : vector<24x12xf32> to vector<8x12xf32>
    %c712 = arith.constant 712 : index
    %c0_79 = arith.constant 0 : index
    %84 = vector.load %arg3[%c712, %c0_79] : memref<896x140xf32, #tpu.memory_space<vmem>>, vector<12x32xf32>
    %cst_80 = arith.constant dense<0.000000e+00> : vector<8x32xf32>
    %85 = tpu.matmul %83, %84, %cst_80 {dimension_numbers = #tpu.dot_dimension_numbers<[1], [0], [0], [1], [0, 0, 1, 1], [], []>} : vector<8x12xf32>, vector<12x32xf32>, vector<8x32xf32> -> vector<8x32xf32>
    %86 = arith.addf %80, %85 : vector<8x32xf32>
    %c728 = arith.constant 728 : index
    %c0_81 = arith.constant 0 : index
    %87 = vector.load %arg3[%c728, %c0_81] : memref<896x140xf32, #tpu.memory_space<vmem>>, vector<12x4xf32>
    %cst_82 = arith.constant dense<0.000000e+00> : vector<8x4xf32>
    %88 = tpu.matmul %83, %87, %cst_82 {dimension_numbers = #tpu.dot_dimension_numbers<[1], [0], [0], [1], [0, 0, 1, 1], [], []>} : vector<8x12xf32>, vector<12x4xf32>, vector<8x4xf32> -> vector<8x4xf32>
    %89 = arith.addf %82, %88 : vector<8x4xf32>
    %90 = vector.extract_strided_slice %77 {offsets = [8, 0], sizes = [8, 12], strides = [1, 1]} : vector<24x12xf32> to vector<8x12xf32>
    %c744 = arith.constant 744 : index
    %c0_83 = arith.constant 0 : index
    %91 = vector.load %arg3[%c744, %c0_83] : memref<896x140xf32, #tpu.memory_space<vmem>>, vector<12x32xf32>
    %cst_84 = arith.constant dense<0.000000e+00> : vector<8x32xf32>
    %92 = tpu.matmul %90, %91, %cst_84 {dimension_numbers = #tpu.dot_dimension_numbers<[1], [0], [0], [1], [0, 0, 1, 1], [], []>} : vector<8x12xf32>, vector<12x32xf32>, vector<8x32xf32> -> vector<8x32xf32>
    %93 = arith.addf %86, %92 : vector<8x32xf32>
    %c760 = arith.constant 760 : index
    %c0_85 = arith.constant 0 : index
    %94 = vector.load %arg3[%c760, %c0_85] : memref<896x140xf32, #tpu.memory_space<vmem>>, vector<12x4xf32>
    %cst_86 = arith.constant dense<0.000000e+00> : vector<8x4xf32>
    %95 = tpu.matmul %90, %94, %cst_86 {dimension_numbers = #tpu.dot_dimension_numbers<[1], [0], [0], [1], [0, 0, 1, 1], [], []>} : vector<8x12xf32>, vector<12x4xf32>, vector<8x4xf32> -> vector<8x4xf32>
    %96 = arith.addf %89, %95 : vector<8x4xf32>
    %97 = vector.extract_strided_slice %77 {offsets = [16, 0], sizes = [8, 12], strides = [1, 1]} : vector<24x12xf32> to vector<8x12xf32>
    %c776 = arith.constant 776 : index
    %c0_87 = arith.constant 0 : index
    %98 = vector.load %arg3[%c776, %c0_87] : memref<896x140xf32, #tpu.memory_space<vmem>>, vector<12x32xf32>
    %cst_88 = arith.constant dense<0.000000e+00> : vector<8x32xf32>
    %99 = tpu.matmul %97, %98, %cst_88 {dimension_numbers = #tpu.dot_dimension_numbers<[1], [0], [0], [1], [0, 0, 1, 1], [], []>} : vector<8x12xf32>, vector<12x32xf32>, vector<8x32xf32> -> vector<8x32xf32>
    %100 = arith.addf %93, %99 : vector<8x32xf32>
    %c792 = arith.constant 792 : index
    %c0_89 = arith.constant 0 : index
    %101 = vector.load %arg3[%c792, %c0_89] : memref<896x140xf32, #tpu.memory_space<vmem>>, vector<12x4xf32>
    %cst_90 = arith.constant dense<0.000000e+00> : vector<8x4xf32>
    %102 = tpu.matmul %97, %101, %cst_90 {dimension_numbers = #tpu.dot_dimension_numbers<[1], [0], [0], [1], [0, 0, 1, 1], [], []>} : vector<8x12xf32>, vector<12x4xf32>, vector<8x4xf32> -> vector<8x4xf32>
    %103 = arith.addf %96, %102 : vector<8x4xf32>
    %c872 = arith.constant 872 : index
    %c0_91 = arith.constant 0 : index
    %104 = vector.load %arg3[%c872, %c0_91] : memref<896x140xf32, #tpu.memory_space<vmem>>, vector<1x32xf32>
    %105 = vector.broadcast %104 : vector<1x32xf32> to vector<8x32xf32>
    %106 = arith.addf %100, %105 : vector<8x32xf32>
    %107 = math.tanh %106 : vector<8x32xf32>
    %c808 = arith.constant 808 : index
    %c0_92 = arith.constant 0 : index
    %108 = vector.load %arg3[%c808, %c0_92] : memref<896x140xf32, #tpu.memory_space<vmem>>, vector<32x32xf32>
    %cst_93 = arith.constant dense<0.000000e+00> : vector<8x32xf32>
    %109 = tpu.matmul %107, %108, %cst_93 {dimension_numbers = #tpu.dot_dimension_numbers<[1], [0], [0], [1], [0, 0, 1, 1], [], []>} : vector<8x32xf32>, vector<32x32xf32>, vector<8x32xf32> -> vector<8x32xf32>
    %c880 = arith.constant 880 : index
    %c0_94 = arith.constant 0 : index
    %110 = vector.load %arg3[%c880, %c0_94] : memref<896x140xf32, #tpu.memory_space<vmem>>, vector<1x32xf32>
    %111 = vector.broadcast %110 : vector<1x32xf32> to vector<8x32xf32>
    %112 = arith.addf %109, %111 : vector<8x32xf32>
    %113 = math.tanh %112 : vector<8x32xf32>
    %c840 = arith.constant 840 : index
    %c0_95 = arith.constant 0 : index
    %114 = vector.load %arg3[%c840, %c0_95] : memref<896x140xf32, #tpu.memory_space<vmem>>, vector<32x4xf32>
    %cst_96 = arith.constant dense<0.000000e+00> : vector<8x4xf32>
    %115 = tpu.matmul %113, %114, %cst_96 {dimension_numbers = #tpu.dot_dimension_numbers<[1], [0], [0], [1], [0, 0, 1, 1], [], []>} : vector<8x32xf32>, vector<32x4xf32>, vector<8x4xf32> -> vector<8x4xf32>
    %116 = arith.addf %115, %103 : vector<8x4xf32>
    %c888 = arith.constant 888 : index
    %c0_97 = arith.constant 0 : index
    %117 = vector.load %arg3[%c888, %c0_97] : memref<896x140xf32, #tpu.memory_space<vmem>>, vector<1x4xf32>
    %118 = vector.broadcast %117 : vector<1x4xf32> to vector<8x4xf32>
    %119 = arith.addf %116, %118 : vector<8x4xf32>
    %c0_98 = arith.constant 0 : index
    %c0_99 = arith.constant 0 : index
    %120 = vector.load %arg4[%c0_98, %c0_99] : memref<8x4xf32, #tpu.memory_space<vmem>>, vector<8x4xf32>
    tpu.vector_store %arg4[%c0_98, %c0_99], %119 {strides = array<i32>} : memref<8x4xf32, #tpu.memory_space<vmem>>, vector<8x4xf32>,
    return
  }
  func.func @transform_0(%arg0: i32) -> (i32, i32) {
    %c0_i32 = arith.constant 0 : i32
    %c0_i32_0 = arith.constant 0 : i32
    return %arg0, %c0_i32 : i32, i32
  }
  func.func @transform_1(%arg0: i32) -> (i32, i32) {
    %c0_i32 = arith.constant 0 : i32
    %c0_i32_0 = arith.constant 0 : i32
    return %arg0, %c0_i32 : i32, i32
  }
  func.func @transform_2(%arg0: i32) -> (i32, i32) {
    %c0_i32 = arith.constant 0 : i32
    %c0_i32_0 = arith.constant 0 : i32
    %c0_i32_1 = arith.constant 0 : i32
    return %c0_i32, %c0_i32_0 : i32, i32
  }
  func.func @transform_3(%arg0: i32) -> (i32, i32) {
    %c0_i32 = arith.constant 0 : i32
    %c0_i32_0 = arith.constant 0 : i32
    return %arg0, %c0_i32 : i32, i32
  }
}

</mosaic_0001>

<llo_original>
// kernel: cnn_encoder_forward.1
$region0: #{cnn_encoder_forward.1}
  #allocation0 [shape = 'u32[]', space=smem, size = 0x4, offset = 0x4, fixed_abs, tag = 'smem constant byte address 0x4 - core index']
  #allocation1 [shape = 'u32[144,128]{1,0:T(1,128)}', space=vmem, size = 0x12000, scoped, tag = 'internal scratch']
  #allocation2 [shape = 'f32[152,32]{1,0:T(8,128)}', space=vmem, size = 0x13000, scoped, tag = 'scratch operand']
  #allocation3 [shape = 'f32[144,64]{1,0:T(8,128)}', space=vmem, size = 0x12000, scoped, tag = 'scratch operand']
  #allocation4 [shape = 'f32[80,21]{1,0:T(8,128)}', space=vmem, size = 0xa000, scoped, tag = 'scratch operand']
  #allocation5 [shape = 'f32[72,42]{1,0:T(8,128)}', space=vmem, size = 0x9000, scoped, tag = 'scratch operand']
  %s0 = inlined_call_operand.vmem [shape: f32[288,32], index: 0, kind: input, shape index: {}]
  %s1 = inlined_call_operand.vmem [shape: f32[16,6], index: 1, kind: input, shape index: {}]
  %s2 = inlined_call_operand.vmem [shape: f32[896,140], index: 2, kind: input, shape index: {}]
  %s3 = inlined_call_operand.vmem [shape: f32[16,4], index: 3, kind: output, shape index: {}]
  %s4 = sld [smem:[#allocation0]]
  $region45: #{cnn_encoder_forward.1} parent=0
    _
  %s6 = ssub.s32 1, %s4
  %s7 = scalar_select 0, %s6, %s4
  loop: start=0, step=1, limit=4
  $region2: #{cnn_encoder_forward.1} parent=0 // loop_pre_header
    _
  $region3: #{cnn_encoder_forward.1} parent=0 // loop_header
    %s9 = sphi 0, %s13
    %p10 = scmp.ge.s32.totalorder %s9, 4
    %s19 = sphi 0, %s21
    %s22 = sphi 0, %s19
    %s23 = sphi 0, %s22
    %s39 = sphi 0, %s23
    %s45 = sphi 0, %s47
    %s48 = sphi 0, %s45
    %s49 = sphi 0, %s48
    %s65 = sphi 0, %s49
    %s69 = sphi 0, %s69
    %s71 = sphi 0, %s69
    %s72 = sphi 0, %s71
    %s86 = sphi 0, %s72
    %s92 = sphi 0, %s94
    %s95 = sphi 0, %s92
    %s96 = sphi 0, %s95
    %s112 = sphi 0, %s96
  $region4: #{cnn_encoder_forward.1} parent=0 // loop_header_branch
    %12 = sbr.rel (%p10) target = $region8
  $region5: #{cnn_encoder_forward.1} parent=0 // loop_body
    %s14 = ssub.s32 %s9, 1
    %s15 = ssub.s32 %s9, 2
    %s16 = sadd.s32 %s9, 1
    %s17 = ssub.s32 %s9, %s16
    %p18 = scmp.eq.s32.totalorder %s17, 0
    %s20 = sadd.s32 %s19, 1
    %s21 = scalar_select %p18, %s19, %s20
    %p24 = pneg %p18
    %p25 = scmp.eq.s32.totalorder %s9, 1
    %p26 = por %p24, %p25
    %p27 = scmp.ne.s32.totalorder %s19, %s22
    %p28 = scmp.eq.s32.totalorder %s9, 0
    %p29 = por %p27, %p28
    %p30 = scmp.ne.s32.totalorder %s19, %s22
    %p31 = scmp.eq.s32.totalorder %s14, 1
    %p32 = por %p30, %p31
    %p33 = scmp.ne.s32.totalorder %s22, %s23
    %p34 = scmp.eq.s32.totalorder %s14, 0
    %p35 = por %p33, %p34
    %p36 = scmp.ne.s32.totalorder %s22, %s23
    %p37 = scmp.eq.s32.totalorder %s15, 1
    %p38 = por %p36, %p37
    %p40 = scmp.ne.s32.totalorder %s23, %s39
    %p41 = scmp.eq.s32.totalorder %s15, 0
    %p42 = por %p40, %p41
    %s43 = ssub.s32 %s9, %s16
    %p44 = scmp.eq.s32.totalorder %s43, 0
    %s46 = sadd.s32 %s45, 1
    %s47 = scalar_select %p44, %s45, %s46
    %p50 = pneg %p44
    %p51 = scmp.eq.s32.totalorder %s9, 1
    %p52 = por %p50, %p51
    %p53 = scmp.ne.s32.totalorder %s45, %s48
    %p54 = scmp.eq.s32.totalorder %s9, 0
    %p55 = por %p53, %p54
    %p56 = scmp.ne.s32.totalorder %s45, %s48
    %p57 = scmp.eq.s32.totalorder %s14, 1
    %p58 = por %p56, %p57
    %p59 = scmp.ne.s32.totalorder %s48, %s49
    %p60 = scmp.eq.s32.totalorder %s14, 0
    %p61 = por %p59, %p60
    %p62 = scmp.ne.s32.totalorder %s48, %s49
    %p63 = scmp.eq.s32.totalorder %s15, 1
    %p64 = por %p62, %p63
    %p66 = scmp.ne.s32.totalorder %s49, %s65
    %p67 = scmp.eq.s32.totalorder %s15, 0
    %p68 = por %p66, %p67
    %s70 = sadd.s32 %s69, 1
    %p73 = scmp.eq.s32.totalorder %s9, 1
    %p74 = scmp.ne.s32.totalorder %s69, %s71
    %p75 = scmp.eq.s32.totalorder %s9, 0
    %p76 = por %p74, %p75
    %p77 = scmp.ne.s32.totalorder %s69, %s71
    %p78 = scmp.eq.s32.totalorder %s14, 1
    %p79 = por %p77, %p78
    %p80 = scmp.ne.s32.totalorder %s71, %s72
    %p81 = scmp.eq.s32.totalorder %s14, 0
    %p82 = por %p80, %p81
    %p83 = scmp.ne.s32.totalorder %s71, %s72
    %p84 = scmp.eq.s32.totalorder %s15, 1
    %p85 = por %p83, %p84
    %p87 = scmp.ne.s32.totalorder %s72, %s86
    %p88 = scmp.eq.s32.totalorder %s15, 0
    %p89 = por %p87, %p88
    %s90 = ssub.s32 %s9, %s16
    %p91 = scmp.eq.s32.totalorder %s90, 0
    %s93 = sadd.s32 %s92, 1
    %s94 = scalar_select %p91, %s92, %s93
    %p97 = pneg %p91
    %p98 = scmp.eq.s32.totalorder %s9, 1
    %p99 = por %p97, %p98
    %p100 = scmp.ne.s32.totalorder %s92, %s95
    %p101 = scmp.eq.s32.totalorder %s9, 0
    %p102 = por %p100, %p101
    %p103 = scmp.ne.s32.totalorder %s92, %s95
    %p104 = scmp.eq.s32.totalorder %s14, 1
    %p105 = por %p103, %p104
    %p106 = scmp.ne.s32.totalorder %s95, %s96
    %p107 = scmp.eq.s32.totalorder %s14, 0
    %p108 = por %p106, %p107
    %p109 = scmp.ne.s32.totalorder %s95, %s96
    %p110 = scmp.eq.s32.totalorder %s15, 1
    %p111 = por %p109, %p110
    %p113 = scmp.ne.s32.totalorder %s96, %s112
    %p114 = scmp.eq.s32.totalorder %s15, 0
    %p115 = por %p113, %p114
    %p116 = scmp.le.s32.totalorder 1, %s9
    %p117 = scmp.lt.s32.totalorder %s9, 3
    %p118 = pnand %p116, %p117
    %p119 = pneg %p118
    // Predicated region
    $region9: #{cnn_encoder_forward.1} parent=5 // pred_check
      _
    $region10: #{cnn_encoder_forward.1} parent=5 // pred_check_branch
      %121 = sbr.rel (%p118) target = $region12
    $region11: #{cnn_encoder_forward.1} parent=5 // pred_region
      %s122 = ssub.s32 %s9, 1
      // Predicated region
      $region13: #{cnn_encoder_forward.1} parent=11 // pred_check
        %p123 = pneg %p82
      $region14: #{cnn_encoder_forward.1} parent=11 // pred_check_branch
        %125 = sbr.rel (%p123) target = $region16
      $region15: #{cnn_encoder_forward.1} parent=11 // pred_region
        _
      $region16: #{cnn_encoder_forward.1} parent=11 // pred_fallthru
        _
    $region12: #{cnn_encoder_forward.1} parent=5 // pred_fallthru
      _
    %p126 = scmp.lt.s32.totalorder %s9, 2
    // Predicated region
    $region17: #{cnn_encoder_forward.1} parent=5 // pred_check
      %p127 = pneg %p126
    $region18: #{cnn_encoder_forward.1} parent=5 // pred_check_branch
      %129 = sbr.rel (%p127) target = $region20
    $region19: #{cnn_encoder_forward.1} parent=5 // pred_region
      // Predicated region
      $region21: #{cnn_encoder_forward.1} parent=19 // pred_check
        %p130 = pneg %p29
      $region22: #{cnn_encoder_forward.1} parent=19 // pred_check_branch
        %132 = sbr.rel (%p130) target = $region24
      $region23: #{cnn_encoder_forward.1} parent=19 // pred_region
        %s133 = smul.u32 18, %s9
        %p134 = scmp.lt.s32.totalorder %s133, 35
        %s135 = scalar_select %p134, %s133, 35
        %s136 = smul.addr %s135, 8
        %s137 = scalar_lea.vmem %s0, %s136
        %s138 = smul.u32 18, %s9
      $region24: #{cnn_encoder_forward.1} parent=19 // pred_fallthru
        _
      // Predicated region
      $region25: #{cnn_encoder_forward.1} parent=19 // pred_check
        %p139 = pneg %p55
      $region26: #{cnn_encoder_forward.1} parent=19 // pred_check_branch
        %141 = sbr.rel (%p139) target = $region28
      $region27: #{cnn_encoder_forward.1} parent=19 // pred_region
        %p142 = scmp.lt.s32.totalorder %s9, 1
        %s143 = scalar_select %p142, %s9, 1
        %s144 = smul.addr %s143, 8
        %s145 = scalar_lea.vmem %s1, %s144
      $region28: #{cnn_encoder_forward.1} parent=19 // pred_fallthru
        _
    $region20: #{cnn_encoder_forward.1} parent=5 // pred_fallthru
      _
    %p146 = scmp.le.s32.totalorder 1, %s9
    %p147 = scmp.lt.s32.totalorder %s9, 3
    %p148 = pnand %p146, %p147
    %p149 = pneg %p148
    // Predicated region
    $region29: #{cnn_encoder_forward.1} parent=5 // pred_check
      _
    $region30: #{cnn_encoder_forward.1} parent=5 // pred_check_branch
      %151 = sbr.rel (%p148) target = $region32
    $region31: #{cnn_encoder_forward.1} parent=5 // pred_region
      %s152 = ssub.s32 %s9, 1
      %s153 = smul.u32 18, %s14
      %p154 = scmp.lt.s32.totalorder %s153, 35
      %s155 = scalar_select %p154, %s153, 35
      %s156 = smul.addr %s155, 8
      %s157 = scalar_lea.vmem %s0, %s156
      %p158 = pneg %p35
      %p159 = pneg %p32
      %p160 = scmp.lt.s32.totalorder %s14, 1
      %s161 = scalar_select %p160, %s14, 1
      %s162 = smul.addr %s161, 8
      %s163 = scalar_lea.vmem %s1, %s162
      %p164 = pneg %p61
      %p165 = pneg %p58
      %p166 = pneg %p82
      %p167 = pneg %p79
      %p168 = pneg %p108
      %p169 = pneg %p105
      %p170 = scmp.lt.s32.totalorder %s14, 1
      %s171 = scalar_select %p170, %s14, 1
      %s172 = smul.addr %s171, 8
      %s173 = scalar_lea.vmem %s3, %s172
      %s174 = smul.u32 18, %s14
      %p175 = scmp.lt.s32.totalorder %s174, 35
      %s176 = scalar_select %p175, %s174, 35
      %s177 = smul.addr %s176, 8
      %s178 = scalar_lea.vmem %s0, %s177
      %s179 = smul.u32 18, %s14
      %p180 = scmp.lt.s32.totalorder %s14, 1
      %s181 = scalar_select %p180, %s14, 1
      %s182 = smul.addr %s181, 8
      %s183 = scalar_lea.vmem %s1, %s182
      %p184 = scmp.lt.s32.totalorder %s14, 1
      %s185 = scalar_select %p184, %s14, 1
      %s186 = smul.addr %s185, 8
      %s187 = scalar_lea.vmem %s3, %s186
      %v188 = vld [vmem:[%s178] sm:$0xff]
      %v189 = vld [vmem:[%s178 + $0x8] sm:$0xff]
      %v190 = vld [vmem:[%s178 + $0x10] sm:$0xff]
      %v191 = vld [vmem:[%s178 + $0x18] sm:$0xff]
      %v192 = vld [vmem:[%s178 + $0x20] sm:$0xff]
      %v193 = vld [vmem:[%s178 + $0x28] sm:$0xff]
      %v194 = vld [vmem:[%s178 + $0x30] sm:$0xff]
      %v195 = vld [vmem:[%s178 + $0x38] sm:$0xff]
      %v196 = vld [vmem:[%s178 + $0x40] sm:$0xff]
      %v197 = vld [vmem:[%s178 + $0x48] sm:$0xff]
      %v198 = vld [vmem:[%s178 + $0x50] sm:$0xff]
      %v199 = vld [vmem:[%s178 + $0x58] sm:$0xff]
      %v200 = vld [vmem:[%s178 + $0x60] sm:$0xff]
      %v201 = vld [vmem:[%s178 + $0x68] sm:$0xff]
      %v202 = vld [vmem:[%s178 + $0x70] sm:$0xff]
      %v203 = vld [vmem:[%s178 + $0x78] sm:$0xff]
      %v204 = vld [vmem:[%s178 + $0x80] sm:$0xff]
      %v205 = vld [vmem:[%s178 + $0x88] sm:$0xff]
      %vm206 = vcmask 261120
      %207 = vst.msk [vmem:[#allocation3] sm:$0xff] %vm206, %v188
      %208 = vst.msk [vmem:[#allocation3 + $0x8] sm:$0xff] %vm206, %v189
      %209 = vst.msk [vmem:[#allocation3 + $0x10] sm:$0xff] %vm206, %v190
      %210 = vst.msk [vmem:[#allocation3 + $0x18] sm:$0xff] %vm206, %v191
      %211 = vst.msk [vmem:[#allocation3 + $0x20] sm:$0xff] %vm206, %v192
      %212 = vst.msk [vmem:[#allocation3 + $0x28] sm:$0xff] %vm206, %v193
      %213 = vst.msk [vmem:[#allocation3 + $0x30] sm:$0xff] %vm206, %v194
      %214 = vst.msk [vmem:[#allocation3 + $0x38] sm:$0xff] %vm206, %v195
      %215 = vst.msk [vmem:[#allocation3 + $0x40] sm:$0xff] %vm206, %v196
      %216 = vst.msk [vmem:[#allocation3 + $0x48] sm:$0xff] %vm206, %v197
      %217 = vst.msk [vmem:[#allocation3 + $0x50] sm:$0xff] %vm206, %v198
      %218 = vst.msk [vmem:[#allocation3 + $0x58] sm:$0xff] %vm206, %v199
      %219 = vst.msk [vmem:[#allocation3 + $0x60] sm:$0xff] %vm206, %v200
      %220 = vst.msk [vmem:[#allocation3 + $0x68] sm:$0xff] %vm206, %v201
      %221 = vst.msk [vmem:[#allocation3 + $0x70] sm:$0xff] %vm206, %v202
      %222 = vst.msk [vmem:[#allocation3 + $0x78] sm:$0xff] %vm206, %v203
      %223 = vst.msk [vmem:[#allocation3 + $0x80] sm:$0xff] %vm206, %v204
      %224 = vst.msk [vmem:[#allocation3 + $0x88] sm:$0xff] %vm206, %v205
      %225 = vst.msk [vmem:[#allocation2] sm:$0xff] %vm206, 0.0
      %v226 = vmax.f32 %v188, 0.0
      %v227 = vmax.f32 %v189, 0.0
      %v228 = vmax.f32 %v190, 0.0
      %v229 = vmax.f32 %v191, 0.0
      %v230 = vmax.f32 %v192, 0.0
      %v231 = vmax.f32 %v193, 0.0
      %v232 = vmax.f32 %v194, 0.0
      %v233 = vmax.f32 %v195, 0.0
      %v234 = vmax.f32 %v196, 0.0
      %v235 = vmax.f32 %v197, 0.0
      %v236 = vmax.f32 %v198, 0.0
      %v237 = vmax.f32 %v199, 0.0
      %v238 = vmax.f32 %v200, 0.0
      %v239 = vmax.f32 %v201, 0.0
      %v240 = vmax.f32 %v202, 0.0
      %v241 = vmax.f32 %v203, 0.0
      %v242 = vmax.f32 %v204, 0.0
      %v243 = vmax.f32 %v205, 0.0
      %244 = vst.msk [vmem:[#allocation2 + $0x8] sm:$0xff] %vm206, %v226
      %245 = vst.msk [vmem:[#allocation2 + $0x10] sm:$0xff] %vm206, %v227
      %246 = vst.msk [vmem:[#allocation2 + $0x18] sm:$0xff] %vm206, %v228
      %247 = vst.msk [vmem:[#allocation2 + $0x20] sm:$0xff] %vm206, %v229
      %248 = vst.msk [vmem:[#allocation2 + $0x28] sm:$0xff] %vm206, %v230
      %249 = vst.msk [vmem:[#allocation2 + $0x30] sm:$0xff] %vm206, %v231
      %250 = vst.msk [vmem:[#allocation2 + $0x38] sm:$0xff] %vm206, %v232
      %251 = vst.msk [vmem:[#allocation2 + $0x40] sm:$0xff] %vm206, %v233
      %252 = vst.msk [vmem:[#allocation2 + $0x48] sm:$0xff] %vm206, %v234
      %253 = vst.msk [vmem:[#allocation2 + $0x50] sm:$0xff] %vm206, %v235
      %254 = vst.msk [vmem:[#allocation2 + $0x58] sm:$0xff] %vm206, %v236
      %255 = vst.msk [vmem:[#allocation2 + $0x60] sm:$0xff] %vm206, %v237
      %256 = vst.msk [vmem:[#allocation2 + $0x68] sm:$0xff] %vm206, %v238
      %257 = vst.msk [vmem:[#allocation2 + $0x70] sm:$0xff] %vm206, %v239
      %258 = vst.msk [vmem:[#allocation2 + $0x78] sm:$0xff] %vm206, %v240
      %259 = vst.msk [vmem:[#allocation2 + $0x80] sm:$0xff] %vm206, %v241
      %260 = vst.msk [vmem:[#allocation2 + $0x88] sm:$0xff] %vm206, %v242
      %261 = vst.msk [vmem:[#allocation2 + $0x90] sm:$0xff] %vm206, %v243
      %v262 = vld [vmem:[#allocation2 + $0x7] sm:$0xff]
      %v263 = vld [vmem:[#allocation2 + $0xf] sm:$0xff]
      %v264 = vld [vmem:[#allocation2 + $0x17] sm:$0xff]
      %v265 = vld [vmem:[#allocation2 + $0x1f] sm:$0xff]
      %v266 = vld [vmem:[#allocation2 + $0x27] sm:$0xff]
      %v267 = vld [vmem:[#allocation2 + $0x2f] sm:$0xff]
      %v268 = vld [vmem:[#allocation2 + $0x37] sm:$0xff]
      %v269 = vld [vmem:[#allocation2 + $0x3f] sm:$0xff]
      %v270 = vld [vmem:[#allocation2 + $0x47] sm:$0xff]
      %v271 = vld [vmem:[#allocation2 + $0x4f] sm:$0xff]
      %v272 = vld [vmem:[#allocation2 + $0x57] sm:$0xff]
      %v273 = vld [vmem:[#allocation2 + $0x5f] sm:$0xff]
      %v274 = vld [vmem:[#allocation2 + $0x67] sm:$0xff]
      %v275 = vld [vmem:[#allocation2 + $0x6f] sm:$0xff]
      %v276 = vld [vmem:[#allocation2 + $0x77] sm:$0xff]
      %v277 = vld [vmem:[#allocation2 + $0x7f] sm:$0xff]
      %v278 = vld [vmem:[#allocation2 + $0x87] sm:$0xff]
      %v279 = vld [vmem:[#allocation2 + $0x8f] sm:$0x3f]
      %v280 = vld [vmem:[%s2] sm:$0xff]
      %v281 = vld [vmem:[%s2 + $0x10] sm:$0xff]
      %v282 = vld [vmem:[%s2 + $0x20] sm:$0xff]
      %v283 = vld [vmem:[%s2 + $0x30] sm:$0xff]
      %v284 = vld [vmem:[#allocation2 + $0x8] sm:$0xff]
      %v285 = vld [vmem:[#allocation2 + $0x10] sm:$0xff]
      %v286 = vld [vmem:[#allocation2 + $0x18] sm:$0xff]
      %v287 = vld [vmem:[#allocation2 + $0x20] sm:$0xff]
      %v288 = vld [vmem:[#allocation2 + $0x28] sm:$0xff]
      %v289 = vld [vmem:[#allocation2 + $0x30] sm:$0xff]
      %v290 = vld [vmem:[#allocation2 + $0x38] sm:$0xff]
      %v291 = vld [vmem:[#allocation2 + $0x40] sm:$0xff]
      %v292 = vld [vmem:[#allocation2 + $0x48] sm:$0xff]
      %v293 = vld [vmem:[#allocation2 + $0x50] sm:$0xff]
      %v294 = vld [vmem:[#allocation2 + $0x58] sm:$0xff]
      %v295 = vld [vmem:[#allocation2 + $0x60] sm:$0xff]
      %v296 = vld [vmem:[#allocation2 + $0x68] sm:$0xff]
      %v297 = vld [vmem:[#allocation2 + $0x70] sm:$0xff]
      %v298 = vld [vmem:[#allocation2 + $0x78] sm:$0xff]
      %v299 = vld [vmem:[#allocation2 + $0x80] sm:$0xff]
      %v300 = vld [vmem:[#allocation2 + $0x88] sm:$0xff]
      %v301 = vld [vmem:[#allocation2 + $0x90] sm:$0x3f]
      %v302 = vld [vmem:[%s2 + $0xc0] sm:$0xff]
      %v303 = vld [vmem:[%s2 + $0xd0] sm:$0xff]
      %v304 = vld [vmem:[%s2 + $0xe0] sm:$0xff]
      %v305 = vld [vmem:[%s2 + $0xf0] sm:$0xff]
      %v307 = vsel %vm206, %v284, 0
      %v310 = vsel %vm206, %v285, 0
      %v313 = vsel %vm206, %v286, 0
      %v316 = vsel %vm206, %v287, 0
      %v319 = vsel %vm206, %v288, 0
      %v322 = vsel %vm206, %v289, 0
      %v325 = vsel %vm206, %v290, 0
      %v328 = vsel %vm206, %v291, 0
      %v331 = vsel %vm206, %v292, 0
      %v334 = vsel %vm206, %v293, 0
      %v337 = vsel %vm206, %v294, 0
      %v340 = vsel %vm206, %v295, 0
      %v343 = vsel %vm206, %v296, 0
      %v346 = vsel %vm206, %v297, 0
      %v349 = vsel %vm206, %v298, 0
      %v352 = vsel %vm206, %v299, 0
      %v355 = vsel %vm206, %v300, 0
      %v358 = vsel %vm206, %v301, 0
      %360 = vmatprep.subr.mxu0 0.0
      %361 = vmatpush1.msra.mxu0 %v302
      %362 = vmatprep.subr.mxu0 0.0
      %363 = vmatpush1.msra.mxu0 %v303
      %364 = vmatprep.subr.mxu0 0.0
      %365 = vmatpush1.msra.mxu0 %v304
      %366 = vmatprep.subr.mxu0 0.0
      %367 = vmatpush1.msra.mxu0 %v305
      %368 = vmatprep.subr.mxu0 0.0
      %369 = vmatpush1.msra.mxu0 0.0
      %370 = vmatprep.subr.mxu0 0.0
      %371 = vmatpush1.msra.mxu0 0.0
      %372 = vmatprep.subr.mxu0 0.0
      %373 = vmatpush1.msra.mxu0 0.0
      %374 = vmatprep.subr.mxu0 0.0
      %375 = vmatpush1.msra.mxu0 0.0
      %376 = vmatprep.subr.mxu0 0.0
      %377 = vmatpush1.msra.mxu0 0.0
      %378 = vmatprep.subr.mxu0 0.0
      %379 = vmatpush1.msra.mxu0 0.0
      %380 = vmatprep.subr.mxu0 0.0
      %381 = vmatpush1.msra.mxu0 0.0
      %382 = vmatprep.subr.mxu0 0.0
      %383 = vmatpush1.msra.mxu0 0.0
      %384 = vmatprep.subr.mxu0 0.0
      %385 = vmatpush1.msra.mxu0 0.0
      %386 = vmatprep.subr.mxu0 0.0
      %387 = vmatpush1.msra.mxu0 0.0
      %388 = vmatprep.subr.mxu0 0.0
      %389 = vmatpush1.msra.mxu0 0.0
      %390 = vmatprep.subr.mxu0 0.0
      %391 = vmatpush1.msra.mxu0 0.0
      %392 = vmatprep.subr.mxu0 0.0
      %393 = vmatpush1.msra.mxu0 0.0
      %394 = vmatprep.subr.mxu0 0.0
      %395 = vmatpush1.msra.mxu0 0.0
      %396 = vmatprep.subr.mxu0 0.0
      %397 = vmatpush1.msra.mxu0 0.0
      %398 = vmatprep.subr.mxu0 0.0
      %399 = vmatpush1.msra.mxu0 0.0
      %400 = vmatprep.subr.mxu0 0.0
      %401 = vmatpush1.msra.mxu0 0.0
      %402 = vmatprep.subr.mxu0 0.0
      %403 = vmatpush1.msra.mxu0 0.0
      %404 = vmatprep.subr.mxu0 0.0
      %405 = vmatpush1.msra.mxu0 0.0
      %406 = vmatprep.subr.mxu0 0.0
      %407 = vmatpush1.msra.mxu0 0.0
      %408 = vmatprep.subr.mxu0 0.0
      %409 = vmatpush1.msra.mxu0 0.0
      %410 = vmatprep.subr.mxu0 0.0
      %411 = vmatpush1.msra.mxu0 0.0
      %412 = vmatprep.subr.mxu0 0.0
      %413 = vmatpush1.msra.mxu0 0.0
      %414 = vmatprep.subr.mxu0 0.0
      %415 = vmatpush1.msra.mxu0 0.0
      %416 = vmatprep.subr.mxu0 0.0
      %417 = vmatpush1.msra.mxu0 0.0
      %418 = vmatprep.subr.mxu0 0.0
      %419 = vmatpush1.msra.mxu0 0.0
      %420 = vmatprep.subr.mxu0 0.0
      %421 = vmatpush1.msra.mxu0 0.0
      %422 = vmatprep.subr.mxu0 0.0
      %423 = vmatpush1.msra.mxu0 0.0
      %424 = vmatprep.mubr.f32.mxu0 0.0
      %425 = vmatmul.mubr.f32.gmra.mrb[0].mxu0 %v307
      %v426 = vpop.f32.mrb[0].mxu0
      %v427 = vadd.f32 0.0, %v426
      %v428 = vpop.f32.mrb[0].mxu0
      %429 = vmatprep.mubr.f32.mxu0 0.0
      %430 = vmatmul.mubr.f32.gmra.mrb[0].mxu0 %v310
      %v431 = vpop.f32.mrb[0].mxu0
      %v432 = vadd.f32 0.0, %v431
      %v433 = vpop.f32.mrb[0].mxu0
      %434 = vmatprep.mubr.f32.mxu0 0.0
      %435 = vmatmul.mubr.f32.gmra.mrb[0].mxu0 %v313
      %v436 = vpop.f32.mrb[0].mxu0
      %v437 = vadd.f32 0.0, %v436
      %v438 = vpop.f32.mrb[0].mxu0
      %439 = vmatprep.mubr.f32.mxu0 0.0
      %440 = vmatmul.mubr.f32.gmra.mrb[0].mxu0 %v316
      %v441 = vpop.f32.mrb[0].mxu0
      %v442 = vadd.f32 0.0, %v441
      %v443 = vpop.f32.mrb[0].mxu0
      %444 = vmatprep.mubr.f32.mxu0 0.0
      %445 = vmatmul.mubr.f32.gmra.mrb[0].mxu0 %v319
      %v446 = vpop.f32.mrb[0].mxu0
      %v447 = vadd.f32 0.0, %v446
      %v448 = vpop.f32.mrb[0].mxu0
      %449 = vmatprep.mubr.f32.mxu0 0.0
      %450 = vmatmul.mubr.f32.gmra.mrb[0].mxu0 %v322
      %v451 = vpop.f32.mrb[0].mxu0
      %v452 = vadd.f32 0.0, %v451
      %v453 = vpop.f32.mrb[0].mxu0
      %454 = vmatprep.mubr.f32.mxu0 0.0
      %455 = vmatmul.mubr.f32.gmra.mrb[0].mxu0 %v325
      %v456 = vpop.f32.mrb[0].mxu0
      %v457 = vadd.f32 0.0, %v456
      %v458 = vpop.f32.mrb[0].mxu0
      %459 = vmatprep.mubr.f32.mxu0 0.0
      %460 = vmatmul.mubr.f32.gmra.mrb[0].mxu0 %v328
      %v461 = vpop.f32.mrb[0].mxu0
      %v462 = vadd.f32 0.0, %v461
      %v463 = vpop.f32.mrb[0].mxu0
      %464 = vmatprep.mubr.f32.mxu0 0.0
      %465 = vmatmul.mubr.f32.gmra.mrb[0].mxu0 %v331
      %v466 = vpop.f32.mrb[0].mxu0
      %v467 = vadd.f32 0.0, %v466
      %v468 = vpop.f32.mrb[0].mxu0
      %469 = vmatprep.mubr.f32.mxu0 0.0
      %470 = vmatmul.mubr.f32.gmra.mrb[0].mxu0 %v334
      %v471 = vpop.f32.mrb[0].mxu0
      %v472 = vadd.f32 0.0, %v471
      %v473 = vpop.f32.mrb[0].mxu0
      %474 = vmatprep.mubr.f32.mxu0 0.0
      %475 = vmatmul.mubr.f32.gmra.mrb[0].mxu0 %v337
      %v476 = vpop.f32.mrb[0].mxu0
      %v477 = vadd.f32 0.0, %v476
      %v478 = vpop.f32.mrb[0].mxu0
      %479 = vmatprep.mubr.f32.mxu0 0.0
      %480 = vmatmul.mubr.f32.gmra.mrb[0].mxu0 %v340
      %v481 = vpop.f32.mrb[0].mxu0
      %v482 = vadd.f32 0.0, %v481
      %v483 = vpop.f32.mrb[0].mxu0
      %484 = vmatprep.mubr.f32.mxu0 0.0
      %485 = vmatmul.mubr.f32.gmra.mrb[0].mxu0 %v343
      %v486 = vpop.f32.mrb[0].mxu0
      %v487 = vadd.f32 0.0, %v486
      %v488 = vpop.f32.mrb[0].mxu0
      %489 = vmatprep.mubr.f32.mxu0 0.0
      %490 = vmatmul.mubr.f32.gmra.mrb[0].mxu0 %v346
      %v491 = vpop.f32.mrb[0].mxu0
      %v492 = vadd.f32 0.0, %v491
      %v493 = vpop.f32.mrb[0].mxu0
      %494 = vmatprep.mubr.f32.mxu0 0.0
      %495 = vmatmul.mubr.f32.gmra.mrb[0].mxu0 %v349
      %v496 = vpop.f32.mrb[0].mxu0
      %v497 = vadd.f32 0.0, %v496
      %v498 = vpop.f32.mrb[0].mxu0
      %499 = vmatprep.mubr.f32.mxu0 0.0
      %500 = vmatmul.mubr.f32.gmra.mrb[0].mxu0 %v352
      %v501 = vpop.f32.mrb[0].mxu0
      %v502 = vadd.f32 0.0, %v501
      %v503 = vpop.f32.mrb[0].mxu0
      %504 = vmatprep.mubr.f32.mxu0 0.0
      %505 = vmatmul.mubr.f32.gmra.mrb[0].mxu0 %v355
      %v506 = vpop.f32.mrb[0].mxu0
      %v507 = vadd.f32 0.0, %v506
      %v508 = vpop.f32.mrb[0].mxu0
      %509 = vmatprep.mubr.f32.mxu0 0.0
      %510 = vmatmul.mubr.f32.gmra.mrb[0].mxu0 %v358
      %v511 = vpop.f32.mrb[0].mxu0
      %v512 = vadd.f32 0.0, %v511
      %v513 = vpop.f32.mrb[0].mxu0
      %514 = vdwg.mxu0
      %v516 = vsel %vm206, %v262, 0
      %v519 = vsel %vm206, %v263, 0
      %v522 = vsel %vm206, %v264, 0
      %v525 = vsel %vm206, %v265, 0
      %v528 = vsel %vm206, %v266, 0
      %v531 = vsel %vm206, %v267, 0
      %v534 = vsel %vm206, %v268, 0
      %v537 = vsel %vm206, %v269, 0
      %v540 = vsel %vm206, %v270, 0
      %v543 = vsel %vm206, %v271, 0
      %v546 = vsel %vm206, %v272, 0
      %v549 = vsel %vm206, %v273, 0
      %v552 = vsel %vm206, %v274, 0
      %v555 = vsel %vm206, %v275, 0
      %v558 = vsel %vm206, %v276, 0
      %v561 = vsel %vm206, %v277, 0
      %v564 = vsel %vm206, %v278, 0
      %v567 = vsel %vm206, %v279, 0
      %569 = vmatprep.subr.mxu0 0.0
      %570 = vmatpush1.msra.mxu0 %v280
      %571 = vmatprep.subr.mxu0 0.0
      %572 = vmatpush1.msra.mxu0 %v281
      %573 = vmatprep.subr.mxu0 0.0
      %574 = vmatpush1.msra.mxu0 %v282
      %575 = vmatprep.subr.mxu0 0.0
      %576 = vmatpush1.msra.mxu0 %v283
      %577 = vmatprep.subr.mxu0 0.0
      %578 = vmatpush1.msra.mxu0 0.0
      %579 = vmatprep.subr.mxu0 0.0
      %580 = vmatpush1.msra.mxu0 0.0
      %581 = vmatprep.subr.mxu0 0.0
      %582 = vmatpush1.msra.mxu0 0.0
      %583 = vmatprep.subr.mxu0 0.0
      %584 = vmatpush1.msra.mxu0 0.0
      %585 = vmatprep.subr.mxu0 0.0
      %586 = vmatpush1.msra.mxu0 0.0
      %587 = vmatprep.subr.mxu0 0.0
      %588 = vmatpush1.msra.mxu0 0.0
      %589 = vmatprep.subr.mxu0 0.0
      %590 = vmatpush1.msra.mxu0 0.0
      %591 = vmatprep.subr.mxu0 0.0
      %592 = vmatpush1.msra.mxu0 0.0
      %593 = vmatprep.subr.mxu0 0.0
      %594 = vmatpush1.msra.mxu0 0.0
      %595 = vmatprep.subr.mxu0 0.0
      %596 = vmatpush1.msra.mxu0 0.0
      %597 = vmatprep.subr.mxu0 0.0
      %598 = vmatpush1.msra.mxu0 0.0
      %599 = vmatprep.subr.mxu0 0.0
      %600 = vmatpush1.msra.mxu0 0.0
      %601 = vmatprep.subr.mxu0 0.0
      %602 = vmatpush1.msra.mxu0 0.0
      %603 = vmatprep.subr.mxu0 0.0
      %604 = vmatpush1.msra.mxu0 0.0
      %605 = vmatprep.subr.mxu0 0.0
      %606 = vmatpush1.msra.mxu0 0.0
      %607 = vmatprep.subr.mxu0 0.0
      %608 = vmatpush1.msra.mxu0 0.0
      %609 = vmatprep.subr.mxu0 0.0
      %610 = vmatpush1.msra.mxu0 0.0
      %611 = vmatprep.subr.mxu0 0.0
      %612 = vmatpush1.msra.mxu0 0.0
      %613 = vmatprep.subr.mxu0 0.0
      %614 = vmatpush1.msra.mxu0 0.0
      %615 = vmatprep.subr.mxu0 0.0
      %616 = vmatpush1.msra.mxu0 0.0
      %617 = vmatprep.subr.mxu0 0.0
      %618 = vmatpush1.msra.mxu0 0.0
      %619 = vmatprep.subr.mxu0 0.0
      %620 = vmatpush1.msra.mxu0 0.0
      %621 = vmatprep.subr.mxu0 0.0
      %622 = vmatpush1.msra.mxu0 0.0
      %623 = vmatprep.subr.mxu0 0.0
      %624 = vmatpush1.msra.mxu0 0.0
      %625 = vmatprep.subr.mxu0 0.0
      %626 = vmatpush1.msra.mxu0 0.0
      %627 = vmatprep.subr.mxu0 0.0
      %628 = vmatpush1.msra.mxu0 0.0
      %629 = vmatprep.subr.mxu0 0.0
      %630 = vmatpush1.msra.mxu0 0.0
      %631 = vmatprep.subr.mxu0 0.0
      %632 = vmatpush1.msra.mxu0 0.0
      %633 = vmatprep.mubr.f32.mxu0 0.0
      %634 = vmatmul.mubr.f32.gmra.mrb[0].mxu0 %v516
      %v635 = vpop.f32.mrb[0].mxu0
      %v636 = vadd.f32 %v427, %v635
      %v637 = vpop.f32.mrb[0].mxu0
      %638 = vmatprep.mubr.f32.mxu0 0.0
      %639 = vmatmul.mubr.f32.gmra.mrb[0].mxu0 %v519
      %v640 = vpop.f32.mrb[0].mxu0
      %v641 = vadd.f32 %v432, %v640
      %v642 = vpop.f32.mrb[0].mxu0
      %643 = vmatprep.mubr.f32.mxu0 0.0
      %644 = vmatmul.mubr.f32.gmra.mrb[0].mxu0 %v522
      %v645 = vpop.f32.mrb[0].mxu0
      %v646 = vadd.f32 %v437, %v645
      %v647 = vpop.f32.mrb[0].mxu0
      %648 = vmatprep.mubr.f32.mxu0 0.0
      %649 = vmatmul.mubr.f32.gmra.mrb[0].mxu0 %v525
      %v650 = vpop.f32.mrb[0].mxu0
      %v651 = vadd.f32 %v442, %v650
      %v652 = vpop.f32.mrb[0].mxu0
      %653 = vmatprep.mubr.f32.mxu0 0.0
      %654 = vmatmul.mubr.f32.gmra.mrb[0].mxu0 %v528
      %v655 = vpop.f32.mrb[0].mxu0
      %v656 = vadd.f32 %v447, %v655
      %v657 = vpop.f32.mrb[0].mxu0
      %658 = vmatprep.mubr.f32.mxu0 0.0
      %659 = vmatmul.mubr.f32.gmra.mrb[0].mxu0 %v531
      %v660 = vpop.f32.mrb[0].mxu0
      %v661 = vadd.f32 %v452, %v660
      %v662 = vpop.f32.mrb[0].mxu0
      %663 = vmatprep.mubr.f32.mxu0 0.0
      %664 = vmatmul.mubr.f32.gmra.mrb[0].mxu0 %v534
      %v665 = vpop.f32.mrb[0].mxu0
      %v666 = vadd.f32 %v457, %v665
      %v667 = vpop.f32.mrb[0].mxu0
      %668 = vmatprep.mubr.f32.mxu0 0.0
      %669 = vmatmul.mubr.f32.gmra.mrb[0].mxu0 %v537
      %v670 = vpop.f32.mrb[0].mxu0
      %v671 = vadd.f32 %v462, %v670
      %v672 = vpop.f32.mrb[0].mxu0
      %673 = vmatprep.mubr.f32.mxu0 0.0
      %674 = vmatmul.mubr.f32.gmra.mrb[0].mxu0 %v540
      %v675 = vpop.f32.mrb[0].mxu0
      %v676 = vadd.f32 %v467, %v675
      %v677 = vpop.f32.mrb[0].mxu0
      %678 = vmatprep.mubr.f32.mxu0 0.0
      %679 = vmatmul.mubr.f32.gmra.mrb[0].mxu0 %v543
      %v680 = vpop.f32.mrb[0].mxu0
      %v681 = vadd.f32 %v472, %v680
      %v682 = vpop.f32.mrb[0].mxu0
      %683 = vmatprep.mubr.f32.mxu0 0.0
      %684 = vmatmul.mubr.f32.gmra.mrb[0].mxu0 %v546
      %v685 = vpop.f32.mrb[0].mxu0
      %v686 = vadd.f32 %v477, %v685
      %v687 = vpop.f32.mrb[0].mxu0
      %688 = vmatprep.mubr.f32.mxu0 0.0
      %689 = vmatmul.mubr.f32.gmra.mrb[0].mxu0 %v549
      %v690 = vpop.f32.mrb[0].mxu0
      %v691 = vadd.f32 %v482, %v690
      %v692 = vpop.f32.mrb[0].mxu0
      %693 = vmatprep.mubr.f32.mxu0 0.0
      %694 = vmatmul.mubr.f32.gmra.mrb[0].mxu0 %v552
      %v695 = vpop.f32.mrb[0].mxu0
      %v696 = vadd.f32 %v487, %v695
      %v697 = vpop.f32.mrb[0].mxu0
      %698 = vmatprep.mubr.f32.mxu0 0.0
      %699 = vmatmul.mubr.f32.gmra.mrb[0].mxu0 %v555
      %v700 = vpop.f32.mrb[0].mxu0
      %v701 = vadd.f32 %v492, %v700
      %v702 = vpop.f32.mrb[0].mxu0
      %703 = vmatprep.mubr.f32.mxu0 0.0
      %704 = vmatmul.mubr.f32.gmra.mrb[0].mxu0 %v558
      %v705 = vpop.f32.mrb[0].mxu0
      %v706 = vadd.f32 %v497, %v705
      %v707 = vpop.f32.mrb[0].mxu0
      %708 = vmatprep.mubr.f32.mxu0 0.0
      %709 = vmatmul.mubr.f32.gmra.mrb[0].mxu0 %v561
      %v710 = vpop.f32.mrb[0].mxu0
      %v711 = vadd.f32 %v502, %v710
      %v712 = vpop.f32.mrb[0].mxu0
      %713 = vmatprep.mubr.f32.mxu0 0.0
      %714 = vmatmul.mubr.f32.gmra.mrb[0].mxu0 %v564
      %v715 = vpop.f32.mrb[0].mxu0
      %v716 = vadd.f32 %v507, %v715
      %v717 = vpop.f32.mrb[0].mxu0
      %718 = vmatprep.mubr.f32.mxu0 0.0
      %719 = vmatmul.mubr.f32.gmra.mrb[0].mxu0 %v567
      %v720 = vpop.f32.mrb[0].mxu0
      %v721 = vadd.f32 %v512, %v720
      %v722 = vpop.f32.mrb[0].mxu0
      %723 = vdwg.mxu0
      %v724 = vld [vmem:[#allocation2 + $0x9] sm:$0xff]
      %v725 = vld [vmem:[#allocation2 + $0x11] sm:$0xff]
      %v726 = vld [vmem:[#allocation2 + $0x19] sm:$0xff]
      %v727 = vld [vmem:[#allocation2 + $0x21] sm:$0xff]
      %v728 = vld [vmem:[#allocation2 + $0x29] sm:$0xff]
      %v729 = vld [vmem:[#allocation2 + $0x31] sm:$0xff]
      %v730 = vld [vmem:[#allocation2 + $0x39] sm:$0xff]
      %v731 = vld [vmem:[#allocation2 + $0x41] sm:$0xff]
      %v732 = vld [vmem:[#allocation2 + $0x49] sm:$0xff]
      %v733 = vld [vmem:[#allocation2 + $0x51] sm:$0xff]
      %v734 = vld [vmem:[#allocation2 + $0x59] sm:$0xff]
      %v735 = vld [vmem:[#allocation2 + $0x61] sm:$0xff]
      %v736 = vld [vmem:[#allocation2 + $0x69] sm:$0xff]
      %v737 = vld [vmem:[#allocation2 + $0x71] sm:$0xff]
      %v738 = vld [vmem:[#allocation2 + $0x79] sm:$0xff]
      %v739 = vld [vmem:[#allocation2 + $0x81] sm:$0xff]
      %v740 = vld [vmem:[#allocation2 + $0x89] sm:$0xff]
      %v741 = vld [vmem:[#allocation2 + $0x91] sm:$0x3f]
      %v742 = vld [vmem:[%s2 + $0x180] sm:$0xff]
      %v743 = vld [vmem:[%s2 + $0x190] sm:$0xff]
      %v744 = vld [vmem:[%s2 + $0x1a0] sm:$0xff]
      %v745 = vld [vmem:[%s2 + $0x1b0] sm:$0xff]
      %v747 = vsel %vm206, %v724, 0
      %v750 = vsel %vm206, %v725, 0
      %v753 = vsel %vm206, %v726, 0
      %v756 = vsel %vm206, %v727, 0
      %v759 = vsel %vm206, %v728, 0
      %v762 = vsel %vm206, %v729, 0
      %v765 = vsel %vm206, %v730, 0
      %v768 = vsel %vm206, %v731, 0
      %v771 = vsel %vm206, %v732, 0
      %v774 = vsel %vm206, %v733, 0
      %v777 = vsel %vm206, %v734, 0
      %v780 = vsel %vm206, %v735, 0
      %v783 = vsel %vm206, %v736, 0
      %v786 = vsel %vm206, %v737, 0
      %v789 = vsel %vm206, %v738, 0
      %v792 = vsel %vm206, %v739, 0
      %v795 = vsel %vm206, %v740, 0
      %v798 = vsel %vm206, %v741, 0
      %800 = vmatprep.subr.mxu0 0.0
      %801 = vmatpush1.msra.mxu0 %v742
      %802 = vmatprep.subr.mxu0 0.0
      %803 = vmatpush1.msra.mxu0 %v743
      %804 = vmatprep.subr.mxu0 0.0
      %805 = vmatpush1.msra.mxu0 %v744
      %806 = vmatprep.subr.mxu0 0.0
      %807 = vmatpush1.msra.mxu0 %v745
      %808 = vmatprep.subr.mxu0 0.0
      %809 = vmatpush1.msra.mxu0 0.0
      %810 = vmatprep.subr.mxu0 0.0
      %811 = vmatpush1.msra.mxu0 0.0
      %812 = vmatprep.subr.mxu0 0.0
      %813 = vmatpush1.msra.mxu0 0.0
      %814 = vmatprep.subr.mxu0 0.0
      %815 = vmatpush1.msra.mxu0 0.0
      %816 = vmatprep.subr.mxu0 0.0
      %817 = vmatpush1.msra.mxu0 0.0
      %818 = vmatprep.subr.mxu0 0.0
      %819 = vmatpush1.msra.mxu0 0.0
      %820 = vmatprep.subr.mxu0 0.0
      %821 = vmatpush1.msra.mxu0 0.0
      %822 = vmatprep.subr.mxu0 0.0
      %823 = vmatpush1.msra.mxu0 0.0
      %824 = vmatprep.subr.mxu0 0.0
      %825 = vmatpush1.msra.mxu0 0.0
      %826 = vmatprep.subr.mxu0 0.0
      %827 = vmatpush1.msra.mxu0 0.0
      %828 = vmatprep.subr.mxu0 0.0
      %829 = vmatpush1.msra.mxu0 0.0
      %830 = vmatprep.subr.mxu0 0.0
      %831 = vmatpush1.msra.mxu0 0.0
      %832 = vmatprep.subr.mxu0 0.0
      %833 = vmatpush1.msra.mxu0 0.0
      %834 = vmatprep.subr.mxu0 0.0
      %835 = vmatpush1.msra.mxu0 0.0
      %836 = vmatprep.subr.mxu0 0.0
      %837 = vmatpush1.msra.mxu0 0.0
      %838 = vmatprep.subr.mxu0 0.0
      %839 = vmatpush1.msra.mxu0 0.0
      %840 = vmatprep.subr.mxu0 0.0
      %841 = vmatpush1.msra.mxu0 0.0
      %842 = vmatprep.subr.mxu0 0.0
      %843 = vmatpush1.msra.mxu0 0.0
      %844 = vmatprep.subr.mxu0 0.0
      %845 = vmatpush1.msra.mxu0 0.0
      %846 = vmatprep.subr.mxu0 0.0
      %847 = vmatpush1.msra.mxu0 0.0
      %848 = vmatprep.subr.mxu0 0.0
      %849 = vmatpush1.msra.mxu0 0.0
      %850 = vmatprep.subr.mxu0 0.0
      %851 = vmatpush1.msra.mxu0 0.0
      %852 = vmatprep.subr.mxu0 0.0
      %853 = vmatpush1.msra.mxu0 0.0
      %854 = vmatprep.subr.mxu0 0.0
      %855 = vmatpush1.msra.mxu0 0.0
      %856 = vmatprep.subr.mxu0 0.0
      %857 = vmatpush1.msra.mxu0 0.0
      %858 = vmatprep.subr.mxu0 0.0
      %859 = vmatpush1.msra.mxu0 0.0
      %860 = vmatprep.subr.mxu0 0.0
      %861 = vmatpush1.msra.mxu0 0.0
      %862 = vmatprep.subr.mxu0 0.0
      %863 = vmatpush1.msra.mxu0 0.0
      %864 = vmatprep.mubr.f32.mxu0 0.0
      %865 = vmatmul.mubr.f32.gmra.mrb[0].mxu0 %v747
      %v866 = vpop.f32.mrb[0].mxu0
      %v867 = vadd.f32 0.0, %v866
      %v868 = vpop.f32.mrb[0].mxu0
      %869 = vmatprep.mubr.f32.mxu0 0.0
      %870 = vmatmul.mubr.f32.gmra.mrb[0].mxu0 %v750
      %v871 = vpop.f32.mrb[0].mxu0
      %v872 = vadd.f32 0.0, %v871
      %v873 = vpop.f32.mrb[0].mxu0
      %874 = vmatprep.mubr.f32.mxu0 0.0
      %875 = vmatmul.mubr.f32.gmra.mrb[0].mxu0 %v753
      %v876 = vpop.f32.mrb[0].mxu0
      %v877 = vadd.f32 0.0, %v876
      %v878 = vpop.f32.mrb[0].mxu0
      %879 = vmatprep.mubr.f32.mxu0 0.0
      %880 = vmatmul.mubr.f32.gmra.mrb[0].mxu0 %v756
      %v881 = vpop.f32.mrb[0].mxu0
      %v882 = vadd.f32 0.0, %v881
      %v883 = vpop.f32.mrb[0].mxu0
      %884 = vmatprep.mubr.f32.mxu0 0.0
      %885 = vmatmul.mubr.f32.gmra.mrb[0].mxu0 %v759
      %v886 = vpop.f32.mrb[0].mxu0
      %v887 = vadd.f32 0.0, %v886
      %v888 = vpop.f32.mrb[0].mxu0
      %889 = vmatprep.mubr.f32.mxu0 0.0
      %890 = vmatmul.mubr.f32.gmra.mrb[0].mxu0 %v762
      %v891 = vpop.f32.mrb[0].mxu0
      %v892 = vadd.f32 0.0, %v891
      %v893 = vpop.f32.mrb[0].mxu0
      %894 = vmatprep.mubr.f32.mxu0 0.0
      %895 = vmatmul.mubr.f32.gmra.mrb[0].mxu0 %v765
      %v896 = vpop.f32.mrb[0].mxu0
      %v897 = vadd.f32 0.0, %v896
      %v898 = vpop.f32.mrb[0].mxu0
      %899 = vmatprep.mubr.f32.mxu0 0.0
      %900 = vmatmul.mubr.f32.gmra.mrb[0].mxu0 %v768
      %v901 = vpop.f32.mrb[0].mxu0
      %v902 = vadd.f32 0.0, %v901
      %v903 = vpop.f32.mrb[0].mxu0
      %904 = vmatprep.mubr.f32.mxu0 0.0
      %905 = vmatmul.mubr.f32.gmra.mrb[0].mxu0 %v771
      %v906 = vpop.f32.mrb[0].mxu0
      %v907 = vadd.f32 0.0, %v906
      %v908 = vpop.f32.mrb[0].mxu0
      %909 = vmatprep.mubr.f32.mxu0 0.0
      %910 = vmatmul.mubr.f32.gmra.mrb[0].mxu0 %v774
      %v911 = vpop.f32.mrb[0].mxu0
      %v912 = vadd.f32 0.0, %v911
      %v913 = vpop.f32.mrb[0].mxu0
      %914 = vmatprep.mubr.f32.mxu0 0.0
      %915 = vmatmul.mubr.f32.gmra.mrb[0].mxu0 %v777
      %v916 = vpop.f32.mrb[0].mxu0
      %v917 = vadd.f32 0.0, %v916
      %v918 = vpop.f32.mrb[0].mxu0
      %919 = vmatprep.mubr.f32.mxu0 0.0
      %920 = vmatmul.mubr.f32.gmra.mrb[0].mxu0 %v780
      %v921 = vpop.f32.mrb[0].mxu0
      %v922 = vadd.f32 0.0, %v921
      %v923 = vpop.f32.mrb[0].mxu0
      %924 = vmatprep.mubr.f32.mxu0 0.0
      %925 = vmatmul.mubr.f32.gmra.mrb[0].mxu0 %v783
      %v926 = vpop.f32.mrb[0].mxu0
      %v927 = vadd.f32 0.0, %v926
      %v928 = vpop.f32.mrb[0].mxu0
      %929 = vmatprep.mubr.f32.mxu0 0.0
      %930 = vmatmul.mubr.f32.gmra.mrb[0].mxu0 %v786
      %v931 = vpop.f32.mrb[0].mxu0
      %v932 = vadd.f32 0.0, %v931
      %v933 = vpop.f32.mrb[0].mxu0
      %934 = vmatprep.mubr.f32.mxu0 0.0
      %935 = vmatmul.mubr.f32.gmra.mrb[0].mxu0 %v789
      %v936 = vpop.f32.mrb[0].mxu0
      %v937 = vadd.f32 0.0, %v936
      %v938 = vpop.f32.mrb[0].mxu0
      %939 = vmatprep.mubr.f32.mxu0 0.0
      %940 = vmatmul.mubr.f32.gmra.mrb[0].mxu0 %v792
      %v941 = vpop.f32.mrb[0].mxu0
      %v942 = vadd.f32 0.0, %v941
      %v943 = vpop.f32.mrb[0].mxu0
      %944 = vmatprep.mubr.f32.mxu0 0.0
      %945 = vmatmul.mubr.f32.gmra.mrb[0].mxu0 %v795
      %v946 = vpop.f32.mrb[0].mxu0
      %v947 = vadd.f32 0.0, %v946
      %v948 = vpop.f32.mrb[0].mxu0
      %949 = vmatprep.mubr.f32.mxu0 0.0
      %950 = vmatmul.mubr.f32.gmra.mrb[0].mxu0 %v798
      %v951 = vpop.f32.mrb[0].mxu0
      %v952 = vadd.f32 0.0, %v951
      %v953 = vpop.f32.mrb[0].mxu0
      %954 = vdwg.mxu0
      %v955 = vadd.f32 %v636, %v867
      %v956 = vadd.f32 %v641, %v872
      %v957 = vadd.f32 %v646, %v877
      %v958 = vadd.f32 %v651, %v882
      %v959 = vadd.f32 %v656, %v887
      %v960 = vadd.f32 %v661, %v892
      %v961 = vadd.f32 %v666, %v897
      %v962 = vadd.f32 %v671, %v902
      %v963 = vadd.f32 %v676, %v907
      %v964 = vadd.f32 %v681, %v912
      %v965 = vadd.f32 %v686, %v917
      %v966 = vadd.f32 %v691, %v922
      %v967 = vadd.f32 %v696, %v927
      %v968 = vadd.f32 %v701, %v932
      %v969 = vadd.f32 %v706, %v937
      %v970 = vadd.f32 %v711, %v942
      %v971 = vadd.f32 %v716, %v947
      %v972 = vadd.f32 %v721, %v952
      %v973 = vld [vmem:[%s2 + $0x240] ss:$0 sm:$0xff]
      %v974 = vadd.f32 %v955, %v973
      %v975 = vadd.f32 %v956, %v973
      %v976 = vadd.f32 %v957, %v973
      %v977 = vadd.f32 %v958, %v973
      %v978 = vadd.f32 %v959, %v973
      %v979 = vadd.f32 %v960, %v973
      %v980 = vadd.f32 %v961, %v973
      %v981 = vadd.f32 %v962, %v973
      %v982 = vadd.f32 %v963, %v973
      %v983 = vadd.f32 %v964, %v973
      %v984 = vadd.f32 %v965, %v973
      %v985 = vadd.f32 %v966, %v973
      %v986 = vadd.f32 %v967, %v973
      %v987 = vadd.f32 %v968, %v973
      %v988 = vadd.f32 %v969, %v973
      %v989 = vadd.f32 %v970, %v973
      %v990 = vadd.f32 %v971, %v973
      %v991 = vadd.f32 %v972, %v973
      %v992 = vmax.f32 %v974, 0.0
      %v993 = vmax.f32 %v975, 0.0
      %v994 = vmax.f32 %v976, 0.0
      %v995 = vmax.f32 %v977, 0.0
      %v996 = vmax.f32 %v978, 0.0
      %v997 = vmax.f32 %v979, 0.0
      %v998 = vmax.f32 %v980, 0.0
      %v999 = vmax.f32 %v981, 0.0
      %v1000 = vmax.f32 %v982, 0.0
      %v1001 = vmax.f32 %v983, 0.0
      %v1002 = vmax.f32 %v984, 0.0
      %v1003 = vmax.f32 %v985, 0.0
      %v1004 = vmax.f32 %v986, 0.0
      %v1005 = vmax.f32 %v987, 0.0
      %v1006 = vmax.f32 %v988, 0.0
      %v1007 = vmax.f32 %v989, 0.0
      %v1008 = vmax.f32 %v990, 0.0
      %v1009 = vmax.f32 %v991, 0.0
      %1028 = vrot.lane.b32.xlu0 %v992, 32
      %v1029 = vpop.permute.xlu0 %1028
      %1030 = vrot.lane.b32.xlu0 %v993, 32
      %v1031 = vpop.permute.xlu0 %1030
      %1032 = vrot.lane.b32.xlu0 %v994, 32
      %v1033 = vpop.permute.xlu0 %1032
      %1034 = vrot.lane.b32.xlu0 %v995, 32
      %v1035 = vpop.permute.xlu0 %1034
      %1036 = vrot.lane.b32.xlu0 %v996, 32
      %v1037 = vpop.permute.xlu0 %1036
      %1038 = vrot.lane.b32.xlu0 %v997, 32
      %v1039 = vpop.permute.xlu0 %1038
      %1040 = vrot.lane.b32.xlu0 %v998, 32
      %v1041 = vpop.permute.xlu0 %1040
      %1042 = vrot.lane.b32.xlu0 %v999, 32
      %v1043 = vpop.permute.xlu0 %1042
      %1044 = vrot.lane.b32.xlu0 %v1000, 32
      %v1045 = vpop.permute.xlu0 %1044
      %1046 = vrot.lane.b32.xlu0 %v1001, 32
      %v1047 = vpop.permute.xlu0 %1046
      %1048 = vrot.lane.b32.xlu0 %v1002, 32
      %v1049 = vpop.permute.xlu0 %1048
      %1050 = vrot.lane.b32.xlu0 %v1003, 32
      %v1051 = vpop.permute.xlu0 %1050
      %1052 = vrot.lane.b32.xlu0 %v1004, 32
      %v1053 = vpop.permute.xlu0 %1052
      %1054 = vrot.lane.b32.xlu0 %v1005, 32
      %v1055 = vpop.permute.xlu0 %1054
      %1056 = vrot.lane.b32.xlu0 %v1006, 32
      %v1057 = vpop.permute.xlu0 %1056
      %1058 = vrot.lane.b32.xlu0 %v1007, 32
      %v1059 = vpop.permute.xlu0 %1058
      %1060 = vrot.lane.b32.xlu0 %v1008, 32
      %v1061 = vpop.permute.xlu0 %1060
      %1062 = vrot.lane.b32.xlu0 %v1009, 32
      %v1063 = vpop.permute.xlu0 %1062
      %vm1082 = vcmask 523520
      %1083 = vst.msk [vmem:[#allocation3] sm:$0xff] %vm1082, %v1029
      %1084 = vst.msk [vmem:[#allocation3 + $0x8] sm:$0xff] %vm1082, %v1031
      %1085 = vst.msk [vmem:[#allocation3 + $0x10] sm:$0xff] %vm1082, %v1033
      %1086 = vst.msk [vmem:[#allocation3 + $0x18] sm:$0xff] %vm1082, %v1035
      %1087 = vst.msk [vmem:[#allocation3 + $0x20] sm:$0xff] %vm1082, %v1037
      %1088 = vst.msk [vmem:[#allocation3 + $0x28] sm:$0xff] %vm1082, %v1039
      %1089 = vst.msk [vmem:[#allocation3 + $0x30] sm:$0xff] %vm1082, %v1041
      %1090 = vst.msk [vmem:[#allocation3 + $0x38] sm:$0xff] %vm1082, %v1043
      %1091 = vst.msk [vmem:[#allocation3 + $0x40] sm:$0xff] %vm1082, %v1045
      %1092 = vst.msk [vmem:[#allocation3 + $0x48] sm:$0xff] %vm1082, %v1047
      %1093 = vst.msk [vmem:[#allocation3 + $0x50] sm:$0xff] %vm1082, %v1049
      %1094 = vst.msk [vmem:[#allocation3 + $0x58] sm:$0xff] %vm1082, %v1051
      %1095 = vst.msk [vmem:[#allocation3 + $0x60] sm:$0xff] %vm1082, %v1053
      %1096 = vst.msk [vmem:[#allocation3 + $0x68] sm:$0xff] %vm1082, %v1055
      %1097 = vst.msk [vmem:[#allocation3 + $0x70] sm:$0xff] %vm1082, %v1057
      %1098 = vst.msk [vmem:[#allocation3 + $0x78] sm:$0xff] %vm1082, %v1059
      %1099 = vst.msk [vmem:[#allocation3 + $0x80] sm:$0xff] %vm1082, %v1061
      %vm1100 = vcmask 521472
      %1101 = vst.msk [vmem:[#allocation3 + $0x88] sm:$0x3f] %vm1100, %v1063
      %v1102 = vld [vmem:[#allocation3] sm:$0xff]
      %v1103 = vld [vmem:[#allocation3 + $0x8] sm:$0xff]
      %v1104 = vld [vmem:[#allocation3 + $0x10] sm:$0xff]
      %v1105 = vld [vmem:[#allocation3 + $0x18] sm:$0xff]
      %v1106 = vld [vmem:[#allocation3 + $0x20] sm:$0xff]
      %v1107 = vld [vmem:[#allocation3 + $0x28] sm:$0xff]
      %v1108 = vld [vmem:[#allocation3 + $0x30] sm:$0xff]
      %v1109 = vld [vmem:[#allocation3 + $0x38] sm:$0xff]
      %v1110 = vld [vmem:[#allocation3 + $0x40] sm:$0xff]
      %v1111 = vld [vmem:[#allocation3 + $0x48] sm:$0xff]
      %v1112 = vld [vmem:[#allocation3 + $0x50] sm:$0xff]
      %v1113 = vld [vmem:[#allocation3 + $0x58] sm:$0xff]
      %v1114 = vld [vmem:[#allocation3 + $0x60] sm:$0xff]
      %v1115 = vld [vmem:[#allocation3 + $0x68] sm:$0xff]
      %v1116 = vld [vmem:[#allocation3 + $0x70] sm:$0xff]
      %v1117 = vld [vmem:[#allocation3 + $0x78] sm:$0xff]
      %v1118 = vld [vmem:[#allocation3 + $0x80] sm:$0xff]
      %v1119 = vld [vmem:[#allocation3 + $0x88] sm:$0xf]
      %v1120 = vld [vmem:[%s2 + $0x40] sm:$0xff]
      %v1121 = vld [vmem:[%s2 + $0x50] sm:$0xff]
      %v1122 = vld [vmem:[%s2 + $0x60] sm:$0xff]
      %v1123 = vld [vmem:[%s2 + $0x70] sm:$0xff]
      %v1124 = vld [vmem:[%s2 + $0x80] sm:$0xff]
      %v1125 = vld [vmem:[%s2 + $0x90] sm:$0xff]
      %v1126 = vld [vmem:[%s2 + $0xa0] sm:$0xff]
      %v1127 = vld [vmem:[%s2 + $0xb0] sm:$0xff]
      %v1128 = vld [vmem:[#allocation3 + $0x1] sm:$0xff]
      %v1129 = vld [vmem:[#allocation3 + $0x9] sm:$0xff]
      %v1130 = vld [vmem:[#allocation3 + $0x11] sm:$0xff]
      %v1131 = vld [vmem:[#allocation3 + $0x19] sm:$0xff]
      %v1132 = vld [vmem:[#allocation3 + $0x21] sm:$0xff]
      %v1133 = vld [vmem:[#allocation3 + $0x29] sm:$0xff]
      %v1134 = vld [vmem:[#allocation3 + $0x31] sm:$0xff]
      %v1135 = vld [vmem:[#allocation3 + $0x39] sm:$0xff]
      %v1136 = vld [vmem:[#allocation3 + $0x41] sm:$0xff]
      %v1137 = vld [vmem:[#allocation3 + $0x49] sm:$0xff]
      %v1138 = vld [vmem:[#allocation3 + $0x51] sm:$0xff]
      %v1139 = vld [vmem:[#allocation3 + $0x59] sm:$0xff]
      %v1140 = vld [vmem:[#allocation3 + $0x61] sm:$0xff]
      %v1141 = vld [vmem:[#allocation3 + $0x69] sm:$0xff]
      %v1142 = vld [vmem:[#allocation3 + $0x71] sm:$0xff]
      %v1143 = vld [vmem:[#allocation3 + $0x79] sm:$0xff]
      %v1144 = vld [vmem:[#allocation3 + $0x81] sm:$0xff]
      %v1145 = vld [vmem:[#allocation3 + $0x89] sm:$0xf]
      %v1146 = vld [vmem:[%s2 + $0x100] sm:$0xff]
      %v1147 = vld [vmem:[%s2 + $0x110] sm:$0xff]
      %v1148 = vld [vmem:[%s2 + $0x120] sm:$0xff]
      %v1149 = vld [vmem:[%s2 + $0x130] sm:$0xff]
      %v1150 = vld [vmem:[%s2 + $0x140] sm:$0xff]
      %v1151 = vld [vmem:[%s2 + $0x150] sm:$0xff]
      %v1152 = vld [vmem:[%s2 + $0x160] sm:$0xff]
      %v1153 = vld [vmem:[%s2 + $0x170] sm:$0xff]
      %vm1154 = vcmask 523264
      %v1156 = vsel %vm1154, %v1128, 0
      %v1159 = vsel %vm1154, %v1129, 0
      %v1162 = vsel %vm1154, %v1130, 0
      %v1165 = vsel %vm1154, %v1131, 0
      %v1168 = vsel %vm1154, %v1132, 0
      %v1171 = vsel %vm1154, %v1133, 0
      %v1174 = vsel %vm1154, %v1134, 0
      %v1177 = vsel %vm1154, %v1135, 0
      %v1180 = vsel %vm1154, %v1136, 0
      %v1183 = vsel %vm1154, %v1137, 0
      %v1186 = vsel %vm1154, %v1138, 0
      %v1189 = vsel %vm1154, %v1139, 0
      %v1192 = vsel %vm1154, %v1140, 0
      %v1195 = vsel %vm1154, %v1141, 0
      %v1198 = vsel %vm1154, %v1142, 0
      %v1201 = vsel %vm1154, %v1143, 0
      %v1204 = vsel %vm1154, %v1144, 0
      %v1207 = vsel %vm1154, %v1145, 0
      %1209 = vmatprep.subr.mxu0 0.0
      %1210 = vmatpush1.msra.mxu0 %v1146
      %1211 = vmatprep.subr.mxu0 0.0
      %1212 = vmatpush1.msra.mxu0 %v1147
      %1213 = vmatprep.subr.mxu0 0.0
      %1214 = vmatpush1.msra.mxu0 %v1148
      %1215 = vmatprep.subr.mxu0 0.0
      %1216 = vmatpush1.msra.mxu0 %v1149
      %1217 = vmatprep.subr.mxu0 0.0
      %1218 = vmatpush1.msra.mxu0 %v1150
      %1219 = vmatprep.subr.mxu0 0.0
      %1220 = vmatpush1.msra.mxu0 %v1151
      %1221 = vmatprep.subr.mxu0 0.0
      %1222 = vmatpush1.msra.mxu0 %v1152
      %1223 = vmatprep.subr.mxu0 0.0
      %1224 = vmatpush1.msra.mxu0 %v1153
      %1225 = vmatprep.subr.mxu0 0.0
      %1226 = vmatpush1.msra.mxu0 0.0
      %1227 = vmatprep.subr.mxu0 0.0
      %1228 = vmatpush1.msra.mxu0 0.0
      %1229 = vmatprep.subr.mxu0 0.0
      %1230 = vmatpush1.msra.mxu0 0.0
      %1231 = vmatprep.subr.mxu0 0.0
      %1232 = vmatpush1.msra.mxu0 0.0
      %1233 = vmatprep.subr.mxu0 0.0
      %1234 = vmatpush1.msra.mxu0 0.0
      %1235 = vmatprep.subr.mxu0 0.0
      %1236 = vmatpush1.msra.mxu0 0.0
      %1237 = vmatprep.subr.mxu0 0.0
      %1238 = vmatpush1.msra.mxu0 0.0
      %1239 = vmatprep.subr.mxu0 0.0
      %1240 = vmatpush1.msra.mxu0 0.0
      %1241 = vmatprep.subr.mxu0 0.0
      %1242 = vmatpush1.msra.mxu0 0.0
      %1243 = vmatprep.subr.mxu0 0.0
      %1244 = vmatpush1.msra.mxu0 0.0
      %1245 = vmatprep.subr.mxu0 0.0
      %1246 = vmatpush1.msra.mxu0 0.0
      %1247 = vmatprep.subr.mxu0 0.0
      %1248 = vmatpush1.msra.mxu0 0.0
      %1249 = vmatprep.subr.mxu0 0.0
      %1250 = vmatpush1.msra.mxu0 0.0
      %1251 = vmatprep.subr.mxu0 0.0
      %1252 = vmatpush1.msra.mxu0 0.0
      %1253 = vmatprep.subr.mxu0 0.0
      %1254 = vmatpush1.msra.mxu0 0.0
      %1255 = vmatprep.subr.mxu0 0.0
      %1256 = vmatpush1.msra.mxu0 0.0
      %1257 = vmatprep.subr.mxu0 0.0
      %1258 = vmatpush1.msra.mxu0 0.0
      %1259 = vmatprep.subr.mxu0 0.0
      %1260 = vmatpush1.msra.mxu0 0.0
      %1261 = vmatprep.subr.mxu0 0.0
      %1262 = vmatpush1.msra.mxu0 0.0
      %1263 = vmatprep.subr.mxu0 0.0
      %1264 = vmatpush1.msra.mxu0 0.0
      %1265 = vmatprep.subr.mxu0 0.0
      %1266 = vmatpush1.msra.mxu0 0.0
      %1267 = vmatprep.subr.mxu0 0.0
      %1268 = vmatpush1.msra.mxu0 0.0
      %1269 = vmatprep.subr.mxu0 0.0
      %1270 = vmatpush1.msra.mxu0 0.0
      %1271 = vmatprep.subr.mxu0 0.0
      %1272 = vmatpush1.msra.mxu0 0.0
      %1273 = vmatprep.mubr.f32.mxu0 0.0
      %1274 = vmatmul.mubr.f32.gmra.mrb[0].mxu0 %v1156
      %v1275 = vpop.f32.mrb[0].mxu0
      %v1276 = vadd.f32 0.0, %v1275
      %v1277 = vpop.f32.mrb[0].mxu0
      %1278 = vmatprep.mubr.f32.mxu0 0.0
      %1279 = vmatmul.mubr.f32.gmra.mrb[0].mxu0 %v1159
      %v1280 = vpop.f32.mrb[0].mxu0
      %v1281 = vadd.f32 0.0, %v1280
      %v1282 = vpop.f32.mrb[0].mxu0
      %1283 = vmatprep.mubr.f32.mxu0 0.0
      %1284 = vmatmul.mubr.f32.gmra.mrb[0].mxu0 %v1162
      %v1285 = vpop.f32.mrb[0].mxu0
      %v1286 = vadd.f32 0.0, %v1285
      %v1287 = vpop.f32.mrb[0].mxu0
      %1288 = vmatprep.mubr.f32.mxu0 0.0
      %1289 = vmatmul.mubr.f32.gmra.mrb[0].mxu0 %v1165
      %v1290 = vpop.f32.mrb[0].mxu0
      %v1291 = vadd.f32 0.0, %v1290
      %v1292 = vpop.f32.mrb[0].mxu0
      %1293 = vmatprep.mubr.f32.mxu0 0.0
      %1294 = vmatmul.mubr.f32.gmra.mrb[0].mxu0 %v1168
      %v1295 = vpop.f32.mrb[0].mxu0
      %v1296 = vadd.f32 0.0, %v1295
      %v1297 = vpop.f32.mrb[0].mxu0
      %1298 = vmatprep.mubr.f32.mxu0 0.0
      %1299 = vmatmul.mubr.f32.gmra.mrb[0].mxu0 %v1171
      %v1300 = vpop.f32.mrb[0].mxu0
      %v1301 = vadd.f32 0.0, %v1300
      %v1302 = vpop.f32.mrb[0].mxu0
      %1303 = vmatprep.mubr.f32.mxu0 0.0
      %1304 = vmatmul.mubr.f32.gmra.mrb[0].mxu0 %v1174
      %v1305 = vpop.f32.mrb[0].mxu0
      %v1306 = vadd.f32 0.0, %v1305
      %v1307 = vpop.f32.mrb[0].mxu0
      %1308 = vmatprep.mubr.f32.mxu0 0.0
      %1309 = vmatmul.mubr.f32.gmra.mrb[0].mxu0 %v1177
      %v1310 = vpop.f32.mrb[0].mxu0
      %v1311 = vadd.f32 0.0, %v1310
      %v1312 = vpop.f32.mrb[0].mxu0
      %1313 = vmatprep.mubr.f32.mxu0 0.0
      %1314 = vmatmul.mubr.f32.gmra.mrb[0].mxu0 %v1180
      %v1315 = vpop.f32.mrb[0].mxu0
      %v1316 = vadd.f32 0.0, %v1315
      %v1317 = vpop.f32.mrb[0].mxu0
      %1318 = vmatprep.mubr.f32.mxu0 0.0
      %1319 = vmatmul.mubr.f32.gmra.mrb[0].mxu0 %v1183
      %v1320 = vpop.f32.mrb[0].mxu0
      %v1321 = vadd.f32 0.0, %v1320
      %v1322 = vpop.f32.mrb[0].mxu0
      %1323 = vmatprep.mubr.f32.mxu0 0.0
      %1324 = vmatmul.mubr.f32.gmra.mrb[0].mxu0 %v1186
      %v1325 = vpop.f32.mrb[0].mxu0
      %v1326 = vadd.f32 0.0, %v1325
      %v1327 = vpop.f32.mrb[0].mxu0
      %1328 = vmatprep.mubr.f32.mxu0 0.0
      %1329 = vmatmul.mubr.f32.gmra.mrb[0].mxu0 %v1189
      %v1330 = vpop.f32.mrb[0].mxu0
      %v1331 = vadd.f32 0.0, %v1330
      %v1332 = vpop.f32.mrb[0].mxu0
      %1333 = vmatprep.mubr.f32.mxu0 0.0
      %1334 = vmatmul.mubr.f32.gmra.mrb[0].mxu0 %v1192
      %v1335 = vpop.f32.mrb[0].mxu0
      %v1336 = vadd.f32 0.0, %v1335
      %v1337 = vpop.f32.mrb[0].mxu0
      %1338 = vmatprep.mubr.f32.mxu0 0.0
      %1339 = vmatmul.mubr.f32.gmra.mrb[0].mxu0 %v1195
      %v1340 = vpop.f32.mrb[0].mxu0
      %v1341 = vadd.f32 0.0, %v1340
      %v1342 = vpop.f32.mrb[0].mxu0
      %1343 = vmatprep.mubr.f32.mxu0 0.0
      %1344 = vmatmul.mubr.f32.gmra.mrb[0].mxu0 %v1198
      %v1345 = vpop.f32.mrb[0].mxu0
      %v1346 = vadd.f32 0.0, %v1345
      %v1347 = vpop.f32.mrb[0].mxu0
      %1348 = vmatprep.mubr.f32.mxu0 0.0
      %1349 = vmatmul.mubr.f32.gmra.mrb[0].mxu0 %v1201
      %v1350 = vpop.f32.mrb[0].mxu0
      %v1351 = vadd.f32 0.0, %v1350
      %v1352 = vpop.f32.mrb[0].mxu0
      %1353 = vmatprep.mubr.f32.mxu0 0.0
      %1354 = vmatmul.mubr.f32.gmra.mrb[0].mxu0 %v1204
      %v1355 = vpop.f32.mrb[0].mxu0
      %v1356 = vadd.f32 0.0, %v1355
      %v1357 = vpop.f32.mrb[0].mxu0
      %1358 = vmatprep.mubr.f32.mxu0 0.0
      %1359 = vmatmul.mubr.f32.gmra.mrb[0].mxu0 %v1207
      %v1360 = vpop.f32.mrb[0].mxu0
      %v1361 = vadd.f32 0.0, %v1360
      %v1362 = vpop.f32.mrb[0].mxu0
      %1363 = vdwg.mxu0
      %v1365 = vsel %vm1154, %v1102, 0
      %v1368 = vsel %vm1154, %v1103, 0
      %v1371 = vsel %vm1154, %v1104, 0
      %v1374 = vsel %vm1154, %v1105, 0
      %v1377 = vsel %vm1154, %v1106, 0
      %v1380 = vsel %vm1154, %v1107, 0
      %v1383 = vsel %vm1154, %v1108, 0
      %v1386 = vsel %vm1154, %v1109, 0
      %v1389 = vsel %vm1154, %v1110, 0
      %v1392 = vsel %vm1154, %v1111, 0
      %v1395 = vsel %vm1154, %v1112, 0
      %v1398 = vsel %vm1154, %v1113, 0
      %v1401 = vsel %vm1154, %v1114, 0
      %v1404 = vsel %vm1154, %v1115, 0
      %v1407 = vsel %vm1154, %v1116, 0
      %v1410 = vsel %vm1154, %v1117, 0
      %v1413 = vsel %vm1154, %v1118, 0
      %v1416 = vsel %vm1154, %v1119, 0
      %1418 = vmatprep.subr.mxu0 0.0
      %1419 = vmatpush1.msra.mxu0 %v1120
      %1420 = vmatprep.subr.mxu0 0.0
      %1421 = vmatpush1.msra.mxu0 %v1121
      %1422 = vmatprep.subr.mxu0 0.0
      %1423 = vmatpush1.msra.mxu0 %v1122
      %1424 = vmatprep.subr.mxu0 0.0
      %1425 = vmatpush1.msra.mxu0 %v1123
      %1426 = vmatprep.subr.mxu0 0.0
      %1427 = vmatpush1.msra.mxu0 %v1124
      %1428 = vmatprep.subr.mxu0 0.0
      %1429 = vmatpush1.msra.mxu0 %v1125
      %1430 = vmatprep.subr.mxu0 0.0
      %1431 = vmatpush1.msra.mxu0 %v1126
      %1432 = vmatprep.subr.mxu0 0.0
      %1433 = vmatpush1.msra.mxu0 %v1127
      %1434 = vmatprep.subr.mxu0 0.0
      %1435 = vmatpush1.msra.mxu0 0.0
      %1436 = vmatprep.subr.mxu0 0.0
      %1437 = vmatpush1.msra.mxu0 0.0
      %1438 = vmatprep.subr.mxu0 0.0
      %1439 = vmatpush1.msra.mxu0 0.0
      %1440 = vmatprep.subr.mxu0 0.0
      %1441 = vmatpush1.msra.mxu0 0.0
      %1442 = vmatprep.subr.mxu0 0.0
      %1443 = vmatpush1.msra.mxu0 0.0
      %1444 = vmatprep.subr.mxu0 0.0
      %1445 = vmatpush1.msra.mxu0 0.0
      %1446 = vmatprep.subr.mxu0 0.0
      %1447 = vmatpush1.msra.mxu0 0.0
      %1448 = vmatprep.subr.mxu0 0.0
      %1449 = vmatpush1.msra.mxu0 0.0
      %1450 = vmatprep.subr.mxu0 0.0
      %1451 = vmatpush1.msra.mxu0 0.0
      %1452 = vmatprep.subr.mxu0 0.0
      %1453 = vmatpush1.msra.mxu0 0.0
      %1454 = vmatprep.subr.mxu0 0.0
      %1455 = vmatpush1.msra.mxu0 0.0
      %1456 = vmatprep.subr.mxu0 0.0
      %1457 = vmatpush1.msra.mxu0 0.0
      %1458 = vmatprep.subr.mxu0 0.0
      %1459 = vmatpush1.msra.mxu0 0.0
      %1460 = vmatprep.subr.mxu0 0.0
      %1461 = vmatpush1.msra.mxu0 0.0
      %1462 = vmatprep.subr.mxu0 0.0
      %1463 = vmatpush1.msra.mxu0 0.0
      %1464 = vmatprep.subr.mxu0 0.0
      %1465 = vmatpush1.msra.mxu0 0.0
      %1466 = vmatprep.subr.mxu0 0.0
      %1467 = vmatpush1.msra.mxu0 0.0
      %1468 = vmatprep.subr.mxu0 0.0
      %1469 = vmatpush1.msra.mxu0 0.0
      %1470 = vmatprep.subr.mxu0 0.0
      %1471 = vmatpush1.msra.mxu0 0.0
      %1472 = vmatprep.subr.mxu0 0.0
      %1473 = vmatpush1.msra.mxu0 0.0
      %1474 = vmatprep.subr.mxu0 0.0
      %1475 = vmatpush1.msra.mxu0 0.0
      %1476 = vmatprep.subr.mxu0 0.0
      %1477 = vmatpush1.msra.mxu0 0.0
      %1478 = vmatprep.subr.mxu0 0.0
      %1479 = vmatpush1.msra.mxu0 0.0
      %1480 = vmatprep.subr.mxu0 0.0
      %1481 = vmatpush1.msra.mxu0 0.0
      %1482 = vmatprep.mubr.f32.mxu0 0.0
      %1483 = vmatmul.mubr.f32.gmra.mrb[0].mxu0 %v1365
      %v1484 = vpop.f32.mrb[0].mxu0
      %v1485 = vadd.f32 %v1276, %v1484
      %v1486 = vpop.f32.mrb[0].mxu0
      %1487 = vmatprep.mubr.f32.mxu0 0.0
      %1488 = vmatmul.mubr.f32.gmra.mrb[0].mxu0 %v1368
      %v1489 = vpop.f32.mrb[0].mxu0
      %v1490 = vadd.f32 %v1281, %v1489
      %v1491 = vpop.f32.mrb[0].mxu0
      %1492 = vmatprep.mubr.f32.mxu0 0.0
      %1493 = vmatmul.mubr.f32.gmra.mrb[0].mxu0 %v1371
      %v1494 = vpop.f32.mrb[0].mxu0
      %v1495 = vadd.f32 %v1286, %v1494
      %v1496 = vpop.f32.mrb[0].mxu0
      %1497 = vmatprep.mubr.f32.mxu0 0.0
      %1498 = vmatmul.mubr.f32.gmra.mrb[0].mxu0 %v1374
      %v1499 = vpop.f32.mrb[0].mxu0
      %v1500 = vadd.f32 %v1291, %v1499
      %v1501 = vpop.f32.mrb[0].mxu0
      %1502 = vmatprep.mubr.f32.mxu0 0.0
      %1503 = vmatmul.mubr.f32.gmra.mrb[0].mxu0 %v1377
      %v1504 = vpop.f32.mrb[0].mxu0
      %v1505 = vadd.f32 %v1296, %v1504
      %v1506 = vpop.f32.mrb[0].mxu0
      %1507 = vmatprep.mubr.f32.mxu0 0.0
      %1508 = vmatmul.mubr.f32.gmra.mrb[0].mxu0 %v1380
      %v1509 = vpop.f32.mrb[0].mxu0
      %v1510 = vadd.f32 %v1301, %v1509
      %v1511 = vpop.f32.mrb[0].mxu0
      %1512 = vmatprep.mubr.f32.mxu0 0.0
      %1513 = vmatmul.mubr.f32.gmra.mrb[0].mxu0 %v1383
      %v1514 = vpop.f32.mrb[0].mxu0
      %v1515 = vadd.f32 %v1306, %v1514
      %v1516 = vpop.f32.mrb[0].mxu0
      %1517 = vmatprep.mubr.f32.mxu0 0.0
      %1518 = vmatmul.mubr.f32.gmra.mrb[0].mxu0 %v1386
      %v1519 = vpop.f32.mrb[0].mxu0
      %v1520 = vadd.f32 %v1311, %v1519
      %v1521 = vpop.f32.mrb[0].mxu0
      %1522 = vmatprep.mubr.f32.mxu0 0.0
      %1523 = vmatmul.mubr.f32.gmra.mrb[0].mxu0 %v1389
      %v1524 = vpop.f32.mrb[0].mxu0
      %v1525 = vadd.f32 %v1316, %v1524
      %v1526 = vpop.f32.mrb[0].mxu0
      %1527 = vmatprep.mubr.f32.mxu0 0.0
      %1528 = vmatmul.mubr.f32.gmra.mrb[0].mxu0 %v1392
      %v1529 = vpop.f32.mrb[0].mxu0
      %v1530 = vadd.f32 %v1321, %v1529
      %v1531 = vpop.f32.mrb[0].mxu0
      %1532 = vmatprep.mubr.f32.mxu0 0.0
      %1533 = vmatmul.mubr.f32.gmra.mrb[0].mxu0 %v1395
      %v1534 = vpop.f32.mrb[0].mxu0
      %v1535 = vadd.f32 %v1326, %v1534
      %v1536 = vpop.f32.mrb[0].mxu0
      %1537 = vmatprep.mubr.f32.mxu0 0.0
      %1538 = vmatmul.mubr.f32.gmra.mrb[0].mxu0 %v1398
      %v1539 = vpop.f32.mrb[0].mxu0
      %v1540 = vadd.f32 %v1331, %v1539
      %v1541 = vpop.f32.mrb[0].mxu0
      %1542 = vmatprep.mubr.f32.mxu0 0.0
      %1543 = vmatmul.mubr.f32.gmra.mrb[0].mxu0 %v1401
      %v1544 = vpop.f32.mrb[0].mxu0
      %v1545 = vadd.f32 %v1336, %v1544
      %v1546 = vpop.f32.mrb[0].mxu0
      %1547 = vmatprep.mubr.f32.mxu0 0.0
      %1548 = vmatmul.mubr.f32.gmra.mrb[0].mxu0 %v1404
      %v1549 = vpop.f32.mrb[0].mxu0
      %v1550 = vadd.f32 %v1341, %v1549
      %v1551 = vpop.f32.mrb[0].mxu0
      %1552 = vmatprep.mubr.f32.mxu0 0.0
      %1553 = vmatmul.mubr.f32.gmra.mrb[0].mxu0 %v1407
      %v1554 = vpop.f32.mrb[0].mxu0
      %v1555 = vadd.f32 %v1346, %v1554
      %v1556 = vpop.f32.mrb[0].mxu0
      %1557 = vmatprep.mubr.f32.mxu0 0.0
      %1558 = vmatmul.mubr.f32.gmra.mrb[0].mxu0 %v1410
      %v1559 = vpop.f32.mrb[0].mxu0
      %v1560 = vadd.f32 %v1351, %v1559
      %v1561 = vpop.f32.mrb[0].mxu0
      %1562 = vmatprep.mubr.f32.mxu0 0.0
      %1563 = vmatmul.mubr.f32.gmra.mrb[0].mxu0 %v1413
      %v1564 = vpop.f32.mrb[0].mxu0
      %v1565 = vadd.f32 %v1356, %v1564
      %v1566 = vpop.f32.mrb[0].mxu0
      %1567 = vmatprep.mubr.f32.mxu0 0.0
      %1568 = vmatmul.mubr.f32.gmra.mrb[0].mxu0 %v1416
      %v1569 = vpop.f32.mrb[0].mxu0
      %v1570 = vadd.f32 %v1361, %v1569
      %v1571 = vpop.f32.mrb[0].mxu0
      %1572 = vdwg.mxu0
      %v1573 = vld [vmem:[#allocation3 + $0x2] sm:$0xff]
      %v1574 = vld [vmem:[#allocation3 + $0xa] sm:$0xff]
      %v1575 = vld [vmem:[#allocation3 + $0x12] sm:$0xff]
      %v1576 = vld [vmem:[#allocation3 + $0x1a] sm:$0xff]
      %v1577 = vld [vmem:[#allocation3 + $0x22] sm:$0xff]
      %v1578 = vld [vmem:[#allocation3 + $0x2a] sm:$0xff]
      %v1579 = vld [vmem:[#allocation3 + $0x32] sm:$0xff]
      %v1580 = vld [vmem:[#allocation3 + $0x3a] sm:$0xff]
      %v1581 = vld [vmem:[#allocation3 + $0x42] sm:$0xff]
      %v1582 = vld [vmem:[#allocation3 + $0x4a] sm:$0xff]
      %v1583 = vld [vmem:[#allocation3 + $0x52] sm:$0xff]
      %v1584 = vld [vmem:[#allocation3 + $0x5a] sm:$0xff]
      %v1585 = vld [vmem:[#allocation3 + $0x62] sm:$0xff]
      %v1586 = vld [vmem:[#allocation3 + $0x6a] sm:$0xff]
      %v1587 = vld [vmem:[#allocation3 + $0x72] sm:$0xff]
      %v1588 = vld [vmem:[#allocation3 + $0x7a] sm:$0xff]
      %v1589 = vld [vmem:[#allocation3 + $0x82] sm:$0xff]
      %v1590 = vld [vmem:[#allocation3 + $0x8a] sm:$0xf]
      %v1591 = vld [vmem:[%s2 + $0x1c0] sm:$0xff]
      %v1592 = vld [vmem:[%s2 + $0x1d0] sm:$0xff]
      %v1593 = vld [vmem:[%s2 + $0x1e0] sm:$0xff]
      %v1594 = vld [vmem:[%s2 + $0x1f0] sm:$0xff]
      %v1595 = vld [vmem:[%s2 + $0x200] sm:$0xff]
      %v1596 = vld [vmem:[%s2 + $0x210] sm:$0xff]
      %v1597 = vld [vmem:[%s2 + $0x220] sm:$0xff]
      %v1598 = vld [vmem:[%s2 + $0x230] sm:$0xff]
      %v1600 = vsel %vm1154, %v1573, 0
      %v1603 = vsel %vm1154, %v1574, 0
      %v1606 = vsel %vm1154, %v1575, 0
      %v1609 = vsel %vm1154, %v1576, 0
      %v1612 = vsel %vm1154, %v1577, 0
      %v1615 = vsel %vm1154, %v1578, 0
      %v1618 = vsel %vm1154, %v1579, 0
      %v1621 = vsel %vm1154, %v1580, 0
      %v1624 = vsel %vm1154, %v1581, 0
      %v1627 = vsel %vm1154, %v1582, 0
      %v1630 = vsel %vm1154, %v1583, 0
      %v1633 = vsel %vm1154, %v1584, 0
      %v1636 = vsel %vm1154, %v1585, 0
      %v1639 = vsel %vm1154, %v1586, 0
      %v1642 = vsel %vm1154, %v1587, 0
      %v1645 = vsel %vm1154, %v1588, 0
      %v1648 = vsel %vm1154, %v1589, 0
      %v1651 = vsel %vm1154, %v1590, 0
      %1653 = vmatprep.subr.mxu0 0.0
      %1654 = vmatpush1.msra.mxu0 %v1591
      %1655 = vmatprep.subr.mxu0 0.0
      %1656 = vmatpush1.msra.mxu0 %v1592
      %1657 = vmatprep.subr.mxu0 0.0
      %1658 = vmatpush1.msra.mxu0 %v1593
      %1659 = vmatprep.subr.mxu0 0.0
      %1660 = vmatpush1.msra.mxu0 %v1594
      %1661 = vmatprep.subr.mxu0 0.0
      %1662 = vmatpush1.msra.mxu0 %v1595
      %1663 = vmatprep.subr.mxu0 0.0
      %1664 = vmatpush1.msra.mxu0 %v1596
      %1665 = vmatprep.subr.mxu0 0.0
      %1666 = vmatpush1.msra.mxu0 %v1597
      %1667 = vmatprep.subr.mxu0 0.0
      %1668 = vmatpush1.msra.mxu0 %v1598
      %1669 = vmatprep.subr.mxu0 0.0
      %1670 = vmatpush1.msra.mxu0 0.0
      %1671 = vmatprep.subr.mxu0 0.0
      %1672 = vmatpush1.msra.mxu0 0.0
      %1673 = vmatprep.subr.mxu0 0.0
      %1674 = vmatpush1.msra.mxu0 0.0
      %1675 = vmatprep.subr.mxu0 0.0
      %1676 = vmatpush1.msra.mxu0 0.0
      %1677 = vmatprep.subr.mxu0 0.0
      %1678 = vmatpush1.msra.mxu0 0.0
      %1679 = vmatprep.subr.mxu0 0.0
      %1680 = vmatpush1.msra.mxu0 0.0
      %1681 = vmatprep.subr.mxu0 0.0
      %1682 = vmatpush1.msra.mxu0 0.0
      %1683 = vmatprep.subr.mxu0 0.0
      %1684 = vmatpush1.msra.mxu0 0.0
      %1685 = vmatprep.subr.mxu0 0.0
      %1686 = vmatpush1.msra.mxu0 0.0
      %1687 = vmatprep.subr.mxu0 0.0
      %1688 = vmatpush1.msra.mxu0 0.0
      %1689 = vmatprep.subr.mxu0 0.0
      %1690 = vmatpush1.msra.mxu0 0.0
      %1691 = vmatprep.subr.mxu0 0.0
      %1692 = vmatpush1.msra.mxu0 0.0
      %1693 = vmatprep.subr.mxu0 0.0
      %1694 = vmatpush1.msra.mxu0 0.0
      %1695 = vmatprep.subr.mxu0 0.0
      %1696 = vmatpush1.msra.mxu0 0.0
      %1697 = vmatprep.subr.mxu0 0.0
      %1698 = vmatpush1.msra.mxu0 0.0
      %1699 = vmatprep.subr.mxu0 0.0
      %1700 = vmatpush1.msra.mxu0 0.0
      %1701 = vmatprep.subr.mxu0 0.0
      %1702 = vmatpush1.msra.mxu0 0.0
      %1703 = vmatprep.subr.mxu0 0.0
      %1704 = vmatpush1.msra.mxu0 0.0
      %1705 = vmatprep.subr.mxu0 0.0
      %1706 = vmatpush1.msra.mxu0 0.0
      %1707 = vmatprep.subr.mxu0 0.0
      %1708 = vmatpush1.msra.mxu0 0.0
      %1709 = vmatprep.subr.mxu0 0.0
      %1710 = vmatpush1.msra.mxu0 0.0
      %1711 = vmatprep.subr.mxu0 0.0
      %1712 = vmatpush1.msra.mxu0 0.0
      %1713 = vmatprep.subr.mxu0 0.0
      %1714 = vmatpush1.msra.mxu0 0.0
      %1715 = vmatprep.subr.mxu0 0.0
      %1716 = vmatpush1.msra.mxu0 0.0
      %1717 = vmatprep.mubr.f32.mxu0 0.0
      %1718 = vmatmul.mubr.f32.gmra.mrb[0].mxu0 %v1600
      %v1719 = vpop.f32.mrb[0].mxu0
      %v1720 = vadd.f32 0.0, %v1719
      %v1721 = vpop.f32.mrb[0].mxu0
      %1722 = vmatprep.mubr.f32.mxu0 0.0
      %1723 = vmatmul.mubr.f32.gmra.mrb[0].mxu0 %v1603
      %v1724 = vpop.f32.mrb[0].mxu0
      %v1725 = vadd.f32 0.0, %v1724
      %v1726 = vpop.f32.mrb[0].mxu0
      %1727 = vmatprep.mubr.f32.mxu0 0.0
      %1728 = vmatmul.mubr.f32.gmra.mrb[0].mxu0 %v1606
      %v1729 = vpop.f32.mrb[0].mxu0
      %v1730 = vadd.f32 0.0, %v1729
      %v1731 = vpop.f32.mrb[0].mxu0
      %1732 = vmatprep.mubr.f32.mxu0 0.0
      %1733 = vmatmul.mubr.f32.gmra.mrb[0].mxu0 %v1609
      %v1734 = vpop.f32.mrb[0].mxu0
      %v1735 = vadd.f32 0.0, %v1734
      %v1736 = vpop.f32.mrb[0].mxu0
      %1737 = vmatprep.mubr.f32.mxu0 0.0
      %1738 = vmatmul.mubr.f32.gmra.mrb[0].mxu0 %v1612
      %v1739 = vpop.f32.mrb[0].mxu0
      %v1740 = vadd.f32 0.0, %v1739
      %v1741 = vpop.f32.mrb[0].mxu0
      %1742 = vmatprep.mubr.f32.mxu0 0.0
      %1743 = vmatmul.mubr.f32.gmra.mrb[0].mxu0 %v1615
      %v1744 = vpop.f32.mrb[0].mxu0
      %v1745 = vadd.f32 0.0, %v1744
      %v1746 = vpop.f32.mrb[0].mxu0
      %1747 = vmatprep.mubr.f32.mxu0 0.0
      %1748 = vmatmul.mubr.f32.gmra.mrb[0].mxu0 %v1618
      %v1749 = vpop.f32.mrb[0].mxu0
      %v1750 = vadd.f32 0.0, %v1749
      %v1751 = vpop.f32.mrb[0].mxu0
      %1752 = vmatprep.mubr.f32.mxu0 0.0
      %1753 = vmatmul.mubr.f32.gmra.mrb[0].mxu0 %v1621
      %v1754 = vpop.f32.mrb[0].mxu0
      %v1755 = vadd.f32 0.0, %v1754
      %v1756 = vpop.f32.mrb[0].mxu0
      %1757 = vmatprep.mubr.f32.mxu0 0.0
      %1758 = vmatmul.mubr.f32.gmra.mrb[0].mxu0 %v1624
      %v1759 = vpop.f32.mrb[0].mxu0
      %v1760 = vadd.f32 0.0, %v1759
      %v1761 = vpop.f32.mrb[0].mxu0
      %1762 = vmatprep.mubr.f32.mxu0 0.0
      %1763 = vmatmul.mubr.f32.gmra.mrb[0].mxu0 %v1627
      %v1764 = vpop.f32.mrb[0].mxu0
      %v1765 = vadd.f32 0.0, %v1764
      %v1766 = vpop.f32.mrb[0].mxu0
      %1767 = vmatprep.mubr.f32.mxu0 0.0
      %1768 = vmatmul.mubr.f32.gmra.mrb[0].mxu0 %v1630
      %v1769 = vpop.f32.mrb[0].mxu0
      %v1770 = vadd.f32 0.0, %v1769
      %v1771 = vpop.f32.mrb[0].mxu0
      %1772 = vmatprep.mubr.f32.mxu0 0.0
      %1773 = vmatmul.mubr.f32.gmra.mrb[0].mxu0 %v1633
      %v1774 = vpop.f32.mrb[0].mxu0
      %v1775 = vadd.f32 0.0, %v1774
      %v1776 = vpop.f32.mrb[0].mxu0
      %1777 = vmatprep.mubr.f32.mxu0 0.0
      %1778 = vmatmul.mubr.f32.gmra.mrb[0].mxu0 %v1636
      %v1779 = vpop.f32.mrb[0].mxu0
      %v1780 = vadd.f32 0.0, %v1779
      %v1781 = vpop.f32.mrb[0].mxu0
      %1782 = vmatprep.mubr.f32.mxu0 0.0
      %1783 = vmatmul.mubr.f32.gmra.mrb[0].mxu0 %v1639
      %v1784 = vpop.f32.mrb[0].mxu0
      %v1785 = vadd.f32 0.0, %v1784
      %v1786 = vpop.f32.mrb[0].mxu0
      %1787 = vmatprep.mubr.f32.mxu0 0.0
      %1788 = vmatmul.mubr.f32.gmra.mrb[0].mxu0 %v1642
      %v1789 = vpop.f32.mrb[0].mxu0
      %v1790 = vadd.f32 0.0, %v1789
      %v1791 = vpop.f32.mrb[0].mxu0
      %1792 = vmatprep.mubr.f32.mxu0 0.0
      %1793 = vmatmul.mubr.f32.gmra.mrb[0].mxu0 %v1645
      %v1794 = vpop.f32.mrb[0].mxu0
      %v1795 = vadd.f32 0.0, %v1794
      %v1796 = vpop.f32.mrb[0].mxu0
      %1797 = vmatprep.mubr.f32.mxu0 0.0
      %1798 = vmatmul.mubr.f32.gmra.mrb[0].mxu0 %v1648
      %v1799 = vpop.f32.mrb[0].mxu0
      %v1800 = vadd.f32 0.0, %v1799
      %v1801 = vpop.f32.mrb[0].mxu0
      %1802 = vmatprep.mubr.f32.mxu0 0.0
      %1803 = vmatmul.mubr.f32.gmra.mrb[0].mxu0 %v1651
      %v1804 = vpop.f32.mrb[0].mxu0
      %v1805 = vadd.f32 0.0, %v1804
      %v1806 = vpop.f32.mrb[0].mxu0
      %1807 = vdwg.mxu0
      %v1808 = vadd.f32 %v1485, %v1720
      %v1809 = vadd.f32 %v1490, %v1725
      %v1810 = vadd.f32 %v1495, %v1730
      %v1811 = vadd.f32 %v1500, %v1735
      %v1812 = vadd.f32 %v1505, %v1740
      %v1813 = vadd.f32 %v1510, %v1745
      %v1814 = vadd.f32 %v1515, %v1750
      %v1815 = vadd.f32 %v1520, %v1755
      %v1816 = vadd.f32 %v1525, %v1760
      %v1817 = vadd.f32 %v1530, %v1765
      %v1818 = vadd.f32 %v1535, %v1770
      %v1819 = vadd.f32 %v1540, %v1775
      %v1820 = vadd.f32 %v1545, %v1780
      %v1821 = vadd.f32 %v1550, %v1785
      %v1822 = vadd.f32 %v1555, %v1790
      %v1823 = vadd.f32 %v1560, %v1795
      %v1824 = vadd.f32 %v1565, %v1800
      %v1825 = vadd.f32 %v1570, %v1805
      %v1826 = vld [vmem:[%s2 + $0x250] sm:$0xff]
      %v1827 = vld [vmem:[%s2 + $0x258] sm:$0xff]
      %v1828 = vld [vmem:[%s2 + $0x260] sm:$0xff]
      %v1829 = vld [vmem:[%s2 + $0x268] sm:$0xff]
      %v1830 = vld [vmem:[%s2 + $0x270] sm:$0xff]
      %v1831 = vld [vmem:[%s2 + $0x278] sm:$0xff]
      %v1832 = vld [vmem:[%s2 + $0x280] sm:$0xff]
      %v1833 = vld [vmem:[%s2 + $0x288] sm:$0xff]
      %v1834 = vld [vmem:[%s2 + $0x290] sm:$0xff]
      %v1835 = vld [vmem:[%s2 + $0x298] sm:$0xff]
      %v1836 = vld [vmem:[%s2 + $0x2a0] sm:$0xff]
      %v1837 = vld [vmem:[%s2 + $0x2a8] sm:$0xff]
      %v1838 = vld [vmem:[%s2 + $0x2b0] sm:$0xff]
      %v1839 = vld [vmem:[%s2 + $0x2b8] sm:$0xff]
      %v1840 = vld [vmem:[%s2 + $0x2c0] sm:$0xff]
      %v1841 = vld [vmem:[%s2 + $0x2c8] sm:$0xff]
      %v1842 = vld [vmem:[%s2 + $0x2d0] sm:$0xff]
      %v1843 = vld [vmem:[%s2 + $0x2d8] sm:$0xff]
      %v1844 = vld [vmem:[%s2 + $0x2e0] sm:$0xff]
      %v1845 = vld [vmem:[%s2 + $0x2f0] sm:$0xff]
      %v1846 = vld [vmem:[%s2 + $0x300] sm:$0xff]
      %v1847 = vld [vmem:[%s2 + $0x310] sm:$0xff]
      %v1848 = vld [vmem:[%s2 + $0x320] sm:$0xff]
      %v1849 = vld [vmem:[%s2 + $0x330] sm:$0xff]
      %v1850 = vld [vmem:[%s2 + $0x340] sm:$0xff]
      %v1851 = vld [vmem:[%s2 + $0x350] sm:$0xff]
      %v1852 = vld [vmem:[%s2 + $0x360] sm:$0xff]
      %vm1853 = vcmask 97280
      %v1855 = vsel %vm1853, %v1827, 0
      %v1858 = vsel %vm1853, %v1829, 0
      %v1861 = vsel %vm1853, %v1831, 0
      %v1864 = vsel %vm1853, %v1833, 0
      %v1867 = vsel %vm1853, %v1835, 0
      %v1870 = vsel %vm1853, %v1837, 0
      %v1873 = vsel %vm1853, %v1839, 0
      %v1876 = vsel %vm1853, %v1841, 0
      %v1879 = vsel %vm1853, %v1843, 0
      %vm1881 = vcmask 1043456
      %v1883 = vsel %vm1881, %v1825, 0
      %1885 = vmatprep.subr.mxu0 0.0
      %1886 = vmatpush1.msra.mxu0 %v1808
      %1887 = vmatprep.subr.mxu0 0.0
      %1888 = vmatpush1.msra.mxu0 %v1809
      %1889 = vmatprep.subr.mxu0 0.0
      %1890 = vmatpush1.msra.mxu0 %v1810
      %1891 = vmatprep.subr.mxu0 0.0
      %1892 = vmatpush1.msra.mxu0 %v1811
      %1893 = vmatprep.subr.mxu0 0.0
      %1894 = vmatpush1.msra.mxu0 %v1812
      %1895 = vmatprep.subr.mxu0 0.0
      %1896 = vmatpush1.msra.mxu0 %v1813
      %1897 = vmatprep.subr.mxu0 0.0
      %1898 = vmatpush1.msra.mxu0 %v1814
      %1899 = vmatprep.subr.mxu0 0.0
      %1900 = vmatpush1.msra.mxu0 %v1815
      %1901 = vmatprep.subr.mxu0 0.0
      %1902 = vmatpush1.msra.mxu0 %v1816
      %1903 = vmatprep.subr.mxu0 0.0
      %1904 = vmatpush1.msra.mxu0 %v1817
      %1905 = vmatprep.subr.mxu0 0.0
      %1906 = vmatpush1.msra.mxu0 %v1818
      %1907 = vmatprep.subr.mxu0 0.0
      %1908 = vmatpush1.msra.mxu0 %v1819
      %1909 = vmatprep.subr.mxu0 0.0
      %1910 = vmatpush1.msra.mxu0 %v1820
      %1911 = vmatprep.subr.mxu0 0.0
      %1912 = vmatpush1.msra.mxu0 %v1821
      %1913 = vmatprep.subr.mxu0 0.0
      %1914 = vmatpush1.msra.mxu0 %v1822
      %1915 = vmatprep.subr.mxu0 0.0
      %1916 = vmatpush1.msra.mxu0 %v1823
      %1917 = vmatprep.subr.mxu0 0.0
      %1918 = vmatpush1.msra.mxu0 %v1824
      %1919 = vmatprep.subr.mxu0 0.0
      %1920 = vmatpush1.msra.mxu0 %v1883
      %1921 = vmatprep.subr.mxu0 0.0
      %1922 = vmatpush1.msra.mxu0 0.0
      %1923 = vmatprep.subr.mxu0 0.0
      %1924 = vmatpush1.msra.mxu0 0.0
      %1925 = vmatprep.subr.mxu0 0.0
      %1926 = vmatpush1.msra.mxu0 0.0
      %1927 = vmatprep.subr.mxu0 0.0
      %1928 = vmatpush1.msra.mxu0 0.0
      %1929 = vmatprep.subr.mxu0 0.0
      %1930 = vmatpush1.msra.mxu0 0.0
      %1931 = vmatprep.subr.mxu0 0.0
      %1932 = vmatpush1.msra.mxu0 0.0
      %1933 = vmatprep.subr.mxu0 0.0
      %1934 = vmatpush1.msra.mxu0 0.0
      %1935 = vmatprep.subr.mxu0 0.0
      %1936 = vmatpush1.msra.mxu0 0.0
      %1937 = vmatprep.subr.mxu0 0.0
      %1938 = vmatpush1.msra.mxu0 0.0
      %1939 = vmatprep.subr.mxu0 0.0
      %1940 = vmatpush1.msra.mxu0 0.0
      %1941 = vmatprep.subr.mxu0 0.0
      %1942 = vmatpush1.msra.mxu0 0.0
      %1943 = vmatprep.subr.mxu0 0.0
      %1944 = vmatpush1.msra.mxu0 0.0
      %1945 = vmatprep.subr.mxu0 0.0
      %1946 = vmatpush1.msra.mxu0 0.0
      %1947 = vmatprep.subr.mxu0 0.0
      %1948 = vmatpush1.msra.mxu0 0.0
      %1949 = vmatprep.mubr.f32.mxu0 %v1855
      %1950 = vmatmul.mubr.f32.gmra.mrb[0].mxu0 %v1826
      %v1951 = vpop.f32.mrb[0].mxu0
      %v1952 = vadd.f32 %v1844, %v1951
      %v1953 = vpop.f32.mrb[0].mxu0
      %1954 = vmatprep.mubr.f32.mxu0 %v1858
      %1955 = vmatmul.mubr.f32.gmra.mrb[0].mxu0 %v1828
      %v1956 = vpop.f32.mrb[0].mxu0
      %v1957 = vadd.f32 %v1845, %v1956
      %v1958 = vpop.f32.mrb[0].mxu0
      %1959 = vmatprep.mubr.f32.mxu0 %v1861
      %1960 = vmatmul.mubr.f32.gmra.mrb[0].mxu0 %v1830
      %v1961 = vpop.f32.mrb[0].mxu0
      %v1962 = vadd.f32 %v1846, %v1961
      %v1963 = vpop.f32.mrb[0].mxu0
      %1964 = vmatprep.mubr.f32.mxu0 %v1864
      %1965 = vmatmul.mubr.f32.gmra.mrb[0].mxu0 %v1832
      %v1966 = vpop.f32.mrb[0].mxu0
      %v1967 = vadd.f32 %v1847, %v1966
      %v1968 = vpop.f32.mrb[0].mxu0
      %1969 = vmatprep.mubr.f32.mxu0 %v1867
      %1970 = vmatmul.mubr.f32.gmra.mrb[0].mxu0 %v1834
      %v1971 = vpop.f32.mrb[0].mxu0
      %v1972 = vadd.f32 %v1848, %v1971
      %v1973 = vpop.f32.mrb[0].mxu0
      %1974 = vmatprep.mubr.f32.mxu0 %v1870
      %1975 = vmatmul.mubr.f32.gmra.mrb[0].mxu0 %v1836
      %v1976 = vpop.f32.mrb[0].mxu0
      %v1977 = vadd.f32 %v1849, %v1976
      %v1978 = vpop.f32.mrb[0].mxu0
      %1979 = vmatprep.mubr.f32.mxu0 %v1873
      %1980 = vmatmul.mubr.f32.gmra.mrb[0].mxu0 %v1838
      %v1981 = vpop.f32.mrb[0].mxu0
      %v1982 = vadd.f32 %v1850, %v1981
      %v1983 = vpop.f32.mrb[0].mxu0
      %1984 = vmatprep.mubr.f32.mxu0 %v1876
      %1985 = vmatmul.mubr.f32.gmra.mrb[0].mxu0 %v1840
      %v1986 = vpop.f32.mrb[0].mxu0
      %v1987 = vadd.f32 %v1851, %v1986
      %v1988 = vpop.f32.mrb[0].mxu0
      %1989 = vmatprep.mubr.f32.mxu0 %v1879
      %1990 = vmatmul.mubr.f32.gmra.mrb[0].mxu0 %v1842
      %v1991 = vpop.f32.mrb[0].mxu0
      %v1992 = vadd.f32 %v1852, %v1991
      %v1993 = vpop.f32.mrb[0].mxu0
      %1994 = vdwg.mxu0
      %vm1995 = vcmask 171008
      %1996 = vst.msk [vmem:[#allocation5] sm:$0xff] %vm1995, %v1952
      %1997 = vst.msk [vmem:[#allocation5 + $0x8] sm:$0xff] %vm1995, %v1957
      %1998 = vst.msk [vmem:[#allocation5 + $0x10] sm:$0xff] %vm1995, %v1962
      %1999 = vst.msk [vmem:[#allocation5 + $0x18] sm:$0xff] %vm1995, %v1967
      %2000 = vst.msk [vmem:[#allocation5 + $0x20] sm:$0xff] %vm1995, %v1972
      %2001 = vst.msk [vmem:[#allocation5 + $0x28] sm:$0xff] %vm1995, %v1977
      %2002 = vst.msk [vmem:[#allocation5 + $0x30] sm:$0xff] %vm1995, %v1982
      %2003 = vst.msk [vmem:[#allocation5 + $0x38] sm:$0xff] %vm1995, %v1987
      %2004 = vst.msk [vmem:[#allocation5 + $0x40] sm:$0xff] %vm1995, %v1992
      %2005 = vst.msk [vmem:[#allocation4] sm:$0xff] %vm1995, 0.0
      %v2006 = vmax.f32 %v1952, 0.0
      %v2007 = vmax.f32 %v1957, 0.0
      %v2008 = vmax.f32 %v1962, 0.0
      %v2009 = vmax.f32 %v1967, 0.0
      %v2010 = vmax.f32 %v1972, 0.0
      %v2011 = vmax.f32 %v1977, 0.0
      %v2012 = vmax.f32 %v1982, 0.0
      %v2013 = vmax.f32 %v1987, 0.0
      %v2014 = vmax.f32 %v1992, 0.0
      %2015 = vst.msk [vmem:[#allocation4 + $0x8] sm:$0xff] %vm1995, %v2006
      %2016 = vst.msk [vmem:[#allocation4 + $0x10] sm:$0xff] %vm1995, %v2007
      %2017 = vst.msk [vmem:[#allocation4 + $0x18] sm:$0xff] %vm1995, %v2008
      %2018 = vst.msk [vmem:[#allocation4 + $0x20] sm:$0xff] %vm1995, %v2009
      %2019 = vst.msk [vmem:[#allocation4 + $0x28] sm:$0xff] %vm1995, %v2010
      %2020 = vst.msk [vmem:[#allocation4 + $0x30] sm:$0xff] %vm1995, %v2011
      %2021 = vst.msk [vmem:[#allocation4 + $0x38] sm:$0xff] %vm1995, %v2012
      %2022 = vst.msk [vmem:[#allocation4 + $0x40] sm:$0xff] %vm1995, %v2013
      %2023 = vst.msk [vmem:[#allocation4 + $0x48] sm:$0xff] %vm1995, %v2014
      %v2024 = vld [vmem:[#allocation4 + $0x7] sm:$0xff]
      %v2025 = vld [vmem:[#allocation4 + $0xf] sm:$0xff]
      %v2026 = vld [vmem:[#allocation4 + $0x17] sm:$0xff]
      %v2027 = vld [vmem:[#allocation4 + $0x1f] sm:$0xff]
      %v2028 = vld [vmem:[#allocation4 + $0x27] sm:$0xff]
      %v2029 = vld [vmem:[#allocation4 + $0x2f] sm:$0xff]
      %v2030 = vld [vmem:[#allocation4 + $0x37] sm:$0xff]
      %v2031 = vld [vmem:[#allocation4 + $0x3f] sm:$0xff]
      %v2032 = vld [vmem:[#allocation4 + $0x47] sm:$0x3f]
      %v2033 = vld [vmem:[%s2 + $0x370] sm:$0xff]
      %v2034 = vld [vmem:[%s2 + $0x380] sm:$0xff]
      %v2035 = vld [vmem:[%s2 + $0x390] sm:$0x1f]
      %v2036 = vld [vmem:[#allocation4 + $0x8] sm:$0xff]
      %v2037 = vld [vmem:[#allocation4 + $0x10] sm:$0xff]
      %v2038 = vld [vmem:[#allocation4 + $0x18] sm:$0xff]
      %v2039 = vld [vmem:[#allocation4 + $0x20] sm:$0xff]
      %v2040 = vld [vmem:[#allocation4 + $0x28] sm:$0xff]
      %v2041 = vld [vmem:[#allocation4 + $0x30] sm:$0xff]
      %v2042 = vld [vmem:[#allocation4 + $0x38] sm:$0xff]
      %v2043 = vld [vmem:[#allocation4 + $0x40] sm:$0xff]
      %v2044 = vld [vmem:[#allocation4 + $0x48] sm:$0x3f]
      %v2045 = vld [vmem:[%s2 + $0x400] sm:$0xff]
      %v2046 = vld [vmem:[%s2 + $0x410] sm:$0xff]
      %v2047 = vld [vmem:[%s2 + $0x420] sm:$0x1f]
      %v2049 = vsel %vm1995, %v2036, 0
      %v2052 = vsel %vm1995, %v2037, 0
      %v2055 = vsel %vm1995, %v2038, 0
      %v2058 = vsel %vm1995, %v2039, 0
      %v2061 = vsel %vm1995, %v2040, 0
      %v2064 = vsel %vm1995, %v2041, 0
      %v2067 = vsel %vm1995, %v2042, 0
      %v2070 = vsel %vm1995, %v2043, 0
      %v2073 = vsel %vm1995, %v2044, 0
      %vm2075 = vcmask 1044480
      %v2077 = vsel %vm2075, %v2047, 0
      %2079 = vmatprep.subr.mxu0 0.0
      %2080 = vmatpush1.msra.mxu0 %v2045
      %2081 = vmatprep.subr.mxu0 0.0
      %2082 = vmatpush1.msra.mxu0 %v2046
      %2083 = vmatprep.subr.mxu0 0.0
      %2084 = vmatpush1.msra.mxu0 %v2077
      %2085 = vmatprep.subr.mxu0 0.0
      %2086 = vmatpush1.msra.mxu0 0.0
      %2087 = vmatprep.subr.mxu0 0.0
      %2088 = vmatpush1.msra.mxu0 0.0
      %2089 = vmatprep.subr.mxu0 0.0
      %2090 = vmatpush1.msra.mxu0 0.0
      %2091 = vmatprep.subr.mxu0 0.0
      %2092 = vmatpush1.msra.mxu0 0.0
      %2093 = vmatprep.subr.mxu0 0.0
      %2094 = vmatpush1.msra.mxu0 0.0
      %2095 = vmatprep.subr.mxu0 0.0
      %2096 = vmatpush1.msra.mxu0 0.0
      %2097 = vmatprep.subr.mxu0 0.0
      %2098 = vmatpush1.msra.mxu0 0.0
      %2099 = vmatprep.subr.mxu0 0.0
      %2100 = vmatpush1.msra.mxu0 0.0
      %2101 = vmatprep.subr.mxu0 0.0
      %2102 = vmatpush1.msra.mxu0 0.0
      %2103 = vmatprep.subr.mxu0 0.0
      %2104 = vmatpush1.msra.mxu0 0.0
      %2105 = vmatprep.subr.mxu0 0.0
      %2106 = vmatpush1.msra.mxu0 0.0
      %2107 = vmatprep.subr.mxu0 0.0
      %2108 = vmatpush1.msra.mxu0 0.0
      %2109 = vmatprep.subr.mxu0 0.0
      %2110 = vmatpush1.msra.mxu0 0.0
      %2111 = vmatprep.subr.mxu0 0.0
      %2112 = vmatpush1.msra.mxu0 0.0
      %2113 = vmatprep.subr.mxu0 0.0
      %2114 = vmatpush1.msra.mxu0 0.0
      %2115 = vmatprep.subr.mxu0 0.0
      %2116 = vmatpush1.msra.mxu0 0.0
      %2117 = vmatprep.subr.mxu0 0.0
      %2118 = vmatpush1.msra.mxu0 0.0
      %2119 = vmatprep.subr.mxu0 0.0
      %2120 = vmatpush1.msra.mxu0 0.0
      %2121 = vmatprep.subr.mxu0 0.0
      %2122 = vmatpush1.msra.mxu0 0.0
      %2123 = vmatprep.subr.mxu0 0.0
      %2124 = vmatpush1.msra.mxu0 0.0
      %2125 = vmatprep.subr.mxu0 0.0
      %2126 = vmatpush1.msra.mxu0 0.0
      %2127 = vmatprep.subr.mxu0 0.0
      %2128 = vmatpush1.msra.mxu0 0.0
      %2129 = vmatprep.subr.mxu0 0.0
      %2130 = vmatpush1.msra.mxu0 0.0
      %2131 = vmatprep.subr.mxu0 0.0
      %2132 = vmatpush1.msra.mxu0 0.0
      %2133 = vmatprep.subr.mxu0 0.0
      %2134 = vmatpush1.msra.mxu0 0.0
      %2135 = vmatprep.subr.mxu0 0.0
      %2136 = vmatpush1.msra.mxu0 0.0
      %2137 = vmatprep.subr.mxu0 0.0
      %2138 = vmatpush1.msra.mxu0 0.0
      %2139 = vmatprep.subr.mxu0 0.0
      %2140 = vmatpush1.msra.mxu0 0.0
      %2141 = vmatprep.subr.mxu0 0.0
      %2142 = vmatpush1.msra.mxu0 0.0
      %2143 = vmatprep.mubr.f32.mxu0 0.0
      %2144 = vmatmul.mubr.f32.gmra.mrb[0].mxu0 %v2049
      %v2145 = vpop.f32.mrb[0].mxu0
      %v2146 = vadd.f32 0.0, %v2145
      %v2147 = vpop.f32.mrb[0].mxu0
      %2148 = vmatprep.mubr.f32.mxu0 0.0
      %2149 = vmatmul.mubr.f32.gmra.mrb[0].mxu0 %v2052
      %v2150 = vpop.f32.mrb[0].mxu0
      %v2151 = vadd.f32 0.0, %v2150
      %v2152 = vpop.f32.mrb[0].mxu0
      %2153 = vmatprep.mubr.f32.mxu0 0.0
      %2154 = vmatmul.mubr.f32.gmra.mrb[0].mxu0 %v2055
      %v2155 = vpop.f32.mrb[0].mxu0
      %v2156 = vadd.f32 0.0, %v2155
      %v2157 = vpop.f32.mrb[0].mxu0
      %2158 = vmatprep.mubr.f32.mxu0 0.0
      %2159 = vmatmul.mubr.f32.gmra.mrb[0].mxu0 %v2058
      %v2160 = vpop.f32.mrb[0].mxu0
      %v2161 = vadd.f32 0.0, %v2160
      %v2162 = vpop.f32.mrb[0].mxu0
      %2163 = vmatprep.mubr.f32.mxu0 0.0
      %2164 = vmatmul.mubr.f32.gmra.mrb[0].mxu0 %v2061
      %v2165 = vpop.f32.mrb[0].mxu0
      %v2166 = vadd.f32 0.0, %v2165
      %v2167 = vpop.f32.mrb[0].mxu0
      %2168 = vmatprep.mubr.f32.mxu0 0.0
      %2169 = vmatmul.mubr.f32.gmra.mrb[0].mxu0 %v2064
      %v2170 = vpop.f32.mrb[0].mxu0
      %v2171 = vadd.f32 0.0, %v2170
      %v2172 = vpop.f32.mrb[0].mxu0
      %2173 = vmatprep.mubr.f32.mxu0 0.0
      %2174 = vmatmul.mubr.f32.gmra.mrb[0].mxu0 %v2067
      %v2175 = vpop.f32.mrb[0].mxu0
      %v2176 = vadd.f32 0.0, %v2175
      %v2177 = vpop.f32.mrb[0].mxu0
      %2178 = vmatprep.mubr.f32.mxu0 0.0
      %2179 = vmatmul.mubr.f32.gmra.mrb[0].mxu0 %v2070
      %v2180 = vpop.f32.mrb[0].mxu0
      %v2181 = vadd.f32 0.0, %v2180
      %v2182 = vpop.f32.mrb[0].mxu0
      %2183 = vmatprep.mubr.f32.mxu0 0.0
      %2184 = vmatmul.mubr.f32.gmra.mrb[0].mxu0 %v2073
      %v2185 = vpop.f32.mrb[0].mxu0
      %v2186 = vadd.f32 0.0, %v2185
      %v2187 = vpop.f32.mrb[0].mxu0
      %2188 = vdwg.mxu0
      %v2190 = vsel %vm1995, %v2024, 0
      %v2193 = vsel %vm1995, %v2025, 0
      %v2196 = vsel %vm1995, %v2026, 0
      %v2199 = vsel %vm1995, %v2027, 0
      %v2202 = vsel %vm1995, %v2028, 0
      %v2205 = vsel %vm1995, %v2029, 0
      %v2208 = vsel %vm1995, %v2030, 0
      %v2211 = vsel %vm1995, %v2031, 0
      %v2214 = vsel %vm1995, %v2032, 0
      %v2217 = vsel %vm2075, %v2035, 0
      %2219 = vmatprep.subr.mxu0 0.0
      %2220 = vmatpush1.msra.mxu0 %v2033
      %2221 = vmatprep.subr.mxu0 0.0
      %2222 = vmatpush1.msra.mxu0 %v2034
      %2223 = vmatprep.subr.mxu0 0.0
      %2224 = vmatpush1.msra.mxu0 %v2217
      %2225 = vmatprep.subr.mxu0 0.0
      %2226 = vmatpush1.msra.mxu0 0.0
      %2227 = vmatprep.subr.mxu0 0.0
      %2228 = vmatpush1.msra.mxu0 0.0
      %2229 = vmatprep.subr.mxu0 0.0
      %2230 = vmatpush1.msra.mxu0 0.0
      %2231 = vmatprep.subr.mxu0 0.0
      %2232 = vmatpush1.msra.mxu0 0.0
      %2233 = vmatprep.subr.mxu0 0.0
      %2234 = vmatpush1.msra.mxu0 0.0
      %2235 = vmatprep.subr.mxu0 0.0
      %2236 = vmatpush1.msra.mxu0 0.0
      %2237 = vmatprep.subr.mxu0 0.0
      %2238 = vmatpush1.msra.mxu0 0.0
      %2239 = vmatprep.subr.mxu0 0.0
      %2240 = vmatpush1.msra.mxu0 0.0
      %2241 = vmatprep.subr.mxu0 0.0
      %2242 = vmatpush1.msra.mxu0 0.0
      %2243 = vmatprep.subr.mxu0 0.0
      %2244 = vmatpush1.msra.mxu0 0.0
      %2245 = vmatprep.subr.mxu0 0.0
      %2246 = vmatpush1.msra.mxu0 0.0
      %2247 = vmatprep.subr.mxu0 0.0
      %2248 = vmatpush1.msra.mxu0 0.0
      %2249 = vmatprep.subr.mxu0 0.0
      %2250 = vmatpush1.msra.mxu0 0.0
      %2251 = vmatprep.subr.mxu0 0.0
      %2252 = vmatpush1.msra.mxu0 0.0
      %2253 = vmatprep.subr.mxu0 0.0
      %2254 = vmatpush1.msra.mxu0 0.0
      %2255 = vmatprep.subr.mxu0 0.0
      %2256 = vmatpush1.msra.mxu0 0.0
      %2257 = vmatprep.subr.mxu0 0.0
      %2258 = vmatpush1.msra.mxu0 0.0
      %2259 = vmatprep.subr.mxu0 0.0
      %2260 = vmatpush1.msra.mxu0 0.0
      %2261 = vmatprep.subr.mxu0 0.0
      %2262 = vmatpush1.msra.mxu0 0.0
      %2263 = vmatprep.subr.mxu0 0.0
      %2264 = vmatpush1.msra.mxu0 0.0
      %2265 = vmatprep.subr.mxu0 0.0
      %2266 = vmatpush1.msra.mxu0 0.0
      %2267 = vmatprep.subr.mxu0 0.0
      %2268 = vmatpush1.msra.mxu0 0.0
      %2269 = vmatprep.subr.mxu0 0.0
      %2270 = vmatpush1.msra.mxu0 0.0
      %2271 = vmatprep.subr.mxu0 0.0
      %2272 = vmatpush1.msra.mxu0 0.0
      %2273 = vmatprep.subr.mxu0 0.0
      %2274 = vmatpush1.msra.mxu0 0.0
      %2275 = vmatprep.subr.mxu0 0.0
      %2276 = vmatpush1.msra.mxu0 0.0
      %2277 = vmatprep.subr.mxu0 0.0
      %2278 = vmatpush1.msra.mxu0 0.0
      %2279 = vmatprep.subr.mxu0 0.0
      %2280 = vmatpush1.msra.mxu0 0.0
      %2281 = vmatprep.subr.mxu0 0.0
      %2282 = vmatpush1.msra.mxu0 0.0
      %2283 = vmatprep.mubr.f32.mxu0 0.0
      %2284 = vmatmul.mubr.f32.gmra.mrb[0].mxu0 %v2190
      %v2285 = vpop.f32.mrb[0].mxu0
      %v2286 = vadd.f32 %v2146, %v2285
      %v2287 = vpop.f32.mrb[0].mxu0
      %2288 = vmatprep.mubr.f32.mxu0 0.0
      %2289 = vmatmul.mubr.f32.gmra.mrb[0].mxu0 %v2193
      %v2290 = vpop.f32.mrb[0].mxu0
      %v2291 = vadd.f32 %v2151, %v2290
      %v2292 = vpop.f32.mrb[0].mxu0
      %2293 = vmatprep.mubr.f32.mxu0 0.0
      %2294 = vmatmul.mubr.f32.gmra.mrb[0].mxu0 %v2196
      %v2295 = vpop.f32.mrb[0].mxu0
      %v2296 = vadd.f32 %v2156, %v2295
      %v2297 = vpop.f32.mrb[0].mxu0
      %2298 = vmatprep.mubr.f32.mxu0 0.0
      %2299 = vmatmul.mubr.f32.gmra.mrb[0].mxu0 %v2199
      %v2300 = vpop.f32.mrb[0].mxu0
      %v2301 = vadd.f32 %v2161, %v2300
      %v2302 = vpop.f32.mrb[0].mxu0
      %2303 = vmatprep.mubr.f32.mxu0 0.0
      %2304 = vmatmul.mubr.f32.gmra.mrb[0].mxu0 %v2202
      %v2305 = vpop.f32.mrb[0].mxu0
      %v2306 = vadd.f32 %v2166, %v2305
      %v2307 = vpop.f32.mrb[0].mxu0
      %2308 = vmatprep.mubr.f32.mxu0 0.0
      %2309 = vmatmul.mubr.f32.gmra.mrb[0].mxu0 %v2205
      %v2310 = vpop.f32.mrb[0].mxu0
      %v2311 = vadd.f32 %v2171, %v2310
      %v2312 = vpop.f32.mrb[0].mxu0
      %2313 = vmatprep.mubr.f32.mxu0 0.0
      %2314 = vmatmul.mubr.f32.gmra.mrb[0].mxu0 %v2208
      %v2315 = vpop.f32.mrb[0].mxu0
      %v2316 = vadd.f32 %v2176, %v2315
      %v2317 = vpop.f32.mrb[0].mxu0
      %2318 = vmatprep.mubr.f32.mxu0 0.0
      %2319 = vmatmul.mubr.f32.gmra.mrb[0].mxu0 %v2211
      %v2320 = vpop.f32.mrb[0].mxu0
      %v2321 = vadd.f32 %v2181, %v2320
      %v2322 = vpop.f32.mrb[0].mxu0
      %2323 = vmatprep.mubr.f32.mxu0 0.0
      %2324 = vmatmul.mubr.f32.gmra.mrb[0].mxu0 %v2214
      %v2325 = vpop.f32.mrb[0].mxu0
      %v2326 = vadd.f32 %v2186, %v2325
      %v2327 = vpop.f32.mrb[0].mxu0
      %2328 = vdwg.mxu0
      %v2329 = vld [vmem:[#allocation4 + $0x9] sm:$0xff]
      %v2330 = vld [vmem:[#allocation4 + $0x11] sm:$0xff]
      %v2331 = vld [vmem:[#allocation4 + $0x19] sm:$0xff]
      %v2332 = vld [vmem:[#allocation4 + $0x21] sm:$0xff]
      %v2333 = vld [vmem:[#allocation4 + $0x29] sm:$0xff]
      %v2334 = vld [vmem:[#allocation4 + $0x31] sm:$0xff]
      %v2335 = vld [vmem:[#allocation4 + $0x39] sm:$0xff]
      %v2336 = vld [vmem:[#allocation4 + $0x41] sm:$0xff]
      %v2337 = vld [vmem:[#allocation4 + $0x49] sm:$0x3f]
      %v2338 = vld [vmem:[%s2 + $0x490] sm:$0xff]
      %v2339 = vld [vmem:[%s2 + $0x4a0] sm:$0xff]
      %v2340 = vld [vmem:[%s2 + $0x4b0] sm:$0x1f]
      %v2342 = vsel %vm1995, %v2329, 0
      %v2345 = vsel %vm1995, %v2330, 0
      %v2348 = vsel %vm1995, %v2331, 0
      %v2351 = vsel %vm1995, %v2332, 0
      %v2354 = vsel %vm1995, %v2333, 0
      %v2357 = vsel %vm1995, %v2334, 0
      %v2360 = vsel %vm1995, %v2335, 0
      %v2363 = vsel %vm1995, %v2336, 0
      %v2366 = vsel %vm1995, %v2337, 0
      %v2369 = vsel %vm2075, %v2340, 0
      %2371 = vmatprep.subr.mxu0 0.0
      %2372 = vmatpush1.msra.mxu0 %v2338
      %2373 = vmatprep.subr.mxu0 0.0
      %2374 = vmatpush1.msra.mxu0 %v2339
      %2375 = vmatprep.subr.mxu0 0.0
      %2376 = vmatpush1.msra.mxu0 %v2369
      %2377 = vmatprep.subr.mxu0 0.0
      %2378 = vmatpush1.msra.mxu0 0.0
      %2379 = vmatprep.subr.mxu0 0.0
      %2380 = vmatpush1.msra.mxu0 0.0
      %2381 = vmatprep.subr.mxu0 0.0
      %2382 = vmatpush1.msra.mxu0 0.0
      %2383 = vmatprep.subr.mxu0 0.0
      %2384 = vmatpush1.msra.mxu0 0.0
      %2385 = vmatprep.subr.mxu0 0.0
      %2386 = vmatpush1.msra.mxu0 0.0
      %2387 = vmatprep.subr.mxu0 0.0
      %2388 = vmatpush1.msra.mxu0 0.0
      %2389 = vmatprep.subr.mxu0 0.0
      %2390 = vmatpush1.msra.mxu0 0.0
      %2391 = vmatprep.subr.mxu0 0.0
      %2392 = vmatpush1.msra.mxu0 0.0
      %2393 = vmatprep.subr.mxu0 0.0
      %2394 = vmatpush1.msra.mxu0 0.0
      %2395 = vmatprep.subr.mxu0 0.0
      %2396 = vmatpush1.msra.mxu0 0.0
      %2397 = vmatprep.subr.mxu0 0.0
      %2398 = vmatpush1.msra.mxu0 0.0
      %2399 = vmatprep.subr.mxu0 0.0
      %2400 = vmatpush1.msra.mxu0 0.0
      %2401 = vmatprep.subr.mxu0 0.0
      %2402 = vmatpush1.msra.mxu0 0.0
      %2403 = vmatprep.subr.mxu0 0.0
      %2404 = vmatpush1.msra.mxu0 0.0
      %2405 = vmatprep.subr.mxu0 0.0
      %2406 = vmatpush1.msra.mxu0 0.0
      %2407 = vmatprep.subr.mxu0 0.0
      %2408 = vmatpush1.msra.mxu0 0.0
      %2409 = vmatprep.subr.mxu0 0.0
      %2410 = vmatpush1.msra.mxu0 0.0
      %2411 = vmatprep.subr.mxu0 0.0
      %2412 = vmatpush1.msra.mxu0 0.0
      %2413 = vmatprep.subr.mxu0 0.0
      %2414 = vmatpush1.msra.mxu0 0.0
      %2415 = vmatprep.subr.mxu0 0.0
      %2416 = vmatpush1.msra.mxu0 0.0
      %2417 = vmatprep.subr.mxu0 0.0
      %2418 = vmatpush1.msra.mxu0 0.0
      %2419 = vmatprep.subr.mxu0 0.0
      %2420 = vmatpush1.msra.mxu0 0.0
      %2421 = vmatprep.subr.mxu0 0.0
      %2422 = vmatpush1.msra.mxu0 0.0
      %2423 = vmatprep.subr.mxu0 0.0
      %2424 = vmatpush1.msra.mxu0 0.0
      %2425 = vmatprep.subr.mxu0 0.0
      %2426 = vmatpush1.msra.mxu0 0.0
      %2427 = vmatprep.subr.mxu0 0.0
      %2428 = vmatpush1.msra.mxu0 0.0
      %2429 = vmatprep.subr.mxu0 0.0
      %2430 = vmatpush1.msra.mxu0 0.0
      %2431 = vmatprep.subr.mxu0 0.0
      %2432 = vmatpush1.msra.mxu0 0.0
      %2433 = vmatprep.subr.mxu0 0.0
      %2434 = vmatpush1.msra.mxu0 0.0
      %2435 = vmatprep.mubr.f32.mxu0 0.0
      %2436 = vmatmul.mubr.f32.gmra.mrb[0].mxu0 %v2342
      %v2437 = vpop.f32.mrb[0].mxu0
      %v2438 = vadd.f32 0.0, %v2437
      %v2439 = vpop.f32.mrb[0].mxu0
      %2440 = vmatprep.mubr.f32.mxu0 0.0
      %2441 = vmatmul.mubr.f32.gmra.mrb[0].mxu0 %v2345
      %v2442 = vpop.f32.mrb[0].mxu0
      %v2443 = vadd.f32 0.0, %v2442
      %v2444 = vpop.f32.mrb[0].mxu0
      %2445 = vmatprep.mubr.f32.mxu0 0.0
      %2446 = vmatmul.mubr.f32.gmra.mrb[0].mxu0 %v2348
      %v2447 = vpop.f32.mrb[0].mxu0
      %v2448 = vadd.f32 0.0, %v2447
      %v2449 = vpop.f32.mrb[0].mxu0
      %2450 = vmatprep.mubr.f32.mxu0 0.0
      %2451 = vmatmul.mubr.f32.gmra.mrb[0].mxu0 %v2351
      %v2452 = vpop.f32.mrb[0].mxu0
      %v2453 = vadd.f32 0.0, %v2452
      %v2454 = vpop.f32.mrb[0].mxu0
      %2455 = vmatprep.mubr.f32.mxu0 0.0
      %2456 = vmatmul.mubr.f32.gmra.mrb[0].mxu0 %v2354
      %v2457 = vpop.f32.mrb[0].mxu0
      %v2458 = vadd.f32 0.0, %v2457
      %v2459 = vpop.f32.mrb[0].mxu0
      %2460 = vmatprep.mubr.f32.mxu0 0.0
      %2461 = vmatmul.mubr.f32.gmra.mrb[0].mxu0 %v2357
      %v2462 = vpop.f32.mrb[0].mxu0
      %v2463 = vadd.f32 0.0, %v2462
      %v2464 = vpop.f32.mrb[0].mxu0
      %2465 = vmatprep.mubr.f32.mxu0 0.0
      %2466 = vmatmul.mubr.f32.gmra.mrb[0].mxu0 %v2360
      %v2467 = vpop.f32.mrb[0].mxu0
      %v2468 = vadd.f32 0.0, %v2467
      %v2469 = vpop.f32.mrb[0].mxu0
      %2470 = vmatprep.mubr.f32.mxu0 0.0
      %2471 = vmatmul.mubr.f32.gmra.mrb[0].mxu0 %v2363
      %v2472 = vpop.f32.mrb[0].mxu0
      %v2473 = vadd.f32 0.0, %v2472
      %v2474 = vpop.f32.mrb[0].mxu0
      %2475 = vmatprep.mubr.f32.mxu0 0.0
      %2476 = vmatmul.mubr.f32.gmra.mrb[0].mxu0 %v2366
      %v2477 = vpop.f32.mrb[0].mxu0
      %v2478 = vadd.f32 0.0, %v2477
      %v2479 = vpop.f32.mrb[0].mxu0
      %2480 = vdwg.mxu0
      %v2481 = vadd.f32 %v2286, %v2438
      %v2482 = vadd.f32 %v2291, %v2443
      %v2483 = vadd.f32 %v2296, %v2448
      %v2484 = vadd.f32 %v2301, %v2453
      %v2485 = vadd.f32 %v2306, %v2458
      %v2486 = vadd.f32 %v2311, %v2463
      %v2487 = vadd.f32 %v2316, %v2468
      %v2488 = vadd.f32 %v2321, %v2473
      %v2489 = vadd.f32 %v2326, %v2478
      %v2490 = vld [vmem:[%s2 + $0x520] ss:$0 sm:$0xff]
      %v2491 = vadd.f32 %v2481, %v2490
      %v2492 = vadd.f32 %v2482, %v2490
      %v2493 = vadd.f32 %v2483, %v2490
      %v2494 = vadd.f32 %v2484, %v2490
      %v2495 = vadd.f32 %v2485, %v2490
      %v2496 = vadd.f32 %v2486, %v2490
      %v2497 = vadd.f32 %v2487, %v2490
      %v2498 = vadd.f32 %v2488, %v2490
      %v2499 = vadd.f32 %v2489, %v2490
      %v2500 = vmax.f32 %v2491, 0.0
      %v2501 = vmax.f32 %v2492, 0.0
      %v2502 = vmax.f32 %v2493, 0.0
      %v2503 = vmax.f32 %v2494, 0.0
      %v2504 = vmax.f32 %v2495, 0.0
      %v2505 = vmax.f32 %v2496, 0.0
      %v2506 = vmax.f32 %v2497, 0.0
      %v2507 = vmax.f32 %v2498, 0.0
      %v2508 = vmax.f32 %v2499, 0.0
      %2518 = vrot.lane.b32.xlu0 %v2500, 21
      %v2519 = vpop.permute.xlu0 %2518
      %2520 = vrot.lane.b32.xlu0 %v2501, 21
      %v2521 = vpop.permute.xlu0 %2520
      %2522 = vrot.lane.b32.xlu0 %v2502, 21
      %v2523 = vpop.permute.xlu0 %2522
      %2524 = vrot.lane.b32.xlu0 %v2503, 21
      %v2525 = vpop.permute.xlu0 %2524
      %2526 = vrot.lane.b32.xlu0 %v2504, 21
      %v2527 = vpop.permute.xlu0 %2526
      %2528 = vrot.lane.b32.xlu0 %v2505, 21
      %v2529 = vpop.permute.xlu0 %2528
      %2530 = vrot.lane.b32.xlu0 %v2506, 21
      %v2531 = vpop.permute.xlu0 %2530
      %2532 = vrot.lane.b32.xlu0 %v2507, 21
      %v2533 = vpop.permute.xlu0 %2532
      %2534 = vrot.lane.b32.xlu0 %v2508, 21
      %v2535 = vpop.permute.xlu0 %2534
      %vm2545 = vcmask 343208
      %2546 = vst.msk [vmem:[#allocation5] sm:$0xff] %vm2545, %v2519
      %2547 = vst.msk [vmem:[#allocation5 + $0x8] sm:$0xff] %vm2545, %v2521
      %2548 = vst.msk [vmem:[#allocation5 + $0x10] sm:$0xff] %vm2545, %v2523
      %2549 = vst.msk [vmem:[#allocation5 + $0x18] sm:$0xff] %vm2545, %v2525
      %2550 = vst.msk [vmem:[#allocation5 + $0x20] sm:$0xff] %vm2545, %v2527
      %2551 = vst.msk [vmem:[#allocation5 + $0x28] sm:$0xff] %vm2545, %v2529
      %2552 = vst.msk [vmem:[#allocation5 + $0x30] sm:$0xff] %vm2545, %v2531
      %2553 = vst.msk [vmem:[#allocation5 + $0x38] sm:$0xff] %vm2545, %v2533
      %vm2554 = vcmask 341160
      %2555 = vst.msk [vmem:[#allocation5 + $0x40] sm:$0x3f] %vm2554, %v2535
      %v2556 = vld [vmem:[#allocation5] sm:$0xff]
      %v2557 = vld [vmem:[#allocation5 + $0x8] sm:$0xff]
      %v2558 = vld [vmem:[#allocation5 + $0x10] sm:$0xff]
      %v2559 = vld [vmem:[#allocation5 + $0x18] sm:$0xff]
      %v2560 = vld [vmem:[#allocation5 + $0x20] sm:$0xff]
      %v2561 = vld [vmem:[#allocation5 + $0x28] sm:$0xff]
      %v2562 = vld [vmem:[#allocation5 + $0x30] sm:$0xff]
      %v2563 = vld [vmem:[#allocation5 + $0x38] sm:$0xff]
      %v2564 = vld [vmem:[#allocation5 + $0x40] sm:$0xf]
      %v2565 = vld [vmem:[%s2 + $0x3a0] sm:$0xff]
      %v2566 = vld [vmem:[%s2 + $0x3b0] sm:$0xff]
      %v2567 = vld [vmem:[%s2 + $0x3c0] sm:$0xff]
      %v2568 = vld [vmem:[%s2 + $0x3d0] sm:$0xff]
      %v2569 = vld [vmem:[%s2 + $0x3e0] sm:$0xff]
      %v2570 = vld [vmem:[%s2 + $0x3f0] sm:$0x3]
      %v2571 = vld [vmem:[#allocation5 + $0x1] sm:$0xff]
      %v2572 = vld [vmem:[#allocation5 + $0x9] sm:$0xff]
      %v2573 = vld [vmem:[#allocation5 + $0x11] sm:$0xff]
      %v2574 = vld [vmem:[#allocation5 + $0x19] sm:$0xff]
      %v2575 = vld [vmem:[#allocation5 + $0x21] sm:$0xff]
      %v2576 = vld [vmem:[#allocation5 + $0x29] sm:$0xff]
      %v2577 = vld [vmem:[#allocation5 + $0x31] sm:$0xff]
      %v2578 = vld [vmem:[#allocation5 + $0x39] sm:$0xff]
      %v2579 = vld [vmem:[#allocation5 + $0x41] sm:$0xf]
      %v2580 = vld [vmem:[%s2 + $0x430] sm:$0xff]
      %v2581 = vld [vmem:[%s2 + $0x440] sm:$0xff]
      %v2582 = vld [vmem:[%s2 + $0x450] sm:$0xff]
      %v2583 = vld [vmem:[%s2 + $0x460] sm:$0xff]
      %v2584 = vld [vmem:[%s2 + $0x470] sm:$0xff]
      %v2585 = vld [vmem:[%s2 + $0x480] sm:$0x3]
      %vm2586 = vcmask 343040
      %v2588 = vsel %vm2586, %v2571, 0
      %v2591 = vsel %vm2586, %v2572, 0
      %v2594 = vsel %vm2586, %v2573, 0
      %v2597 = vsel %vm2586, %v2574, 0
      %v2600 = vsel %vm2586, %v2575, 0
      %v2603 = vsel %vm2586, %v2576, 0
      %v2606 = vsel %vm2586, %v2577, 0
      %v2609 = vsel %vm2586, %v2578, 0
      %v2612 = vsel %vm2586, %v2579, 0
      %vm2614 = vcmask 1041408
      %v2616 = vsel %vm2614, %v2585, 0
      %2618 = vmatprep.subr.mxu0 0.0
      %2619 = vmatpush1.msra.mxu0 %v2580
      %2620 = vmatprep.subr.mxu0 0.0
      %2621 = vmatpush1.msra.mxu0 %v2581
      %2622 = vmatprep.subr.mxu0 0.0
      %2623 = vmatpush1.msra.mxu0 %v2582
      %2624 = vmatprep.subr.mxu0 0.0
      %2625 = vmatpush1.msra.mxu0 %v2583
      %2626 = vmatprep.subr.mxu0 0.0
      %2627 = vmatpush1.msra.mxu0 %v2584
      %2628 = vmatprep.subr.mxu0 0.0
      %2629 = vmatpush1.msra.mxu0 %v2616
      %2630 = vmatprep.subr.mxu0 0.0
      %2631 = vmatpush1.msra.mxu0 0.0
      %2632 = vmatprep.subr.mxu0 0.0
      %2633 = vmatpush1.msra.mxu0 0.0
      %2634 = vmatprep.subr.mxu0 0.0
      %2635 = vmatpush1.msra.mxu0 0.0
      %2636 = vmatprep.subr.mxu0 0.0
      %2637 = vmatpush1.msra.mxu0 0.0
      %2638 = vmatprep.subr.mxu0 0.0
      %2639 = vmatpush1.msra.mxu0 0.0
      %2640 = vmatprep.subr.mxu0 0.0
      %2641 = vmatpush1.msra.mxu0 0.0
      %2642 = vmatprep.subr.mxu0 0.0
      %2643 = vmatpush1.msra.mxu0 0.0
      %2644 = vmatprep.subr.mxu0 0.0
      %2645 = vmatpush1.msra.mxu0 0.0
      %2646 = vmatprep.subr.mxu0 0.0
      %2647 = vmatpush1.msra.mxu0 0.0
      %2648 = vmatprep.subr.mxu0 0.0
      %2649 = vmatpush1.msra.mxu0 0.0
      %2650 = vmatprep.subr.mxu0 0.0
      %2651 = vmatpush1.msra.mxu0 0.0
      %2652 = vmatprep.subr.mxu0 0.0
      %2653 = vmatpush1.msra.mxu0 0.0
      %2654 = vmatprep.subr.mxu0 0.0
      %2655 = vmatpush1.msra.mxu0 0.0
      %2656 = vmatprep.subr.mxu0 0.0
      %2657 = vmatpush1.msra.mxu0 0.0
      %2658 = vmatprep.subr.mxu0 0.0
      %2659 = vmatpush1.msra.mxu0 0.0
      %2660 = vmatprep.subr.mxu0 0.0
      %2661 = vmatpush1.msra.mxu0 0.0
      %2662 = vmatprep.subr.mxu0 0.0
      %2663 = vmatpush1.msra.mxu0 0.0
      %2664 = vmatprep.subr.mxu0 0.0
      %2665 = vmatpush1.msra.mxu0 0.0
      %2666 = vmatprep.subr.mxu0 0.0
      %2667 = vmatpush1.msra.mxu0 0.0
      %2668 = vmatprep.subr.mxu0 0.0
      %2669 = vmatpush1.msra.mxu0 0.0
      %2670 = vmatprep.subr.mxu0 0.0
      %2671 = vmatpush1.msra.mxu0 0.0
      %2672 = vmatprep.subr.mxu0 0.0
      %2673 = vmatpush1.msra.mxu0 0.0
      %2674 = vmatprep.subr.mxu0 0.0
      %2675 = vmatpush1.msra.mxu0 0.0
      %2676 = vmatprep.subr.mxu0 0.0
      %2677 = vmatpush1.msra.mxu0 0.0
      %2678 = vmatprep.subr.mxu0 0.0
      %2679 = vmatpush1.msra.mxu0 0.0
      %2680 = vmatprep.subr.mxu0 0.0
      %2681 = vmatpush1.msra.mxu0 0.0
      %2682 = vmatprep.mubr.f32.mxu0 0.0
      %2683 = vmatmul.mubr.f32.gmra.mrb[0].mxu0 %v2588
      %v2684 = vpop.f32.mrb[0].mxu0
      %v2685 = vadd.f32 0.0, %v2684
      %v2686 = vpop.f32.mrb[0].mxu0
      %2687 = vmatprep.mubr.f32.mxu0 0.0
      %2688 = vmatmul.mubr.f32.gmra.mrb[0].mxu0 %v2591
      %v2689 = vpop.f32.mrb[0].mxu0
      %v2690 = vadd.f32 0.0, %v2689
      %v2691 = vpop.f32.mrb[0].mxu0
      %2692 = vmatprep.mubr.f32.mxu0 0.0
      %2693 = vmatmul.mubr.f32.gmra.mrb[0].mxu0 %v2594
      %v2694 = vpop.f32.mrb[0].mxu0
      %v2695 = vadd.f32 0.0, %v2694
      %v2696 = vpop.f32.mrb[0].mxu0
      %2697 = vmatprep.mubr.f32.mxu0 0.0
      %2698 = vmatmul.mubr.f32.gmra.mrb[0].mxu0 %v2597
      %v2699 = vpop.f32.mrb[0].mxu0
      %v2700 = vadd.f32 0.0, %v2699
      %v2701 = vpop.f32.mrb[0].mxu0
      %2702 = vmatprep.mubr.f32.mxu0 0.0
      %2703 = vmatmul.mubr.f32.gmra.mrb[0].mxu0 %v2600
      %v2704 = vpop.f32.mrb[0].mxu0
      %v2705 = vadd.f32 0.0, %v2704
      %v2706 = vpop.f32.mrb[0].mxu0
      %2707 = vmatprep.mubr.f32.mxu0 0.0
      %2708 = vmatmul.mubr.f32.gmra.mrb[0].mxu0 %v2603
      %v2709 = vpop.f32.mrb[0].mxu0
      %v2710 = vadd.f32 0.0, %v2709
      %v2711 = vpop.f32.mrb[0].mxu0
      %2712 = vmatprep.mubr.f32.mxu0 0.0
      %2713 = vmatmul.mubr.f32.gmra.mrb[0].mxu0 %v2606
      %v2714 = vpop.f32.mrb[0].mxu0
      %v2715 = vadd.f32 0.0, %v2714
      %v2716 = vpop.f32.mrb[0].mxu0
      %2717 = vmatprep.mubr.f32.mxu0 0.0
      %2718 = vmatmul.mubr.f32.gmra.mrb[0].mxu0 %v2609
      %v2719 = vpop.f32.mrb[0].mxu0
      %v2720 = vadd.f32 0.0, %v2719
      %v2721 = vpop.f32.mrb[0].mxu0
      %2722 = vmatprep.mubr.f32.mxu0 0.0
      %2723 = vmatmul.mubr.f32.gmra.mrb[0].mxu0 %v2612
      %v2724 = vpop.f32.mrb[0].mxu0
      %v2725 = vadd.f32 0.0, %v2724
      %v2726 = vpop.f32.mrb[0].mxu0
      %2727 = vdwg.mxu0
      %v2729 = vsel %vm2586, %v2556, 0
      %v2732 = vsel %vm2586, %v2557, 0
      %v2735 = vsel %vm2586, %v2558, 0
      %v2738 = vsel %vm2586, %v2559, 0
      %v2741 = vsel %vm2586, %v2560, 0
      %v2744 = vsel %vm2586, %v2561, 0
      %v2747 = vsel %vm2586, %v2562, 0
      %v2750 = vsel %vm2586, %v2563, 0
      %v2753 = vsel %vm2586, %v2564, 0
      %v2756 = vsel %vm2614, %v2570, 0
      %2758 = vmatprep.subr.mxu0 0.0
      %2759 = vmatpush1.msra.mxu0 %v2565
      %2760 = vmatprep.subr.mxu0 0.0
      %2761 = vmatpush1.msra.mxu0 %v2566
      %2762 = vmatprep.subr.mxu0 0.0
      %2763 = vmatpush1.msra.mxu0 %v2567
      %2764 = vmatprep.subr.mxu0 0.0
      %2765 = vmatpush1.msra.mxu0 %v2568
      %2766 = vmatprep.subr.mxu0 0.0
      %2767 = vmatpush1.msra.mxu0 %v2569
      %2768 = vmatprep.subr.mxu0 0.0
      %2769 = vmatpush1.msra.mxu0 %v2756
      %2770 = vmatprep.subr.mxu0 0.0
      %2771 = vmatpush1.msra.mxu0 0.0
      %2772 = vmatprep.subr.mxu0 0.0
      %2773 = vmatpush1.msra.mxu0 0.0
      %2774 = vmatprep.subr.mxu0 0.0
      %2775 = vmatpush1.msra.mxu0 0.0
      %2776 = vmatprep.subr.mxu0 0.0
      %2777 = vmatpush1.msra.mxu0 0.0
      %2778 = vmatprep.subr.mxu0 0.0
      %2779 = vmatpush1.msra.mxu0 0.0
      %2780 = vmatprep.subr.mxu0 0.0
      %2781 = vmatpush1.msra.mxu0 0.0
      %2782 = vmatprep.subr.mxu0 0.0
      %2783 = vmatpush1.msra.mxu0 0.0
      %2784 = vmatprep.subr.mxu0 0.0
      %2785 = vmatpush1.msra.mxu0 0.0
      %2786 = vmatprep.subr.mxu0 0.0
      %2787 = vmatpush1.msra.mxu0 0.0
      %2788 = vmatprep.subr.mxu0 0.0
      %2789 = vmatpush1.msra.mxu0 0.0
      %2790 = vmatprep.subr.mxu0 0.0
      %2791 = vmatpush1.msra.mxu0 0.0
      %2792 = vmatprep.subr.mxu0 0.0
      %2793 = vmatpush1.msra.mxu0 0.0
      %2794 = vmatprep.subr.mxu0 0.0
      %2795 = vmatpush1.msra.mxu0 0.0
      %2796 = vmatprep.subr.mxu0 0.0
      %2797 = vmatpush1.msra.mxu0 0.0
      %2798 = vmatprep.subr.mxu0 0.0
      %2799 = vmatpush1.msra.mxu0 0.0
      %2800 = vmatprep.subr.mxu0 0.0
      %2801 = vmatpush1.msra.mxu0 0.0
      %2802 = vmatprep.subr.mxu0 0.0
      %2803 = vmatpush1.msra.mxu0 0.0
      %2804 = vmatprep.subr.mxu0 0.0
      %2805 = vmatpush1.msra.mxu0 0.0
      %2806 = vmatprep.subr.mxu0 0.0
      %2807 = vmatpush1.msra.mxu0 0.0
      %2808 = vmatprep.subr.mxu0 0.0
      %2809 = vmatpush1.msra.mxu0 0.0
      %2810 = vmatprep.subr.mxu0 0.0
      %2811 = vmatpush1.msra.mxu0 0.0
      %2812 = vmatprep.subr.mxu0 0.0
      %2813 = vmatpush1.msra.mxu0 0.0
      %2814 = vmatprep.subr.mxu0 0.0
      %2815 = vmatpush1.msra.mxu0 0.0
      %2816 = vmatprep.subr.mxu0 0.0
      %2817 = vmatpush1.msra.mxu0 0.0
      %2818 = vmatprep.subr.mxu0 0.0
      %2819 = vmatpush1.msra.mxu0 0.0
      %2820 = vmatprep.subr.mxu0 0.0
      %2821 = vmatpush1.msra.mxu0 0.0
      %2822 = vmatprep.mubr.f32.mxu0 0.0
      %2823 = vmatmul.mubr.f32.gmra.mrb[0].mxu0 %v2729
      %v2824 = vpop.f32.mrb[0].mxu0
      %v2825 = vadd.f32 %v2685, %v2824
      %v2826 = vpop.f32.mrb[0].mxu0
      %2827 = vmatprep.mubr.f32.mxu0 0.0
      %2828 = vmatmul.mubr.f32.gmra.mrb[0].mxu0 %v2732
      %v2829 = vpop.f32.mrb[0].mxu0
      %v2830 = vadd.f32 %v2690, %v2829
      %v2831 = vpop.f32.mrb[0].mxu0
      %2832 = vmatprep.mubr.f32.mxu0 0.0
      %2833 = vmatmul.mubr.f32.gmra.mrb[0].mxu0 %v2735
      %v2834 = vpop.f32.mrb[0].mxu0
      %v2835 = vadd.f32 %v2695, %v2834
      %v2836 = vpop.f32.mrb[0].mxu0
      %2837 = vmatprep.mubr.f32.mxu0 0.0
      %2838 = vmatmul.mubr.f32.gmra.mrb[0].mxu0 %v2738
      %v2839 = vpop.f32.mrb[0].mxu0
      %v2840 = vadd.f32 %v2700, %v2839
      %v2841 = vpop.f32.mrb[0].mxu0
      %2842 = vmatprep.mubr.f32.mxu0 0.0
      %2843 = vmatmul.mubr.f32.gmra.mrb[0].mxu0 %v2741
      %v2844 = vpop.f32.mrb[0].mxu0
      %v2845 = vadd.f32 %v2705, %v2844
      %v2846 = vpop.f32.mrb[0].mxu0
      %2847 = vmatprep.mubr.f32.mxu0 0.0
      %2848 = vmatmul.mubr.f32.gmra.mrb[0].mxu0 %v2744
      %v2849 = vpop.f32.mrb[0].mxu0
      %v2850 = vadd.f32 %v2710, %v2849
      %v2851 = vpop.f32.mrb[0].mxu0
      %2852 = vmatprep.mubr.f32.mxu0 0.0
      %2853 = vmatmul.mubr.f32.gmra.mrb[0].mxu0 %v2747
      %v2854 = vpop.f32.mrb[0].mxu0
      %v2855 = vadd.f32 %v2715, %v2854
      %v2856 = vpop.f32.mrb[0].mxu0
      %2857 = vmatprep.mubr.f32.mxu0 0.0
      %2858 = vmatmul.mubr.f32.gmra.mrb[0].mxu0 %v2750
      %v2859 = vpop.f32.mrb[0].mxu0
      %v2860 = vadd.f32 %v2720, %v2859
      %v2861 = vpop.f32.mrb[0].mxu0
      %2862 = vmatprep.mubr.f32.mxu0 0.0
      %2863 = vmatmul.mubr.f32.gmra.mrb[0].mxu0 %v2753
      %v2864 = vpop.f32.mrb[0].mxu0
      %v2865 = vadd.f32 %v2725, %v2864
      %v2866 = vpop.f32.mrb[0].mxu0
      %2867 = vdwg.mxu0
      %v2868 = vld [vmem:[#allocation5 + $0x2] sm:$0xff]
      %v2869 = vld [vmem:[#allocation5 + $0xa] sm:$0xff]
      %v2870 = vld [vmem:[#allocation5 + $0x12] sm:$0xff]
      %v2871 = vld [vmem:[#allocation5 + $0x1a] sm:$0xff]
      %v2872 = vld [vmem:[#allocation5 + $0x22] sm:$0xff]
      %v2873 = vld [vmem:[#allocation5 + $0x2a] sm:$0xff]
      %v2874 = vld [vmem:[#allocation5 + $0x32] sm:$0xff]
      %v2875 = vld [vmem:[#allocation5 + $0x3a] sm:$0xff]
      %v2876 = vld [vmem:[#allocation5 + $0x42] sm:$0xf]
      %v2877 = vld [vmem:[%s2 + $0x4c0] sm:$0xff]
      %v2878 = vld [vmem:[%s2 + $0x4d0] sm:$0xff]
      %v2879 = vld [vmem:[%s2 + $0x4e0] sm:$0xff]
      %v2880 = vld [vmem:[%s2 + $0x4f0] sm:$0xff]
      %v2881 = vld [vmem:[%s2 + $0x500] sm:$0xff]
      %v2882 = vld [vmem:[%s2 + $0x510] sm:$0x3]
      %v2884 = vsel %vm2586, %v2868, 0
      %v2887 = vsel %vm2586, %v2869, 0
      %v2890 = vsel %vm2586, %v2870, 0
      %v2893 = vsel %vm2586, %v2871, 0
      %v2896 = vsel %vm2586, %v2872, 0
      %v2899 = vsel %vm2586, %v2873, 0
      %v2902 = vsel %vm2586, %v2874, 0
      %v2905 = vsel %vm2586, %v2875, 0
      %v2908 = vsel %vm2586, %v2876, 0
      %v2911 = vsel %vm2614, %v2882, 0
      %2913 = vmatprep.subr.mxu0 0.0
      %2914 = vmatpush1.msra.mxu0 %v2877
      %2915 = vmatprep.subr.mxu0 0.0
      %2916 = vmatpush1.msra.mxu0 %v2878
      %2917 = vmatprep.subr.mxu0 0.0
      %2918 = vmatpush1.msra.mxu0 %v2879
      %2919 = vmatprep.subr.mxu0 0.0
      %2920 = vmatpush1.msra.mxu0 %v2880
      %2921 = vmatprep.subr.mxu0 0.0
      %2922 = vmatpush1.msra.mxu0 %v2881
      %2923 = vmatprep.subr.mxu0 0.0
      %2924 = vmatpush1.msra.mxu0 %v2911
      %2925 = vmatprep.subr.mxu0 0.0
      %2926 = vmatpush1.msra.mxu0 0.0
      %2927 = vmatprep.subr.mxu0 0.0
      %2928 = vmatpush1.msra.mxu0 0.0
      %2929 = vmatprep.subr.mxu0 0.0
      %2930 = vmatpush1.msra.mxu0 0.0
      %2931 = vmatprep.subr.mxu0 0.0
      %2932 = vmatpush1.msra.mxu0 0.0
      %2933 = vmatprep.subr.mxu0 0.0
      %2934 = vmatpush1.msra.mxu0 0.0
      %2935 = vmatprep.subr.mxu0 0.0
      %2936 = vmatpush1.msra.mxu0 0.0
      %2937 = vmatprep.subr.mxu0 0.0
      %2938 = vmatpush1.msra.mxu0 0.0
      %2939 = vmatprep.subr.mxu0 0.0
      %2940 = vmatpush1.msra.mxu0 0.0
      %2941 = vmatprep.subr.mxu0 0.0
      %2942 = vmatpush1.msra.mxu0 0.0
      %2943 = vmatprep.subr.mxu0 0.0
      %2944 = vmatpush1.msra.mxu0 0.0
      %2945 = vmatprep.subr.mxu0 0.0
      %2946 = vmatpush1.msra.mxu0 0.0
      %2947 = vmatprep.subr.mxu0 0.0
      %2948 = vmatpush1.msra.mxu0 0.0
      %2949 = vmatprep.subr.mxu0 0.0
      %2950 = vmatpush1.msra.mxu0 0.0
      %2951 = vmatprep.subr.mxu0 0.0
      %2952 = vmatpush1.msra.mxu0 0.0
      %2953 = vmatprep.subr.mxu0 0.0
      %2954 = vmatpush1.msra.mxu0 0.0
      %2955 = vmatprep.subr.mxu0 0.0
      %2956 = vmatpush1.msra.mxu0 0.0
      %2957 = vmatprep.subr.mxu0 0.0
      %2958 = vmatpush1.msra.mxu0 0.0
      %2959 = vmatprep.subr.mxu0 0.0
      %2960 = vmatpush1.msra.mxu0 0.0
      %2961 = vmatprep.subr.mxu0 0.0
      %2962 = vmatpush1.msra.mxu0 0.0
      %2963 = vmatprep.subr.mxu0 0.0
      %2964 = vmatpush1.msra.mxu0 0.0
      %2965 = vmatprep.subr.mxu0 0.0
      %2966 = vmatpush1.msra.mxu0 0.0
      %2967 = vmatprep.subr.mxu0 0.0
      %2968 = vmatpush1.msra.mxu0 0.0
      %2969 = vmatprep.subr.mxu0 0.0
      %2970 = vmatpush1.msra.mxu0 0.0
      %2971 = vmatprep.subr.mxu0 0.0
      %2972 = vmatpush1.msra.mxu0 0.0
      %2973 = vmatprep.subr.mxu0 0.0
      %2974 = vmatpush1.msra.mxu0 0.0
      %2975 = vmatprep.subr.mxu0 0.0
      %2976 = vmatpush1.msra.mxu0 0.0
      %2977 = vmatprep.mubr.f32.mxu0 0.0
      %2978 = vmatmul.mubr.f32.gmra.mrb[0].mxu0 %v2884
      %v2979 = vpop.f32.mrb[0].mxu0
      %v2980 = vadd.f32 0.0, %v2979
      %v2981 = vpop.f32.mrb[0].mxu0
      %2982 = vmatprep.mubr.f32.mxu0 0.0
      %2983 = vmatmul.mubr.f32.gmra.mrb[0].mxu0 %v2887
      %v2984 = vpop.f32.mrb[0].mxu0
      %v2985 = vadd.f32 0.0, %v2984
      %v2986 = vpop.f32.mrb[0].mxu0
      %2987 = vmatprep.mubr.f32.mxu0 0.0
      %2988 = vmatmul.mubr.f32.gmra.mrb[0].mxu0 %v2890
      %v2989 = vpop.f32.mrb[0].mxu0
      %v2990 = vadd.f32 0.0, %v2989
      %v2991 = vpop.f32.mrb[0].mxu0
      %2992 = vmatprep.mubr.f32.mxu0 0.0
      %2993 = vmatmul.mubr.f32.gmra.mrb[0].mxu0 %v2893
      %v2994 = vpop.f32.mrb[0].mxu0
      %v2995 = vadd.f32 0.0, %v2994
      %v2996 = vpop.f32.mrb[0].mxu0
      %2997 = vmatprep.mubr.f32.mxu0 0.0
      %2998 = vmatmul.mubr.f32.gmra.mrb[0].mxu0 %v2896
      %v2999 = vpop.f32.mrb[0].mxu0
      %v3000 = vadd.f32 0.0, %v2999
      %v3001 = vpop.f32.mrb[0].mxu0
      %3002 = vmatprep.mubr.f32.mxu0 0.0
      %3003 = vmatmul.mubr.f32.gmra.mrb[0].mxu0 %v2899
      %v3004 = vpop.f32.mrb[0].mxu0
      %v3005 = vadd.f32 0.0, %v3004
      %v3006 = vpop.f32.mrb[0].mxu0
      %3007 = vmatprep.mubr.f32.mxu0 0.0
      %3008 = vmatmul.mubr.f32.gmra.mrb[0].mxu0 %v2902
      %v3009 = vpop.f32.mrb[0].mxu0
      %v3010 = vadd.f32 0.0, %v3009
      %v3011 = vpop.f32.mrb[0].mxu0
      %3012 = vmatprep.mubr.f32.mxu0 0.0
      %3013 = vmatmul.mubr.f32.gmra.mrb[0].mxu0 %v2905
      %v3014 = vpop.f32.mrb[0].mxu0
      %v3015 = vadd.f32 0.0, %v3014
      %v3016 = vpop.f32.mrb[0].mxu0
      %3017 = vmatprep.mubr.f32.mxu0 0.0
      %3018 = vmatmul.mubr.f32.gmra.mrb[0].mxu0 %v2908
      %v3019 = vpop.f32.mrb[0].mxu0
      %v3020 = vadd.f32 0.0, %v3019
      %v3021 = vpop.f32.mrb[0].mxu0
      %3022 = vdwg.mxu0
      %v3023 = vadd.f32 %v2825, %v2980
      %v3024 = vadd.f32 %v2830, %v2985
      %v3025 = vadd.f32 %v2835, %v2990
      %v3026 = vadd.f32 %v2840, %v2995
      %v3027 = vadd.f32 %v2845, %v3000
      %v3028 = vadd.f32 %v2850, %v3005
      %v3029 = vadd.f32 %v2855, %v3010
      %v3030 = vadd.f32 %v2860, %v3015
      %v3031 = vadd.f32 %v2865, %v3020
      %v3032 = vld [vmem:[%s2 + $0x530] sm:$0xff]
      %v3033 = vld [vmem:[%s2 + $0x540] sm:$0xff]
      %v3034 = vld [vmem:[%s2 + $0x550] sm:$0xff]
      %v3035 = vld [vmem:[%s2 + $0x560] ss:$0 sm:$0xff]
      %vm3036 = vcmask 556032
      %v3038 = vsel %vm3036, %v3032, 0
      %v3041 = vsel %vm3036, %v3033, 0
      %v3044 = vsel %vm3036, %v3034, 0
      %v3047 = vsel %vm1881, %v3031, 0
      %3049 = vmatprep.subr.mxu0 0.0
      %3050 = vmatpush1.msra.mxu0 %v3023
      %3051 = vmatprep.subr.mxu0 0.0
      %3052 = vmatpush1.msra.mxu0 %v3024
      %3053 = vmatprep.subr.mxu0 0.0
      %3054 = vmatpush1.msra.mxu0 %v3025
      %3055 = vmatprep.subr.mxu0 0.0
      %3056 = vmatpush1.msra.mxu0 %v3026
      %3057 = vmatprep.subr.mxu0 0.0
      %3058 = vmatpush1.msra.mxu0 %v3027
      %3059 = vmatprep.subr.mxu0 0.0
      %3060 = vmatpush1.msra.mxu0 %v3028
      %3061 = vmatprep.subr.mxu0 0.0
      %3062 = vmatpush1.msra.mxu0 %v3029
      %3063 = vmatprep.subr.mxu0 0.0
      %3064 = vmatpush1.msra.mxu0 %v3030
      %3065 = vmatprep.subr.mxu0 0.0
      %3066 = vmatpush1.msra.mxu0 %v3047
      %3067 = vmatprep.subr.mxu0 0.0
      %3068 = vmatpush1.msra.mxu0 0.0
      %3069 = vmatprep.subr.mxu0 0.0
      %3070 = vmatpush1.msra.mxu0 0.0
      %3071 = vmatprep.subr.mxu0 0.0
      %3072 = vmatpush1.msra.mxu0 0.0
      %3073 = vmatprep.subr.mxu0 0.0
      %3074 = vmatpush1.msra.mxu0 0.0
      %3075 = vmatprep.subr.mxu0 0.0
      %3076 = vmatpush1.msra.mxu0 0.0
      %3077 = vmatprep.subr.mxu0 0.0
      %3078 = vmatpush1.msra.mxu0 0.0
      %3079 = vmatprep.subr.mxu0 0.0
      %3080 = vmatpush1.msra.mxu0 0.0
      %3081 = vmatprep.subr.mxu0 0.0
      %3082 = vmatpush1.msra.mxu0 0.0
      %3083 = vmatprep.subr.mxu0 0.0
      %3084 = vmatpush1.msra.mxu0 0.0
      %3085 = vmatprep.subr.mxu0 0.0
      %3086 = vmatpush1.msra.mxu0 0.0
      %3087 = vmatprep.subr.mxu0 0.0
      %3088 = vmatpush1.msra.mxu0 0.0
      %3089 = vmatprep.subr.mxu0 0.0
      %3090 = vmatpush1.msra.mxu0 0.0
      %3091 = vmatprep.subr.mxu0 0.0
      %3092 = vmatpush1.msra.mxu0 0.0
      %3093 = vmatprep.subr.mxu0 0.0
      %3094 = vmatpush1.msra.mxu0 0.0
      %3095 = vmatprep.subr.mxu0 0.0
      %3096 = vmatpush1.msra.mxu0 0.0
      %3097 = vmatprep.subr.mxu0 0.0
      %3098 = vmatpush1.msra.mxu0 0.0
      %3099 = vmatprep.subr.mxu0 0.0
      %3100 = vmatpush1.msra.mxu0 0.0
      %3101 = vmatprep.subr.mxu0 0.0
      %3102 = vmatpush1.msra.mxu0 0.0
      %3103 = vmatprep.subr.mxu0 0.0
      %3104 = vmatpush1.msra.mxu0 0.0
      %3105 = vmatprep.subr.mxu0 0.0
      %3106 = vmatpush1.msra.mxu0 0.0
      %3107 = vmatprep.subr.mxu0 0.0
      %3108 = vmatpush1.msra.mxu0 0.0
      %3109 = vmatprep.subr.mxu0 0.0
      %3110 = vmatpush1.msra.mxu0 0.0
      %3111 = vmatprep.subr.mxu0 0.0
      %3112 = vmatpush1.msra.mxu0 0.0
      %3113 = vmatprep.mubr.f32.mxu0 0.0
      %3114 = vmatmul.mubr.f32.gmra.mrb[0].mxu0 %v3038
      %v3115 = vpop.f32.mrb[0].mxu0
      %v3116 = vadd.f32 %v3035, %v3115
      %v3117 = vpop.f32.mrb[0].mxu0
      %3118 = vmatprep.mubr.f32.mxu0 0.0
      %3119 = vmatmul.mubr.f32.gmra.mrb[0].mxu0 %v3041
      %v3120 = vpop.f32.mrb[0].mxu0
      %v3121 = vadd.f32 %v3035, %v3120
      %v3122 = vpop.f32.mrb[0].mxu0
      %3123 = vmatprep.mubr.f32.mxu0 0.0
      %3124 = vmatmul.mubr.f32.gmra.mrb[0].mxu0 %v3044
      %v3125 = vpop.f32.mrb[0].mxu0
      %v3126 = vadd.f32 %v3035, %v3125
      %v3127 = vpop.f32.mrb[0].mxu0
      %3128 = vdwg.mxu0
      %v3129 = vld [vmem:[%s183] sm:$0xff]
      %v3130 = vld [vmem:[%s2 + $0x570] sm:$0x3f]
      %v3131 = vld [vmem:[%s2 + $0x580] sm:$0x3f]
      %v3132 = vld [vmem:[%s2 + $0x590] sm:$0xff]
      %v3133 = vld [vmem:[%s2 + $0x5a0] sm:$0xf]
      %v3135 = vsel %vm1853, %v3116, 0
      %v3138 = vsel %vm1881, %v3133, 0
      %3140 = vmatprep.subr.mxu0 0.0
      %3141 = vmatpush1.msra.mxu0 %v3132
      %3142 = vmatprep.subr.mxu0 0.0
      %3143 = vmatpush1.msra.mxu0 %v3138
      %3144 = vmatprep.subr.mxu0 0.0
      %3145 = vmatpush1.msra.mxu0 0.0
      %3146 = vmatprep.subr.mxu0 0.0
      %3147 = vmatpush1.msra.mxu0 0.0
      %3148 = vmatprep.subr.mxu0 0.0
      %3149 = vmatpush1.msra.mxu0 0.0
      %3150 = vmatprep.subr.mxu0 0.0
      %3151 = vmatpush1.msra.mxu0 0.0
      %3152 = vmatprep.subr.mxu0 0.0
      %3153 = vmatpush1.msra.mxu0 0.0
      %3154 = vmatprep.subr.mxu0 0.0
      %3155 = vmatpush1.msra.mxu0 0.0
      %3156 = vmatprep.subr.mxu0 0.0
      %3157 = vmatpush1.msra.mxu0 0.0
      %3158 = vmatprep.subr.mxu0 0.0
      %3159 = vmatpush1.msra.mxu0 0.0
      %3160 = vmatprep.subr.mxu0 0.0
      %3161 = vmatpush1.msra.mxu0 0.0
      %3162 = vmatprep.subr.mxu0 0.0
      %3163 = vmatpush1.msra.mxu0 0.0
      %3164 = vmatprep.subr.mxu0 0.0
      %3165 = vmatpush1.msra.mxu0 0.0
      %3166 = vmatprep.subr.mxu0 0.0
      %3167 = vmatpush1.msra.mxu0 0.0
      %3168 = vmatprep.subr.mxu0 0.0
      %3169 = vmatpush1.msra.mxu0 0.0
      %3170 = vmatprep.subr.mxu0 0.0
      %3171 = vmatpush1.msra.mxu0 0.0
      %3172 = vmatprep.subr.mxu0 0.0
      %3173 = vmatpush1.msra.mxu0 0.0
      %3174 = vmatprep.subr.mxu0 0.0
      %3175 = vmatpush1.msra.mxu0 0.0
      %3176 = vmatprep.subr.mxu0 0.0
      %3177 = vmatpush1.msra.mxu0 0.0
      %3178 = vmatprep.subr.mxu0 0.0
      %3179 = vmatpush1.msra.mxu0 0.0
      %3180 = vmatprep.subr.mxu0 0.0
      %3181 = vmatpush1.msra.mxu0 0.0
      %3182 = vmatprep.subr.mxu0 0.0
      %3183 = vmatpush1.msra.mxu0 0.0
      %3184 = vmatprep.subr.mxu0 0.0
      %3185 = vmatpush1.msra.mxu0 0.0
      %3186 = vmatprep.subr.mxu0 0.0
      %3187 = vmatpush1.msra.mxu0 0.0
      %3188 = vmatprep.subr.mxu0 0.0
      %3189 = vmatpush1.msra.mxu0 0.0
      %3190 = vmatprep.subr.mxu0 0.0
      %3191 = vmatpush1.msra.mxu0 0.0
      %3192 = vmatprep.subr.mxu0 0.0
      %3193 = vmatpush1.msra.mxu0 0.0
      %3194 = vmatprep.subr.mxu0 0.0
      %3195 = vmatpush1.msra.mxu0 0.0
      %3196 = vmatprep.subr.mxu0 0.0
      %3197 = vmatpush1.msra.mxu0 0.0
      %3198 = vmatprep.subr.mxu0 0.0
      %3199 = vmatpush1.msra.mxu0 0.0
      %3200 = vmatprep.subr.mxu0 0.0
      %3201 = vmatpush1.msra.mxu0 0.0
      %3202 = vmatprep.subr.mxu0 0.0
      %3203 = vmatpush1.msra.mxu0 0.0
      %3204 = vmatprep.mubr.f32.mxu0 0.0
      %3205 = vmatmul.mubr.f32.gmra.mrb[0].mxu0 %v3135
      %v3206 = vpop.f32.mrb[0].mxu0
      %v3207 = vadd.f32 0.0, %v3206
      %v3208 = vpop.f32.mrb[0].mxu0
      %3209 = vdwg.mxu0
      %vm3210 = vcmask 48128
      %v3212 = vsel %vm3210, %v3129, 0
      %vm3214 = vcmask 1045504
      %v3216 = vsel %vm3214, %v3130, 0
      %3218 = vmatprep.subr.mxu0 0.0
      %3219 = vmatpush1.msra.mxu0 %v3216
      %3220 = vmatprep.subr.mxu0 0.0
      %3221 = vmatpush1.msra.mxu0 0.0
      %3222 = vmatprep.subr.mxu0 0.0
      %3223 = vmatpush1.msra.mxu0 0.0
      %3224 = vmatprep.subr.mxu0 0.0
      %3225 = vmatpush1.msra.mxu0 0.0
      %3226 = vmatprep.subr.mxu0 0.0
      %3227 = vmatpush1.msra.mxu0 0.0
      %3228 = vmatprep.subr.mxu0 0.0
      %3229 = vmatpush1.msra.mxu0 0.0
      %3230 = vmatprep.subr.mxu0 0.0
      %3231 = vmatpush1.msra.mxu0 0.0
      %3232 = vmatprep.subr.mxu0 0.0
      %3233 = vmatpush1.msra.mxu0 0.0
      %3234 = vmatprep.subr.mxu0 0.0
      %3235 = vmatpush1.msra.mxu0 0.0
      %3236 = vmatprep.subr.mxu0 0.0
      %3237 = vmatpush1.msra.mxu0 0.0
      %3238 = vmatprep.subr.mxu0 0.0
      %3239 = vmatpush1.msra.mxu0 0.0
      %3240 = vmatprep.subr.mxu0 0.0
      %3241 = vmatpush1.msra.mxu0 0.0
      %3242 = vmatprep.subr.mxu0 0.0
      %3243 = vmatpush1.msra.mxu0 0.0
      %3244 = vmatprep.subr.mxu0 0.0
      %3245 = vmatpush1.msra.mxu0 0.0
      %3246 = vmatprep.subr.mxu0 0.0
      %3247 = vmatpush1.msra.mxu0 0.0
      %3248 = vmatprep.subr.mxu0 0.0
      %3249 = vmatpush1.msra.mxu0 0.0
      %3250 = vmatprep.subr.mxu0 0.0
      %3251 = vmatpush1.msra.mxu0 0.0
      %3252 = vmatprep.subr.mxu0 0.0
      %3253 = vmatpush1.msra.mxu0 0.0
      %3254 = vmatprep.subr.mxu0 0.0
      %3255 = vmatpush1.msra.mxu0 0.0
      %3256 = vmatprep.subr.mxu0 0.0
      %3257 = vmatpush1.msra.mxu0 0.0
      %3258 = vmatprep.subr.mxu0 0.0
      %3259 = vmatpush1.msra.mxu0 0.0
      %3260 = vmatprep.subr.mxu0 0.0
      %3261 = vmatpush1.msra.mxu0 0.0
      %3262 = vmatprep.subr.mxu0 0.0
      %3263 = vmatpush1.msra.mxu0 0.0
      %3264 = vmatprep.subr.mxu0 0.0
      %3265 = vmatpush1.msra.mxu0 0.0
      %3266 = vmatprep.subr.mxu0 0.0
      %3267 = vmatpush1.msra.mxu0 0.0
      %3268 = vmatprep.subr.mxu0 0.0
      %3269 = vmatpush1.msra.mxu0 0.0
      %3270 = vmatprep.subr.mxu0 0.0
      %3271 = vmatpush1.msra.mxu0 0.0
      %3272 = vmatprep.subr.mxu0 0.0
      %3273 = vmatpush1.msra.mxu0 0.0
      %3274 = vmatprep.subr.mxu0 0.0
      %3275 = vmatpush1.msra.mxu0 0.0
      %3276 = vmatprep.subr.mxu0 0.0
      %3277 = vmatpush1.msra.mxu0 0.0
      %3278 = vmatprep.subr.mxu0 0.0
      %3279 = vmatpush1.msra.mxu0 0.0
      %3280 = vmatprep.subr.mxu0 0.0
      %3281 = vmatpush1.msra.mxu0 0.0
      %3282 = vmatprep.mubr.f32.mxu0 0.0
      %3283 = vmatmul.mubr.f32.gmra.mrb[0].mxu0 %v3212
      %v3284 = vpop.f32.mrb[0].mxu0
      %v3285 = vadd.f32 %v3207, %v3284
      %v3286 = vpop.f32.mrb[0].mxu0
      %3287 = vdwg.mxu0
      %v3288 = vld [vmem:[%s2 + $0x5b0] sm:$0xff]
      %v3289 = vld [vmem:[%s2 + $0x5c0] sm:$0xf]
      %v3291 = vsel %vm1881, %v3289, 0
      %3293 = vmatprep.subr.mxu0 0.0
      %3294 = vmatpush1.msra.mxu0 %v3288
      %3295 = vmatprep.subr.mxu0 0.0
      %3296 = vmatpush1.msra.mxu0 %v3291
      %3297 = vmatprep.subr.mxu0 0.0
      %3298 = vmatpush1.msra.mxu0 0.0
      %3299 = vmatprep.subr.mxu0 0.0
      %3300 = vmatpush1.msra.mxu0 0.0
      %3301 = vmatprep.subr.mxu0 0.0
      %3302 = vmatpush1.msra.mxu0 0.0
      %3303 = vmatprep.subr.mxu0 0.0
      %3304 = vmatpush1.msra.mxu0 0.0
      %3305 = vmatprep.subr.mxu0 0.0
      %3306 = vmatpush1.msra.mxu0 0.0
      %3307 = vmatprep.subr.mxu0 0.0
      %3308 = vmatpush1.msra.mxu0 0.0
      %3309 = vmatprep.subr.mxu0 0.0
      %3310 = vmatpush1.msra.mxu0 0.0
      %3311 = vmatprep.subr.mxu0 0.0
      %3312 = vmatpush1.msra.mxu0 0.0
      %3313 = vmatprep.subr.mxu0 0.0
      %3314 = vmatpush1.msra.mxu0 0.0
      %3315 = vmatprep.subr.mxu0 0.0
      %3316 = vmatpush1.msra.mxu0 0.0
      %3317 = vmatprep.subr.mxu0 0.0
      %3318 = vmatpush1.msra.mxu0 0.0
      %3319 = vmatprep.subr.mxu0 0.0
      %3320 = vmatpush1.msra.mxu0 0.0
      %3321 = vmatprep.subr.mxu0 0.0
      %3322 = vmatpush1.msra.mxu0 0.0
      %3323 = vmatprep.subr.mxu0 0.0
      %3324 = vmatpush1.msra.mxu0 0.0
      %3325 = vmatprep.subr.mxu0 0.0
      %3326 = vmatpush1.msra.mxu0 0.0
      %3327 = vmatprep.subr.mxu0 0.0
      %3328 = vmatpush1.msra.mxu0 0.0
      %3329 = vmatprep.subr.mxu0 0.0
      %3330 = vmatpush1.msra.mxu0 0.0
      %3331 = vmatprep.subr.mxu0 0.0
      %3332 = vmatpush1.msra.mxu0 0.0
      %3333 = vmatprep.subr.mxu0 0.0
      %3334 = vmatpush1.msra.mxu0 0.0
      %3335 = vmatprep.subr.mxu0 0.0
      %3336 = vmatpush1.msra.mxu0 0.0
      %3337 = vmatprep.subr.mxu0 0.0
      %3338 = vmatpush1.msra.mxu0 0.0
      %3339 = vmatprep.subr.mxu0 0.0
      %3340 = vmatpush1.msra.mxu0 0.0
      %3341 = vmatprep.subr.mxu0 0.0
      %3342 = vmatpush1.msra.mxu0 0.0
      %3343 = vmatprep.subr.mxu0 0.0
      %3344 = vmatpush1.msra.mxu0 0.0
      %3345 = vmatprep.subr.mxu0 0.0
      %3346 = vmatpush1.msra.mxu0 0.0
      %3347 = vmatprep.subr.mxu0 0.0
      %3348 = vmatpush1.msra.mxu0 0.0
      %3349 = vmatprep.subr.mxu0 0.0
      %3350 = vmatpush1.msra.mxu0 0.0
      %3351 = vmatprep.subr.mxu0 0.0
      %3352 = vmatpush1.msra.mxu0 0.0
      %3353 = vmatprep.subr.mxu0 0.0
      %3354 = vmatpush1.msra.mxu0 0.0
      %3355 = vmatprep.subr.mxu0 0.0
      %3356 = vmatpush1.msra.mxu0 0.0
      %3357 = vmatprep.mubr.f32.mxu0 0.0
      %3358 = vmatmul.mubr.f32.gmra.mrb[0].mxu0 %v3135
      %v3359 = vpop.f32.mrb[0].mxu0
      %v3360 = vadd.f32 0.0, %v3359
      %v3361 = vpop.f32.mrb[0].mxu0
      %3362 = vdwg.mxu0
      %v3364 = vsel %vm3214, %v3131, 0
      %3366 = vmatprep.subr.mxu0 0.0
      %3367 = vmatpush1.msra.mxu0 %v3364
      %3368 = vmatprep.subr.mxu0 0.0
      %3369 = vmatpush1.msra.mxu0 0.0
      %3370 = vmatprep.subr.mxu0 0.0
      %3371 = vmatpush1.msra.mxu0 0.0
      %3372 = vmatprep.subr.mxu0 0.0
      %3373 = vmatpush1.msra.mxu0 0.0
      %3374 = vmatprep.subr.mxu0 0.0
      %3375 = vmatpush1.msra.mxu0 0.0
      %3376 = vmatprep.subr.mxu0 0.0
      %3377 = vmatpush1.msra.mxu0 0.0
      %3378 = vmatprep.subr.mxu0 0.0
      %3379 = vmatpush1.msra.mxu0 0.0
      %3380 = vmatprep.subr.mxu0 0.0
      %3381 = vmatpush1.msra.mxu0 0.0
      %3382 = vmatprep.subr.mxu0 0.0
      %3383 = vmatpush1.msra.mxu0 0.0
      %3384 = vmatprep.subr.mxu0 0.0
      %3385 = vmatpush1.msra.mxu0 0.0
      %3386 = vmatprep.subr.mxu0 0.0
      %3387 = vmatpush1.msra.mxu0 0.0
      %3388 = vmatprep.subr.mxu0 0.0
      %3389 = vmatpush1.msra.mxu0 0.0
      %3390 = vmatprep.subr.mxu0 0.0
      %3391 = vmatpush1.msra.mxu0 0.0
      %3392 = vmatprep.subr.mxu0 0.0
      %3393 = vmatpush1.msra.mxu0 0.0
      %3394 = vmatprep.subr.mxu0 0.0
      %3395 = vmatpush1.msra.mxu0 0.0
      %3396 = vmatprep.subr.mxu0 0.0
      %3397 = vmatpush1.msra.mxu0 0.0
      %3398 = vmatprep.subr.mxu0 0.0
      %3399 = vmatpush1.msra.mxu0 0.0
      %3400 = vmatprep.subr.mxu0 0.0
      %3401 = vmatpush1.msra.mxu0 0.0
      %3402 = vmatprep.subr.mxu0 0.0
      %3403 = vmatpush1.msra.mxu0 0.0
      %3404 = vmatprep.subr.mxu0 0.0
      %3405 = vmatpush1.msra.mxu0 0.0
      %3406 = vmatprep.subr.mxu0 0.0
      %3407 = vmatpush1.msra.mxu0 0.0
      %3408 = vmatprep.subr.mxu0 0.0
      %3409 = vmatpush1.msra.mxu0 0.0
      %3410 = vmatprep.subr.mxu0 0.0
      %3411 = vmatpush1.msra.mxu0 0.0
      %3412 = vmatprep.subr.mxu0 0.0
      %3413 = vmatpush1.msra.mxu0 0.0
      %3414 = vmatprep.subr.mxu0 0.0
      %3415 = vmatpush1.msra.mxu0 0.0
      %3416 = vmatprep.subr.mxu0 0.0
      %3417 = vmatpush1.msra.mxu0 0.0
      %3418 = vmatprep.subr.mxu0 0.0
      %3419 = vmatpush1.msra.mxu0 0.0
      %3420 = vmatprep.subr.mxu0 0.0
      %3421 = vmatpush1.msra.mxu0 0.0
      %3422 = vmatprep.subr.mxu0 0.0
      %3423 = vmatpush1.msra.mxu0 0.0
      %3424 = vmatprep.subr.mxu0 0.0
      %3425 = vmatpush1.msra.mxu0 0.0
      %3426 = vmatprep.subr.mxu0 0.0
      %3427 = vmatpush1.msra.mxu0 0.0
      %3428 = vmatprep.subr.mxu0 0.0
      %3429 = vmatpush1.msra.mxu0 0.0
      %3430 = vmatprep.mubr.f32.mxu0 0.0
      %3431 = vmatmul.mubr.f32.gmra.mrb[0].mxu0 %v3212
      %v3432 = vpop.f32.mrb[0].mxu0
      %v3433 = vadd.f32 %v3360, %v3432
      %v3434 = vpop.f32.mrb[0].mxu0
      %3435 = vdwg.mxu0
      %v3436 = vld [vmem:[%s2 + $0x5d0] sm:$0xff]
      %v3437 = vld [vmem:[%s2 + $0x5e0] sm:$0xf]
      %v3439 = vsel %vm1853, %v3121, 0
      %v3442 = vsel %vm1881, %v3437, 0
      %3444 = vmatprep.subr.mxu0 0.0
      %3445 = vmatpush1.msra.mxu0 %v3436
      %3446 = vmatprep.subr.mxu0 0.0
      %3447 = vmatpush1.msra.mxu0 %v3442
      %3448 = vmatprep.subr.mxu0 0.0
      %3449 = vmatpush1.msra.mxu0 0.0
      %3450 = vmatprep.subr.mxu0 0.0
      %3451 = vmatpush1.msra.mxu0 0.0
      %3452 = vmatprep.subr.mxu0 0.0
      %3453 = vmatpush1.msra.mxu0 0.0
      %3454 = vmatprep.subr.mxu0 0.0
      %3455 = vmatpush1.msra.mxu0 0.0
      %3456 = vmatprep.subr.mxu0 0.0
      %3457 = vmatpush1.msra.mxu0 0.0
      %3458 = vmatprep.subr.mxu0 0.0
      %3459 = vmatpush1.msra.mxu0 0.0
      %3460 = vmatprep.subr.mxu0 0.0
      %3461 = vmatpush1.msra.mxu0 0.0
      %3462 = vmatprep.subr.mxu0 0.0
      %3463 = vmatpush1.msra.mxu0 0.0
      %3464 = vmatprep.subr.mxu0 0.0
      %3465 = vmatpush1.msra.mxu0 0.0
      %3466 = vmatprep.subr.mxu0 0.0
      %3467 = vmatpush1.msra.mxu0 0.0
      %3468 = vmatprep.subr.mxu0 0.0
      %3469 = vmatpush1.msra.mxu0 0.0
      %3470 = vmatprep.subr.mxu0 0.0
      %3471 = vmatpush1.msra.mxu0 0.0
      %3472 = vmatprep.subr.mxu0 0.0
      %3473 = vmatpush1.msra.mxu0 0.0
      %3474 = vmatprep.subr.mxu0 0.0
      %3475 = vmatpush1.msra.mxu0 0.0
      %3476 = vmatprep.subr.mxu0 0.0
      %3477 = vmatpush1.msra.mxu0 0.0
      %3478 = vmatprep.subr.mxu0 0.0
      %3479 = vmatpush1.msra.mxu0 0.0
      %3480 = vmatprep.subr.mxu0 0.0
      %3481 = vmatpush1.msra.mxu0 0.0
      %3482 = vmatprep.subr.mxu0 0.0
      %3483 = vmatpush1.msra.mxu0 0.0
      %3484 = vmatprep.subr.mxu0 0.0
      %3485 = vmatpush1.msra.mxu0 0.0
      %3486 = vmatprep.subr.mxu0 0.0
      %3487 = vmatpush1.msra.mxu0 0.0
      %3488 = vmatprep.subr.mxu0 0.0
      %3489 = vmatpush1.msra.mxu0 0.0
      %3490 = vmatprep.subr.mxu0 0.0
      %3491 = vmatpush1.msra.mxu0 0.0
      %3492 = vmatprep.subr.mxu0 0.0
      %3493 = vmatpush1.msra.mxu0 0.0
      %3494 = vmatprep.subr.mxu0 0.0
      %3495 = vmatpush1.msra.mxu0 0.0
      %3496 = vmatprep.subr.mxu0 0.0
      %3497 = vmatpush1.msra.mxu0 0.0
      %3498 = vmatprep.subr.mxu0 0.0
      %3499 = vmatpush1.msra.mxu0 0.0
      %3500 = vmatprep.subr.mxu0 0.0
      %3501 = vmatpush1.msra.mxu0 0.0
      %3502 = vmatprep.subr.mxu0 0.0
      %3503 = vmatpush1.msra.mxu0 0.0
      %3504 = vmatprep.subr.mxu0 0.0
      %3505 = vmatpush1.msra.mxu0 0.0
      %3506 = vmatprep.subr.mxu0 0.0
      %3507 = vmatpush1.msra.mxu0 0.0
      %3508 = vmatprep.mubr.f32.mxu0 0.0
      %3509 = vmatmul.mubr.f32.gmra.mrb[0].mxu0 %v3439
      %v3510 = vpop.f32.mrb[0].mxu0
      %v3511 = vadd.f32 0.0, %v3510
      %v3512 = vpop.f32.mrb[0].mxu0
      %3513 = vdwg.mxu0
      %v3514 = vadd.f32 %v3285, %v3511
      %v3515 = vld [vmem:[%s2 + $0x5f0] sm:$0xff]
      %v3516 = vld [vmem:[%s2 + $0x600] sm:$0xf]
      %v3518 = vsel %vm1881, %v3516, 0
      %3520 = vmatprep.subr.mxu0 0.0
      %3521 = vmatpush1.msra.mxu0 %v3515
      %3522 = vmatprep.subr.mxu0 0.0
      %3523 = vmatpush1.msra.mxu0 %v3518
      %3524 = vmatprep.subr.mxu0 0.0
      %3525 = vmatpush1.msra.mxu0 0.0
      %3526 = vmatprep.subr.mxu0 0.0
      %3527 = vmatpush1.msra.mxu0 0.0
      %3528 = vmatprep.subr.mxu0 0.0
      %3529 = vmatpush1.msra.mxu0 0.0
      %3530 = vmatprep.subr.mxu0 0.0
      %3531 = vmatpush1.msra.mxu0 0.0
      %3532 = vmatprep.subr.mxu0 0.0
      %3533 = vmatpush1.msra.mxu0 0.0
      %3534 = vmatprep.subr.mxu0 0.0
      %3535 = vmatpush1.msra.mxu0 0.0
      %3536 = vmatprep.subr.mxu0 0.0
      %3537 = vmatpush1.msra.mxu0 0.0
      %3538 = vmatprep.subr.mxu0 0.0
      %3539 = vmatpush1.msra.mxu0 0.0
      %3540 = vmatprep.subr.mxu0 0.0
      %3541 = vmatpush1.msra.mxu0 0.0
      %3542 = vmatprep.subr.mxu0 0.0
      %3543 = vmatpush1.msra.mxu0 0.0
      %3544 = vmatprep.subr.mxu0 0.0
      %3545 = vmatpush1.msra.mxu0 0.0
      %3546 = vmatprep.subr.mxu0 0.0
      %3547 = vmatpush1.msra.mxu0 0.0
      %3548 = vmatprep.subr.mxu0 0.0
      %3549 = vmatpush1.msra.mxu0 0.0
      %3550 = vmatprep.subr.mxu0 0.0
      %3551 = vmatpush1.msra.mxu0 0.0
      %3552 = vmatprep.subr.mxu0 0.0
      %3553 = vmatpush1.msra.mxu0 0.0
      %3554 = vmatprep.subr.mxu0 0.0
      %3555 = vmatpush1.msra.mxu0 0.0
      %3556 = vmatprep.subr.mxu0 0.0
      %3557 = vmatpush1.msra.mxu0 0.0
      %3558 = vmatprep.subr.mxu0 0.0
      %3559 = vmatpush1.msra.mxu0 0.0
      %3560 = vmatprep.subr.mxu0 0.0
      %3561 = vmatpush1.msra.mxu0 0.0
      %3562 = vmatprep.subr.mxu0 0.0
      %3563 = vmatpush1.msra.mxu0 0.0
      %3564 = vmatprep.subr.mxu0 0.0
      %3565 = vmatpush1.msra.mxu0 0.0
      %3566 = vmatprep.subr.mxu0 0.0
      %3567 = vmatpush1.msra.mxu0 0.0
      %3568 = vmatprep.subr.mxu0 0.0
      %3569 = vmatpush1.msra.mxu0 0.0
      %3570 = vmatprep.subr.mxu0 0.0
      %3571 = vmatpush1.msra.mxu0 0.0
      %3572 = vmatprep.subr.mxu0 0.0
      %3573 = vmatpush1.msra.mxu0 0.0
      %3574 = vmatprep.subr.mxu0 0.0
      %3575 = vmatpush1.msra.mxu0 0.0
      %3576 = vmatprep.subr.mxu0 0.0
      %3577 = vmatpush1.msra.mxu0 0.0
      %3578 = vmatprep.subr.mxu0 0.0
      %3579 = vmatpush1.msra.mxu0 0.0
      %3580 = vmatprep.subr.mxu0 0.0
      %3581 = vmatpush1.msra.mxu0 0.0
      %3582 = vmatprep.subr.mxu0 0.0
      %3583 = vmatpush1.msra.mxu0 0.0
      %3584 = vmatprep.mubr.f32.mxu0 0.0
      %3585 = vmatmul.mubr.f32.gmra.mrb[0].mxu0 %v3439
      %v3586 = vpop.f32.mrb[0].mxu0
      %v3587 = vadd.f32 0.0, %v3586
      %v3588 = vpop.f32.mrb[0].mxu0
      %3589 = vdwg.mxu0
      %v3590 = vadd.f32 %v3433, %v3587
      %v3591 = vld [vmem:[%s2 + $0x610] sm:$0xff]
      %v3592 = vld [vmem:[%s2 + $0x620] sm:$0xf]
      %v3594 = vsel %vm1853, %v3126, 0
      %v3597 = vsel %vm1881, %v3592, 0
      %3599 = vmatprep.subr.mxu0 0.0
      %3600 = vmatpush1.msra.mxu0 %v3591
      %3601 = vmatprep.subr.mxu0 0.0
      %3602 = vmatpush1.msra.mxu0 %v3597
      %3603 = vmatprep.subr.mxu0 0.0
      %3604 = vmatpush1.msra.mxu0 0.0
      %3605 = vmatprep.subr.mxu0 0.0
      %3606 = vmatpush1.msra.mxu0 0.0
      %3607 = vmatprep.subr.mxu0 0.0
      %3608 = vmatpush1.msra.mxu0 0.0
      %3609 = vmatprep.subr.mxu0 0.0
      %3610 = vmatpush1.msra.mxu0 0.0
      %3611 = vmatprep.subr.mxu0 0.0
      %3612 = vmatpush1.msra.mxu0 0.0
      %3613 = vmatprep.subr.mxu0 0.0
      %3614 = vmatpush1.msra.mxu0 0.0
      %3615 = vmatprep.subr.mxu0 0.0
      %3616 = vmatpush1.msra.mxu0 0.0
      %3617 = vmatprep.subr.mxu0 0.0
      %3618 = vmatpush1.msra.mxu0 0.0
      %3619 = vmatprep.subr.mxu0 0.0
      %3620 = vmatpush1.msra.mxu0 0.0
      %3621 = vmatprep.subr.mxu0 0.0
      %3622 = vmatpush1.msra.mxu0 0.0
      %3623 = vmatprep.subr.mxu0 0.0
      %3624 = vmatpush1.msra.mxu0 0.0
      %3625 = vmatprep.subr.mxu0 0.0
      %3626 = vmatpush1.msra.mxu0 0.0
      %3627 = vmatprep.subr.mxu0 0.0
      %3628 = vmatpush1.msra.mxu0 0.0
      %3629 = vmatprep.subr.mxu0 0.0
      %3630 = vmatpush1.msra.mxu0 0.0
      %3631 = vmatprep.subr.mxu0 0.0
      %3632 = vmatpush1.msra.mxu0 0.0
      %3633 = vmatprep.subr.mxu0 0.0
      %3634 = vmatpush1.msra.mxu0 0.0
      %3635 = vmatprep.subr.mxu0 0.0
      %3636 = vmatpush1.msra.mxu0 0.0
      %3637 = vmatprep.subr.mxu0 0.0
      %3638 = vmatpush1.msra.mxu0 0.0
      %3639 = vmatprep.subr.mxu0 0.0
      %3640 = vmatpush1.msra.mxu0 0.0
      %3641 = vmatprep.subr.mxu0 0.0
      %3642 = vmatpush1.msra.mxu0 0.0
      %3643 = vmatprep.subr.mxu0 0.0
      %3644 = vmatpush1.msra.mxu0 0.0
      %3645 = vmatprep.subr.mxu0 0.0
      %3646 = vmatpush1.msra.mxu0 0.0
      %3647 = vmatprep.subr.mxu0 0.0
      %3648 = vmatpush1.msra.mxu0 0.0
      %3649 = vmatprep.subr.mxu0 0.0
      %3650 = vmatpush1.msra.mxu0 0.0
      %3651 = vmatprep.subr.mxu0 0.0
      %3652 = vmatpush1.msra.mxu0 0.0
      %3653 = vmatprep.subr.mxu0 0.0
      %3654 = vmatpush1.msra.mxu0 0.0
      %3655 = vmatprep.subr.mxu0 0.0
      %3656 = vmatpush1.msra.mxu0 0.0
      %3657 = vmatprep.subr.mxu0 0.0
      %3658 = vmatpush1.msra.mxu0 0.0
      %3659 = vmatprep.subr.mxu0 0.0
      %3660 = vmatpush1.msra.mxu0 0.0
      %3661 = vmatprep.subr.mxu0 0.0
      %3662 = vmatpush1.msra.mxu0 0.0
      %3663 = vmatprep.mubr.f32.mxu0 0.0
      %3664 = vmatmul.mubr.f32.gmra.mrb[0].mxu0 %v3594
      %v3665 = vpop.f32.mrb[0].mxu0
      %v3666 = vadd.f32 0.0, %v3665
      %v3667 = vpop.f32.mrb[0].mxu0
      %3668 = vdwg.mxu0
      %v3669 = vadd.f32 %v3514, %v3666
      %v3670 = vld [vmem:[%s2 + $0x630] sm:$0xff]
      %v3671 = vld [vmem:[%s2 + $0x640] sm:$0xf]
      %v3673 = vsel %vm1881, %v3671, 0
      %3675 = vmatprep.subr.mxu0 0.0
      %3676 = vmatpush1.msra.mxu0 %v3670
      %3677 = vmatprep.subr.mxu0 0.0
      %3678 = vmatpush1.msra.mxu0 %v3673
      %3679 = vmatprep.subr.mxu0 0.0
      %3680 = vmatpush1.msra.mxu0 0.0
      %3681 = vmatprep.subr.mxu0 0.0
      %3682 = vmatpush1.msra.mxu0 0.0
      %3683 = vmatprep.subr.mxu0 0.0
      %3684 = vmatpush1.msra.mxu0 0.0
      %3685 = vmatprep.subr.mxu0 0.0
      %3686 = vmatpush1.msra.mxu0 0.0
      %3687 = vmatprep.subr.mxu0 0.0
      %3688 = vmatpush1.msra.mxu0 0.0
      %3689 = vmatprep.subr.mxu0 0.0
      %3690 = vmatpush1.msra.mxu0 0.0
      %3691 = vmatprep.subr.mxu0 0.0
      %3692 = vmatpush1.msra.mxu0 0.0
      %3693 = vmatprep.subr.mxu0 0.0
      %3694 = vmatpush1.msra.mxu0 0.0
      %3695 = vmatprep.subr.mxu0 0.0
      %3696 = vmatpush1.msra.mxu0 0.0
      %3697 = vmatprep.subr.mxu0 0.0
      %3698 = vmatpush1.msra.mxu0 0.0
      %3699 = vmatprep.subr.mxu0 0.0
      %3700 = vmatpush1.msra.mxu0 0.0
      %3701 = vmatprep.subr.mxu0 0.0
      %3702 = vmatpush1.msra.mxu0 0.0
      %3703 = vmatprep.subr.mxu0 0.0
      %3704 = vmatpush1.msra.mxu0 0.0
      %3705 = vmatprep.subr.mxu0 0.0
      %3706 = vmatpush1.msra.mxu0 0.0
      %3707 = vmatprep.subr.mxu0 0.0
      %3708 = vmatpush1.msra.mxu0 0.0
      %3709 = vmatprep.subr.mxu0 0.0
      %3710 = vmatpush1.msra.mxu0 0.0
      %3711 = vmatprep.subr.mxu0 0.0
      %3712 = vmatpush1.msra.mxu0 0.0
      %3713 = vmatprep.subr.mxu0 0.0
      %3714 = vmatpush1.msra.mxu0 0.0
      %3715 = vmatprep.subr.mxu0 0.0
      %3716 = vmatpush1.msra.mxu0 0.0
      %3717 = vmatprep.subr.mxu0 0.0
      %3718 = vmatpush1.msra.mxu0 0.0
      %3719 = vmatprep.subr.mxu0 0.0
      %3720 = vmatpush1.msra.mxu0 0.0
      %3721 = vmatprep.subr.mxu0 0.0
      %3722 = vmatpush1.msra.mxu0 0.0
      %3723 = vmatprep.subr.mxu0 0.0
      %3724 = vmatpush1.msra.mxu0 0.0
      %3725 = vmatprep.subr.mxu0 0.0
      %3726 = vmatpush1.msra.mxu0 0.0
      %3727 = vmatprep.subr.mxu0 0.0
      %3728 = vmatpush1.msra.mxu0 0.0
      %3729 = vmatprep.subr.mxu0 0.0
      %3730 = vmatpush1.msra.mxu0 0.0
      %3731 = vmatprep.subr.mxu0 0.0
      %3732 = vmatpush1.msra.mxu0 0.0
      %3733 = vmatprep.subr.mxu0 0.0
      %3734 = vmatpush1.msra.mxu0 0.0
      %3735 = vmatprep.subr.mxu0 0.0
      %3736 = vmatpush1.msra.mxu0 0.0
      %3737 = vmatprep.subr.mxu0 0.0
      %3738 = vmatpush1.msra.mxu0 0.0
      %3739 = vmatprep.mubr.f32.mxu0 0.0
      %3740 = vmatmul.mubr.f32.gmra.mrb[0].mxu0 %v3594
      %v3741 = vpop.f32.mrb[0].mxu0
      %v3742 = vadd.f32 0.0, %v3741
      %v3743 = vpop.f32.mrb[0].mxu0
      %3744 = vdwg.mxu0
      %v3745 = vadd.f32 %v3590, %v3742
      %v3746 = vld [vmem:[%s2 + $0x6d0] ss:$0 sm:$0xff]
      %v3747 = vadd.f32 %v3669, %v3746
      %v3748 = vtanh.pop %v3747
      %v3749 = vld [vmem:[%s2 + $0x650] sm:$0xff]
      %v3750 = vld [vmem:[%s2 + $0x660] sm:$0xff]
      %v3751 = vld [vmem:[%s2 + $0x670] sm:$0xff]
      %v3752 = vld [vmem:[%s2 + $0x680] sm:$0xff]
      %v3753 = vld [vmem:[%s2 + $0x6e0] ss:$0 sm:$0xff]
      %v3755 = vsel %vm206, %v3748, 0
      %3757 = vmatprep.subr.mxu0 0.0
      %3758 = vmatpush1.msra.mxu0 %v3749
      %3759 = vmatprep.subr.mxu0 0.0
      %3760 = vmatpush1.msra.mxu0 %v3750
      %3761 = vmatprep.subr.mxu0 0.0
      %3762 = vmatpush1.msra.mxu0 %v3751
      %3763 = vmatprep.subr.mxu0 0.0
      %3764 = vmatpush1.msra.mxu0 %v3752
      %3765 = vmatprep.subr.mxu0 0.0
      %3766 = vmatpush1.msra.mxu0 0.0
      %3767 = vmatprep.subr.mxu0 0.0
      %3768 = vmatpush1.msra.mxu0 0.0
      %3769 = vmatprep.subr.mxu0 0.0
      %3770 = vmatpush1.msra.mxu0 0.0
      %3771 = vmatprep.subr.mxu0 0.0
      %3772 = vmatpush1.msra.mxu0 0.0
      %3773 = vmatprep.subr.mxu0 0.0
      %3774 = vmatpush1.msra.mxu0 0.0
      %3775 = vmatprep.subr.mxu0 0.0
      %3776 = vmatpush1.msra.mxu0 0.0
      %3777 = vmatprep.subr.mxu0 0.0
      %3778 = vmatpush1.msra.mxu0 0.0
      %3779 = vmatprep.subr.mxu0 0.0
      %3780 = vmatpush1.msra.mxu0 0.0
      %3781 = vmatprep.subr.mxu0 0.0
      %3782 = vmatpush1.msra.mxu0 0.0
      %3783 = vmatprep.subr.mxu0 0.0
      %3784 = vmatpush1.msra.mxu0 0.0
      %3785 = vmatprep.subr.mxu0 0.0
      %3786 = vmatpush1.msra.mxu0 0.0
      %3787 = vmatprep.subr.mxu0 0.0
      %3788 = vmatpush1.msra.mxu0 0.0
      %3789 = vmatprep.subr.mxu0 0.0
      %3790 = vmatpush1.msra.mxu0 0.0
      %3791 = vmatprep.subr.mxu0 0.0
      %3792 = vmatpush1.msra.mxu0 0.0
      %3793 = vmatprep.subr.mxu0 0.0
      %3794 = vmatpush1.msra.mxu0 0.0
      %3795 = vmatprep.subr.mxu0 0.0
      %3796 = vmatpush1.msra.mxu0 0.0
      %3797 = vmatprep.subr.mxu0 0.0
      %3798 = vmatpush1.msra.mxu0 0.0
      %3799 = vmatprep.subr.mxu0 0.0
      %3800 = vmatpush1.msra.mxu0 0.0
      %3801 = vmatprep.subr.mxu0 0.0
      %3802 = vmatpush1.msra.mxu0 0.0
      %3803 = vmatprep.subr.mxu0 0.0
      %3804 = vmatpush1.msra.mxu0 0.0
      %3805 = vmatprep.subr.mxu0 0.0
      %3806 = vmatpush1.msra.mxu0 0.0
      %3807 = vmatprep.subr.mxu0 0.0
      %3808 = vmatpush1.msra.mxu0 0.0
      %3809 = vmatprep.subr.mxu0 0.0
      %3810 = vmatpush1.msra.mxu0 0.0
      %3811 = vmatprep.subr.mxu0 0.0
      %3812 = vmatpush1.msra.mxu0 0.0
      %3813 = vmatprep.subr.mxu0 0.0
      %3814 = vmatpush1.msra.mxu0 0.0
      %3815 = vmatprep.subr.mxu0 0.0
      %3816 = vmatpush1.msra.mxu0 0.0
      %3817 = vmatprep.subr.mxu0 0.0
      %3818 = vmatpush1.msra.mxu0 0.0
      %3819 = vmatprep.subr.mxu0 0.0
      %3820 = vmatpush1.msra.mxu0 0.0
      %3821 = vmatprep.mubr.f32.mxu0 0.0
      %3822 = vmatmul.mubr.f32.gmra.mrb[0].mxu0 %v3755
      %v3823 = vpop.f32.mrb[0].mxu0
      %v3824 = vadd.f32 %v3753, %v3823
      %v3825 = vpop.f32.mrb[0].mxu0
      %3826 = vdwg.mxu0
      %v3827 = vtanh.pop %v3824
      %v3828 = vld [vmem:[%s2 + $0x690] sm:$0xff]
      %v3829 = vld [vmem:[%s2 + $0x6a0] sm:$0xff]
      %v3830 = vld [vmem:[%s2 + $0x6b0] sm:$0xff]
      %v3831 = vld [vmem:[%s2 + $0x6c0] sm:$0xff]
      %v3833 = vsel %vm206, %v3827, 0
      %3835 = vmatprep.subr.mxu0 0.0
      %3836 = vmatpush1.msra.mxu0 %v3828
      %3837 = vmatprep.subr.mxu0 0.0
      %3838 = vmatpush1.msra.mxu0 %v3829
      %3839 = vmatprep.subr.mxu0 0.0
      %3840 = vmatpush1.msra.mxu0 %v3830
      %3841 = vmatprep.subr.mxu0 0.0
      %3842 = vmatpush1.msra.mxu0 %v3831
      %3843 = vmatprep.subr.mxu0 0.0
      %3844 = vmatpush1.msra.mxu0 0.0
      %3845 = vmatprep.subr.mxu0 0.0
      %3846 = vmatpush1.msra.mxu0 0.0
      %3847 = vmatprep.subr.mxu0 0.0
      %3848 = vmatpush1.msra.mxu0 0.0
      %3849 = vmatprep.subr.mxu0 0.0
      %3850 = vmatpush1.msra.mxu0 0.0
      %3851 = vmatprep.subr.mxu0 0.0
      %3852 = vmatpush1.msra.mxu0 0.0
      %3853 = vmatprep.subr.mxu0 0.0
      %3854 = vmatpush1.msra.mxu0 0.0
      %3855 = vmatprep.subr.mxu0 0.0
      %3856 = vmatpush1.msra.mxu0 0.0
      %3857 = vmatprep.subr.mxu0 0.0
      %3858 = vmatpush1.msra.mxu0 0.0
      %3859 = vmatprep.subr.mxu0 0.0
      %3860 = vmatpush1.msra.mxu0 0.0
      %3861 = vmatprep.subr.mxu0 0.0
      %3862 = vmatpush1.msra.mxu0 0.0
      %3863 = vmatprep.subr.mxu0 0.0
      %3864 = vmatpush1.msra.mxu0 0.0
      %3865 = vmatprep.subr.mxu0 0.0
      %3866 = vmatpush1.msra.mxu0 0.0
      %3867 = vmatprep.subr.mxu0 0.0
      %3868 = vmatpush1.msra.mxu0 0.0
      %3869 = vmatprep.subr.mxu0 0.0
      %3870 = vmatpush1.msra.mxu0 0.0
      %3871 = vmatprep.subr.mxu0 0.0
      %3872 = vmatpush1.msra.mxu0 0.0
      %3873 = vmatprep.subr.mxu0 0.0
      %3874 = vmatpush1.msra.mxu0 0.0
      %3875 = vmatprep.subr.mxu0 0.0
      %3876 = vmatpush1.msra.mxu0 0.0
      %3877 = vmatprep.subr.mxu0 0.0
      %3878 = vmatpush1.msra.mxu0 0.0
      %3879 = vmatprep.subr.mxu0 0.0
      %3880 = vmatpush1.msra.mxu0 0.0
      %3881 = vmatprep.subr.mxu0 0.0
      %3882 = vmatpush1.msra.mxu0 0.0
      %3883 = vmatprep.subr.mxu0 0.0
      %3884 = vmatpush1.msra.mxu0 0.0
      %3885 = vmatprep.subr.mxu0 0.0
      %3886 = vmatpush1.msra.mxu0 0.0
      %3887 = vmatprep.subr.mxu0 0.0
      %3888 = vmatpush1.msra.mxu0 0.0
      %3889 = vmatprep.subr.mxu0 0.0
      %3890 = vmatpush1.msra.mxu0 0.0
      %3891 = vmatprep.subr.mxu0 0.0
      %3892 = vmatpush1.msra.mxu0 0.0
      %3893 = vmatprep.subr.mxu0 0.0
      %3894 = vmatpush1.msra.mxu0 0.0
      %3895 = vmatprep.subr.mxu0 0.0
      %3896 = vmatpush1.msra.mxu0 0.0
      %3897 = vmatprep.subr.mxu0 0.0
      %3898 = vmatpush1.msra.mxu0 0.0
      %3899 = vmatprep.mubr.f32.mxu0 0.0
      %3900 = vmatmul.mubr.f32.gmra.mrb[0].mxu0 %v3833
      %v3901 = vpop.f32.mrb[0].mxu0
      %v3902 = vadd.f32 %v3745, %v3901
      %v3903 = vpop.f32.mrb[0].mxu0
      %3904 = vdwg.mxu0
      %v3905 = vld [vmem:[%s2 + $0x6f0] ss:$0 sm:$0xff]
      %v3906 = vadd.f32 %v3902, %v3905
      %vm3907 = vcmask 31744
      %3908 = vst.msk [vmem:[%s187] sm:$0xff] %vm3907, %v3906
      %p3909 = scmp.lt.s32.totalorder %s14, 1
      %s3910 = scalar_select %p3909, %s14, 1
      %s3911 = smul.addr %s3910, 8
      %s3912 = scalar_lea.vmem %s3, %s3911
      // Predicated region
      $region33: #{cnn_encoder_forward.1} parent=31 // pred_check
        %p3913 = pneg %p105
      $region34: #{cnn_encoder_forward.1} parent=31 // pred_check_branch
        %3915 = sbr.rel (%p3913) target = $region36
      $region35: #{cnn_encoder_forward.1} parent=31 // pred_region
        _
      $region36: #{cnn_encoder_forward.1} parent=31 // pred_fallthru
        _
    $region32: #{cnn_encoder_forward.1} parent=5 // pred_fallthru
      _
    %p3916 = scmp.le.s32.totalorder 2, %s9
    // Predicated region
    $region37: #{cnn_encoder_forward.1} parent=5 // pred_check
      %p3917 = pneg %p3916
    $region38: #{cnn_encoder_forward.1} parent=5 // pred_check_branch
      %3919 = sbr.rel (%p3917) target = $region40
    $region39: #{cnn_encoder_forward.1} parent=5 // pred_region
      %s3920 = ssub.s32 %s9, 2
      // Predicated region
      $region41: #{cnn_encoder_forward.1} parent=39 // pred_check
        %p3921 = pneg %p111
      $region42: #{cnn_encoder_forward.1} parent=39 // pred_check_branch
        %3923 = sbr.rel (%p3921) target = $region44
      $region43: #{cnn_encoder_forward.1} parent=39 // pred_region
        %p3924 = scmp.lt.s32.totalorder %s15, 1
        %s3925 = scalar_select %p3924, %s15, 1
        %s3926 = smul.addr %s3925, 8
        %s3927 = scalar_lea.vmem %s3, %s3926
      $region44: #{cnn_encoder_forward.1} parent=39 // pred_fallthru
        _
    $region40: #{cnn_encoder_forward.1} parent=5 // pred_fallthru
      _
  $region6: #{cnn_encoder_forward.1} parent=0 // loop_footer
    %s13 = sadd.s32 1, %s9
  $region7: #{cnn_encoder_forward.1} parent=0 // loop_footer_branch
    %8 = sbr.rel target = $region3
  $region8: #{cnn_encoder_forward.1} parent=0 // loop_exit
    _

</llo_original>
